<compile_context>
chip_gen: v7x
topology: tpu7x:2x2x1
jax: 0.10.0
libtpu: 0.0.40
codegen_flags: <defaults>
</compile_context>

<pallas_src>
import functools

import jax
import jax.numpy as jnp
from jax import lax
from jax.experimental import pallas as pl
from jax.experimental.pallas import tpu as pltpu

K_ITERS = 10
ALPHA = 0.1
LANE = 128


def _round_up(n, m):
    return ((n + m - 1) // m) * m


def _pad2d(x, rows, cols):
    r, c = x.shape
    return jnp.pad(x, ((0, rows - r), (0, cols - c)))


def _vmem_budgets():
    """Generation-aware VMEM budgets (v5e/v6e: 128 MiB VMEM, v7x: 64 MiB)."""
    try:
        vmem = int(pltpu.get_tpu_info().vmem_capacity_bytes)
    except Exception:
        vmem = 64 * 1024 * 1024          # conservative fallback (v7x-sized)
    budget = int(0.70 * vmem)            # keep A resident below this footprint
    limit = int(0.85 * vmem)             # scoped-VMEM cap handed to Mosaic
    return budget, limit


# ---------------------------------------------------------------------------
# Path 1: monolithic kernel, bf16 A_hat resident in VMEM for all K iterations.
# ---------------------------------------------------------------------------
def appnp_resident_kernel(x_ref, w1_ref, b1_ref, w2_ref, b2_ref, a_ref, o_ref,
                          *, k_iters, alpha, n_classes):
    # ---- MLP: relu(lin1(x)); lin2(.)  (bf16 operands, f32 accumulation) ----
    h = jnp.dot(x_ref[...], w1_ref[...], preferred_element_type=jnp.float32)
    h = jnp.maximum(h + b1_ref[...], 0.0).astype(jnp.bfloat16)
    h = jnp.dot(h, w2_ref[...], preferred_element_type=jnp.float32)
    h = h + b2_ref[...]                                    # (N, C_pad) f32

    # ---- APPNP: h <- A_prop @ h + alpha*h0  (A_prop = (1-alpha)*A_hat) -----
    h0_scaled = alpha * h                                  # hoisted out of loop
    a_prop = a_ref[...]                                    # (N, N) bf16, pre-scaled

    def prop_body(_, h_cur):
        return (jnp.dot(a_prop, h_cur.astype(jnp.bfloat16),
                        preferred_element_type=jnp.float32) + h0_scaled)

    # unrolled fori_loop: LLO scheduler visibility while bounding live ranges
    h = lax.fori_loop(0, k_iters, prop_body, h, unroll=True)

    # ---- log_softmax over the class axis (f32; padded classes -> -inf) ----
    col = lax.broadcasted_iota(jnp.int32, h.shape, 1)
    hm = jnp.where(col < n_classes, h, -jnp.inf)
    m = jnp.max(hm, axis=-1, keepdims=True)
    z = hm - m
    lse = jnp.log(jnp.sum(jnp.exp(z), axis=-1, keepdims=True))
    o_ref[...] = z - lse


# ---------------------------------------------------------------------------
# Path 2: row-tiled grid.  A row tiles streamed/pipelined from HBM; h / h0
# stay resident in VMEM scratch (h double-buffered across iterations).
# ---------------------------------------------------------------------------
def appnp_tiled_kernel(x_ref, w1_ref, b1_ref, w2_ref, b2_ref, a_ref, o_ref,
                       h_buf, h0_ref, *, k_iters, alpha, n_classes, tm):
    k = pl.program_id(0)          # 0 = MLP stage, 1..K = propagation stages
    i = pl.program_id(1)          # row-tile index
    row0 = pl.multiple_of(i * tm, tm)
    rows = pl.ds(row0, tm)

    @pl.when(k == 0)
    def _mlp_stage():
        h = jnp.dot(x_ref[...], w1_ref[...], preferred_element_type=jnp.float32)
        h = jnp.maximum(h + b1_ref[...], 0.0).astype(jnp.bfloat16)
        h = jnp.dot(h, w2_ref[...], preferred_element_type=jnp.float32)
        h = h + b2_ref[...]                               # (tm, C_pad) f32
        h0_ref[rows, :] = (alpha * h).astype(jnp.bfloat16)   # alpha folded once
        h_buf[0, rows, :] = h.astype(jnp.bfloat16)

    @pl.when(k > 0)
    def _prop_stage():
        src = (k - 1) % 2                                 # read slot (prev stage)
        dst = k % 2                                       # write slot (this stage)
        # (1 - alpha) already folded into a_ref by the wrapper.
        h_new = (jnp.dot(a_ref[...], h_buf[src],
                         preferred_element_type=jnp.float32)
                 + h0_ref[rows, :].astype(jnp.float32))

        @pl.when(k < k_iters)                             # skip dead store on last stage
        def _store_h():
            h_buf[dst, rows, :] = h_new.astype(jnp.bfloat16)

        @pl.when(k == k_iters)
        def _emit_output():
            col = lax.broadcasted_iota(jnp.int32, h_new.shape, 1)
            hm = jnp.where(col < n_classes, h_new, -jnp.inf)
            m = jnp.max(hm, axis=-1, keepdims=True)
            z = hm - m
            lse = jnp.log(jnp.sum(jnp.exp(z), axis=-1, keepdims=True))
            o_ref[...] = z - lse


def appnp_net_forward(x, a_hat, w1, b1, w2, b2, *, k_iters=K_ITERS, alpha=ALPHA,
                      row_tile=None, force_path=None):
    """APPNPNet forward; a_hat is the dense GCN-normalized adjacency."""
    n, f_in = x.shape
    hidden = w1.shape[1]
    n_classes = w2.shape[1]

    f_pad = _round_up(f_in, LANE)
    h_pad = _round_up(hidden, LANE)
    c_pad = LANE                                   # lane-dense class dimension

    resident_budget, vmem_limit = _vmem_budgets()

    # Resident-path VMEM estimate (bf16 A + bf16 x + f32/bf16 h buffers + out).
    def resident_bytes(np_):
        return (np_ * np_ * 2
                + np_ * f_pad * 2
                + np_ * c_pad * (4 + 4 + 2 + 4)
                + (f_pad * h_pad + h_pad * c_pad) * 2)

    # Tiled-path VMEM estimate for a candidate row tile (double-buffered DMAs
    # for A/x/out + bf16 h_buf (2 slots) + bf16 alpha*h0 + weights).
    def tiled_bytes(rt, np_):
        return (2 * rt * np_ * 2
                + 2 * rt * f_pad * 2
                + 2 * rt * c_pad * 4
                + np_ * c_pad * (2 * 2 + 2)
                + 2 * ((f_pad * h_pad + h_pad * c_pad) * 2
                       + (h_pad + c_pad) * 4))

    n_pad_lane = _round_up(n, LANE)
    use_resident = resident_bytes(n_pad_lane) <= resident_budget
    if force_path == "resident":
        use_resident = True
    elif force_path == "tiled":
        use_resident = False

    if not use_resident:
        if row_tile is None:
            # Prefer big row tiles (>=512 where possible: ~85% vs ~63% of HBM
            # roofline at 256, fewer grid steps), bounded by the VMEM limit.
            cands = [c for c in (1024, 512, 256, 128) if c <= n_pad_lane]
            if not cands:
                cands = [n_pad_lane]
            row_tile = cands[-1]
            for cand in cands:                       # descending order
                if tiled_bytes(cand, _round_up(n, cand)) <= int(0.9 * vmem_limit):
                    row_tile = cand
                    break
        assert row_tile % LANE == 0
        n_pad = _round_up(n, row_tile)
    else:
        n_pad = n_pad_lane

    # Zero-padding keeps the real rows/cols numerically exact; padded node rows
    # never feed real rows (their A columns are zero) and padded class columns
    # stay exactly zero (masked to -inf before softmax).
    x_p = _pad2d(x, n_pad, f_pad).astype(jnp.bfloat16)
    w1_p = _pad2d(w1, f_pad, h_pad).astype(jnp.bfloat16)
    b1_p = _pad2d(b1, 1, h_pad).astype(jnp.float32)
    w2_p = _pad2d(w2, h_pad, c_pad).astype(jnp.bfloat16)
    b2_p = _pad2d(b2, 1, c_pad).astype(jnp.float32)
    # Fold the (1 - alpha) APPNP scale into A once (fused with the bf16 cast).
    a_p = ((1.0 - alpha) * _pad2d(a_hat, n_pad, n_pad)).astype(jnp.bfloat16)

    if use_resident:
        vmem = pl.BlockSpec(memory_space=pltpu.MemorySpace.VMEM)
        kernel = functools.partial(appnp_resident_kernel, k_iters=k_iters,
                                   alpha=alpha, n_classes=n_classes)
        out = pl.pallas_call(
            kernel,
            out_shape=jax.ShapeDtypeStruct((n_pad, c_pad), jnp.float32),
            in_specs=[vmem] * 6,
            out_specs=vmem,
            compiler_params=pltpu.CompilerParams(
                vmem_limit_bytes=vmem_limit),
        )(x_p, w1_p, b1_p, w2_p, b2_p, a_p)
    else:
        num_tiles = n_pad // row_tile
        kernel = functools.partial(appnp_tiled_kernel, k_iters=k_iters,
                                   alpha=alpha, n_classes=n_classes,
                                   tm=row_tile)
        grid = (k_iters + 1, num_tiles)
        # x is only needed at stage 0 (parked on its last-used block after),
        # A only at stages >= 1 (parked on block 0 during stage 0).
        in_specs = [
            pl.BlockSpec((row_tile, f_pad),
                         lambda k, i, nt=num_tiles - 1:
                         (jnp.where(k == 0, i, nt), 0)),
            pl.BlockSpec((f_pad, h_pad), lambda k, i: (0, 0)),
            pl.BlockSpec((1, h_pad), lambda k, i: (0, 0)),
            pl.BlockSpec((h_pad, c_pad), lambda k, i: (0, 0)),
            pl.BlockSpec((1, c_pad), lambda k, i: (0, 0)),
            pl.BlockSpec((row_tile, n_pad),
                         lambda k, i: (jnp.where(k == 0, 0, i), 0)),
        ]
        out_spec = pl.BlockSpec(
            (row_tile, c_pad),
            lambda k, i, kk=k_iters: (jnp.where(k == kk, i, 0), 0))
        out = pl.pallas_call(
            kernel,
            out_shape=jax.ShapeDtypeStruct((n_pad, c_pad), jnp.float32),
            grid_spec=pltpu.PrefetchScalarGridSpec(
                num_scalar_prefetch=0,
                grid=grid,
                in_specs=in_specs,
                out_specs=out_spec,
                scratch_shapes=[
                    pltpu.VMEM((2, n_pad, c_pad), jnp.bfloat16),  # h (dbl-buf)
                    pltpu.VMEM((n_pad, c_pad), jnp.bfloat16),     # alpha * h0
                ]),
            # Row-tile axis MUST stay sequential: stage k reads the FULL h_buf
            # written by all tiles of stage k-1 (see TODO(synk) at top).
            compiler_params=pltpu.CompilerParams(
                dimension_semantics=("arbitrary", "arbitrary"),
                vmem_limit_bytes=vmem_limit),
        )(x_p, w1_p, b1_p, w2_p, b2_p, a_p)

    return out[:n, :n_classes]


def build_normalized_adjacency(edge_index, num_nodes):
    """Dense GCN-normalized adjacency with self-loops (PyG gcn_norm)."""
    src, dst = edge_index
    a = jnp.zeros((num_nodes, num_nodes), jnp.float32)
    a = a.at[src, dst].set(1.0)
    a = a.at[dst, src].set(1.0)                       # make symmetric
    idx = jnp.arange(num_nodes)
    a = a.at[idx, idx].set(1.0)                       # add self-loops
    deg = a.sum(axis=1)
    dinv = jnp.where(deg > 0, 1.0 / jnp.sqrt(deg), 0.0)
    return dinv[:, None] * a * dinv[None, :]


def init_linear(key, fan_in, fan_out):
    """Deterministic PyTorch-style Linear init: U(-1/sqrt(fan_in), +...)."""
    kw, kb = jax.random.split(key)
    bound = 1.0 / jnp.sqrt(jnp.float32(fan_in))
    w = jax.random.uniform(kw, (fan_in, fan_out), jnp.float32, -bound, bound)
    b = jax.random.uniform(kb, (1, fan_out), jnp.float32, -bound, bound)
    return w, b


def appnp_reference(x, a_hat, w1, b1, w2, b2, k_iters, alpha):
    """Pure-JAX f32 reference of the APPNPNet forward pass."""
    h = jnp.maximum(x @ w1 + b1, 0.0)
    h = h @ w2 + b2
    h0 = h
    for _ in range(k_iters):
        h = (1.0 - alpha) * (a_hat @ h) + alpha * h0
    return jax.nn.log_softmax(h, axis=-1)


if __name__ == "__main__":
    IN_CH, HIDDEN, OUT_CH = 32, 16, 8

    key = jax.random.PRNGKey(0)
    k_g1, k_g2, k_l1, k_l2 = jax.random.split(key, 4)

    w1, b1 = init_linear(k_l1, IN_CH, HIDDEN)
    w2, b2 = init_linear(k_l2, HIDDEN, OUT_CH)

    def make_graph(k_graph, n):
        k_x, k_e = jax.random.split(k_graph)
        x = jax.random.normal(k_x, (n, IN_CH), jnp.float32)
        ring_src = jnp.arange(n, dtype=jnp.int32)
        ring_dst = (ring_src + 1) % n
        rand_edges = jax.random.randint(k_e, (2, 2 * n), 0, n, dtype=jnp.int32)
        edge_index = jnp.concatenate(
            [jnp.stack([ring_src, ring_dst]), rand_edges], axis=1)
        return x, build_normalized_adjacency(edge_index, n)

    # (256 nodes -> resident path, auto-selected with gen-aware budget) and
    # (1024 nodes -> forced row-tiled streaming path, row_tile=512 -> 2 tiles)
    # to exercise both kernels.
    for n_nodes, k_graph, force_path, rt in ((256, k_g1, None, None),
                                             (1024, k_g2, "tiled", 512)):
        x, a_hat = make_graph(k_graph, n_nodes)
        out = appnp_net_forward(x, a_hat, w1, b1, w2, b2,
                                row_tile=rt, force_path=force_path)
        out = jax.block_until_ready(out)

        assert out.shape == (n_nodes, OUT_CH)
        assert bool(jnp.all(jnp.isfinite(out)))
        # log_softmax rows should sum (in prob space) to 1.
        assert jnp.allclose(jnp.sum(jnp.exp(out), axis=1), 1.0, atol=1e-3)
        # bf16 propagation vs. f32 pure-JAX reference.
        ref = appnp_reference(x, a_hat, w1, b1, w2, b2, K_ITERS, ALPHA)
        max_err = float(jnp.max(jnp.abs(out - ref)))
        assert max_err < 1e-1, f"max |out - ref| too large: {max_err}"

    print("KERNEL_OK")
</pallas_src>

<mosaic_0001>
module attributes {stable_mosaic.version = 11 : i64} {
  func.func @appnp_resident_kernel(%arg0: memref<256x128xbf16, #tpu.memory_space<vmem>>, %arg1: memref<128x128xbf16, #tpu.memory_space<vmem>>, %arg2: memref<1x128xf32, #tpu.memory_space<vmem>>, %arg3: memref<128x128xbf16, #tpu.memory_space<vmem>>, %arg4: memref<1x128xf32, #tpu.memory_space<vmem>>, %arg5: memref<256x256xbf16, #tpu.memory_space<vmem>>, %arg6: memref<256x128xf32, #tpu.memory_space<vmem>>) attributes {dimension_semantics = [], scalar_prefetch = 0 : i64, scratch_operands = 0 : i64, tpu.core_type = #tpu.core_type<tc>} {
    %c0 = arith.constant 0 : index
    %c0_0 = arith.constant 0 : index
    %0 = vector.load %arg0[%c0, %c0_0] : memref<256x128xbf16, #tpu.memory_space<vmem>>, vector<256x128xbf16>
    %c0_1 = arith.constant 0 : index
    %c0_2 = arith.constant 0 : index
    %1 = vector.load %arg1[%c0_1, %c0_2] : memref<128x128xbf16, #tpu.memory_space<vmem>>, vector<128x128xbf16>
    %cst = arith.constant dense<0.000000e+00> : vector<256x128xf32>
    %2 = tpu.matmul %0, %1, %cst {dimension_numbers = #tpu.dot_dimension_numbers<[1], [0], [0], [1], [0, 0, 1, 1], [], []>} : vector<256x128xbf16>, vector<128x128xbf16>, vector<256x128xf32> -> vector<256x128xf32>
    %c0_3 = arith.constant 0 : index
    %c0_4 = arith.constant 0 : index
    %3 = vector.load %arg2[%c0_3, %c0_4] : memref<1x128xf32, #tpu.memory_space<vmem>>, vector<1x128xf32>
    %4 = vector.broadcast %3 : vector<1x128xf32> to vector<256x128xf32>
    %5 = arith.addf %2, %4 : vector<256x128xf32>
    %cst_5 = arith.constant 0.000000e+00 : f32
    %6 = vector.broadcast %cst_5 : f32 to vector<256x128xf32>
    %7 = arith.maximumf %5, %6 : vector<256x128xf32>
    %8 = arith.truncf %7 : vector<256x128xf32> to vector<256x128xbf16>
    %c0_6 = arith.constant 0 : index
    %c0_7 = arith.constant 0 : index
    %9 = vector.load %arg3[%c0_6, %c0_7] : memref<128x128xbf16, #tpu.memory_space<vmem>>, vector<128x128xbf16>
    %cst_8 = arith.constant dense<0.000000e+00> : vector<256x128xf32>
    %10 = tpu.matmul %8, %9, %cst_8 {dimension_numbers = #tpu.dot_dimension_numbers<[1], [0], [0], [1], [0, 0, 1, 1], [], []>} : vector<256x128xbf16>, vector<128x128xbf16>, vector<256x128xf32> -> vector<256x128xf32>
    %c0_9 = arith.constant 0 : index
    %c0_10 = arith.constant 0 : index
    %11 = vector.load %arg4[%c0_9, %c0_10] : memref<1x128xf32, #tpu.memory_space<vmem>>, vector<1x128xf32>
    %12 = vector.broadcast %11 : vector<1x128xf32> to vector<256x128xf32>
    %13 = arith.addf %10, %12 : vector<256x128xf32>
    %cst_11 = arith.constant 1.000000e-01 : f32
    %14 = vector.broadcast %cst_11 : f32 to vector<256x128xf32>
    %15 = arith.mulf %14, %13 : vector<256x128xf32>
    %c0_12 = arith.constant 0 : index
    %c0_13 = arith.constant 0 : index
    %16 = vector.load %arg5[%c0_12, %c0_13] : memref<256x256xbf16, #tpu.memory_space<vmem>>, vector<256x256xbf16>
    %c0_i32 = arith.constant 0 : i32
    %17 = arith.truncf %13 : vector<256x128xf32> to vector<256x128xbf16>
    %cst_14 = arith.constant dense<0.000000e+00> : vector<256x128xf32>
    %18 = tpu.matmul %16, %17, %cst_14 {dimension_numbers = #tpu.dot_dimension_numbers<[1], [0], [0], [1], [0, 0, 1, 1], [], []>} : vector<256x256xbf16>, vector<256x128xbf16>, vector<256x128xf32> -> vector<256x128xf32>
    %19 = arith.addf %18, %15 : vector<256x128xf32>
    %c1_i32 = arith.constant 1 : i32
    %20 = arith.truncf %19 : vector<256x128xf32> to vector<256x128xbf16>
    %cst_15 = arith.constant dense<0.000000e+00> : vector<256x128xf32>
    %21 = tpu.matmul %16, %20, %cst_15 {dimension_numbers = #tpu.dot_dimension_numbers<[1], [0], [0], [1], [0, 0, 1, 1], [], []>} : vector<256x256xbf16>, vector<256x128xbf16>, vector<256x128xf32> -> vector<256x128xf32>
    %22 = arith.addf %21, %15 : vector<256x128xf32>
    %c2_i32 = arith.constant 2 : i32
    %23 = arith.truncf %22 : vector<256x128xf32> to vector<256x128xbf16>
    %cst_16 = arith.constant dense<0.000000e+00> : vector<256x128xf32>
    %24 = tpu.matmul %16, %23, %cst_16 {dimension_numbers = #tpu.dot_dimension_numbers<[1], [0], [0], [1], [0, 0, 1, 1], [], []>} : vector<256x256xbf16>, vector<256x128xbf16>, vector<256x128xf32> -> vector<256x128xf32>
    %25 = arith.addf %24, %15 : vector<256x128xf32>
    %c3_i32 = arith.constant 3 : i32
    %26 = arith.truncf %25 : vector<256x128xf32> to vector<256x128xbf16>
    %cst_17 = arith.constant dense<0.000000e+00> : vector<256x128xf32>
    %27 = tpu.matmul %16, %26, %cst_17 {dimension_numbers = #tpu.dot_dimension_numbers<[1], [0], [0], [1], [0, 0, 1, 1], [], []>} : vector<256x256xbf16>, vector<256x128xbf16>, vector<256x128xf32> -> vector<256x128xf32>
    %28 = arith.addf %27, %15 : vector<256x128xf32>
    %c4_i32 = arith.constant 4 : i32
    %29 = arith.truncf %28 : vector<256x128xf32> to vector<256x128xbf16>
    %cst_18 = arith.constant dense<0.000000e+00> : vector<256x128xf32>
    %30 = tpu.matmul %16, %29, %cst_18 {dimension_numbers = #tpu.dot_dimension_numbers<[1], [0], [0], [1], [0, 0, 1, 1], [], []>} : vector<256x256xbf16>, vector<256x128xbf16>, vector<256x128xf32> -> vector<256x128xf32>
    %31 = arith.addf %30, %15 : vector<256x128xf32>
    %c5_i32 = arith.constant 5 : i32
    %32 = arith.truncf %31 : vector<256x128xf32> to vector<256x128xbf16>
    %cst_19 = arith.constant dense<0.000000e+00> : vector<256x128xf32>
    %33 = tpu.matmul %16, %32, %cst_19 {dimension_numbers = #tpu.dot_dimension_numbers<[1], [0], [0], [1], [0, 0, 1, 1], [], []>} : vector<256x256xbf16>, vector<256x128xbf16>, vector<256x128xf32> -> vector<256x128xf32>
    %34 = arith.addf %33, %15 : vector<256x128xf32>
    %c6_i32 = arith.constant 6 : i32
    %35 = arith.truncf %34 : vector<256x128xf32> to vector<256x128xbf16>
    %cst_20 = arith.constant dense<0.000000e+00> : vector<256x128xf32>
    %36 = tpu.matmul %16, %35, %cst_20 {dimension_numbers = #tpu.dot_dimension_numbers<[1], [0], [0], [1], [0, 0, 1, 1], [], []>} : vector<256x256xbf16>, vector<256x128xbf16>, vector<256x128xf32> -> vector<256x128xf32>
    %37 = arith.addf %36, %15 : vector<256x128xf32>
    %c7_i32 = arith.constant 7 : i32
    %38 = arith.truncf %37 : vector<256x128xf32> to vector<256x128xbf16>
    %cst_21 = arith.constant dense<0.000000e+00> : vector<256x128xf32>
    %39 = tpu.matmul %16, %38, %cst_21 {dimension_numbers = #tpu.dot_dimension_numbers<[1], [0], [0], [1], [0, 0, 1, 1], [], []>} : vector<256x256xbf16>, vector<256x128xbf16>, vector<256x128xf32> -> vector<256x128xf32>
    %40 = arith.addf %39, %15 : vector<256x128xf32>
    %c8_i32 = arith.constant 8 : i32
    %41 = arith.truncf %40 : vector<256x128xf32> to vector<256x128xbf16>
    %cst_22 = arith.constant dense<0.000000e+00> : vector<256x128xf32>
    %42 = tpu.matmul %16, %41, %cst_22 {dimension_numbers = #tpu.dot_dimension_numbers<[1], [0], [0], [1], [0, 0, 1, 1], [], []>} : vector<256x256xbf16>, vector<256x128xbf16>, vector<256x128xf32> -> vector<256x128xf32>
    %43 = arith.addf %42, %15 : vector<256x128xf32>
    %c9_i32 = arith.constant 9 : i32
    %44 = arith.truncf %43 : vector<256x128xf32> to vector<256x128xbf16>
    %cst_23 = arith.constant dense<0.000000e+00> : vector<256x128xf32>
    %45 = tpu.matmul %16, %44, %cst_23 {dimension_numbers = #tpu.dot_dimension_numbers<[1], [0], [0], [1], [0, 0, 1, 1], [], []>} : vector<256x256xbf16>, vector<256x128xbf16>, vector<256x128xf32> -> vector<256x128xf32>
    %46 = arith.addf %45, %15 : vector<256x128xf32>
    %47 = tpu.iota {dimensions = array<i32: 1>} : vector<256x128xi32>
    %c8_i32_24 = arith.constant 8 : i32
    %48 = vector.broadcast %c8_i32_24 : i32 to vector<256x128xi32>
    %49 = arith.cmpi slt, %47, %48 : vector<256x128xi32>
    %cst_25 = arith.constant 0xFF800000 : f32
    %50 = vector.broadcast %cst_25 : f32 to vector<256x128xf32>
    %51 = arith.select %49, %46, %50 : vector<256x128xi1>, vector<256x128xf32>
    %cst_26 = arith.constant dense<0xFF800000> : vector<256xf32>
    %52 = vector.multi_reduction <maximumf>, %51, %cst_26 [1] : vector<256x128xf32> to vector<256xf32>
    %53 = vector.shape_cast %52 : vector<256xf32> to vector<256x1xf32>
    %54 = vector.broadcast %53 : vector<256x1xf32> to vector<256x128xf32>
    %55 = arith.subf %51, %54 : vector<256x128xf32>
    %56 = math.exp %55 : vector<256x128xf32>
    %cst_27 = arith.constant dense<0.000000e+00> : vector<256xf32>
    %57 = vector.multi_reduction <add>, %56, %cst_27 [1] : vector<256x128xf32> to vector<256xf32>
    %58 = vector.shape_cast %57 : vector<256xf32> to vector<256x1xf32>
    %59 = math.log %58 : vector<256x1xf32>
    %60 = vector.broadcast %59 : vector<256x1xf32> to vector<256x128xf32>
    %61 = arith.subf %55, %60 : vector<256x128xf32>
    %c0_28 = arith.constant 0 : index
    %c0_29 = arith.constant 0 : index
    %62 = vector.load %arg6[%c0_28, %c0_29] : memref<256x128xf32, #tpu.memory_space<vmem>>, vector<256x128xf32>
    tpu.vector_store %arg6[%c0_28, %c0_29], %61 {strides = array<i32>} : memref<256x128xf32, #tpu.memory_space<vmem>>, vector<256x128xf32>,
    return
  }
}

</mosaic_0001>

<llo_original>
// kernel: tpu_custom_call.1
$region0: #{tpu_custom_call.1}
  #allocation0 [shape = 'u32[]', space=smem, size = 0x4, offset = 0x4, fixed_abs, tag = 'smem constant byte address 0x4 - core index']
  #allocation1 [shape = 'u32[144,128]{1,0:T(1,128)}', space=vmem, size = 0x12000, scoped, tag = 'internal scratch']
  %s0 = inlined_call_operand.hbm [shape: bf16[256,128], index: 0, kind: input, shape index: {}]
  %s1 = inlined_call_operand.hbm [shape: bf16[128,128], index: 1, kind: input, shape index: {}]
  %s2 = inlined_call_operand.vmem [shape: f32[1,128], index: 2, kind: input, shape index: {}]
  %s3 = inlined_call_operand.hbm [shape: bf16[128,128], index: 3, kind: input, shape index: {}]
  %s4 = inlined_call_operand.vmem [shape: f32[1,128], index: 4, kind: input, shape index: {}]
  %s5 = inlined_call_operand.hbm [shape: bf16[256,256], index: 5, kind: input, shape index: {}]
  %s6 = inlined_call_operand.hbm [shape: f32[256,128], index: 6, kind: output, shape index: {}]
  %s7 = sld [smem:[#allocation0]]
  $region50: #{tpu_custom_call.1} parent=0
    _
  %s9 = ssub.s32 1, %s7
  %s10 = scalar_select 0, %s9, %s7
  $region1: #{tpu_custom_call.1} parent=0
    #allocation2 [shape = 'u8[65536]{0}', space=vmem, size = 0x10000, scoped, tag = 'input window, operand 0, single buffered']
    #allocation3 [shape = 's32[1]{0}', space=sflag, size = 0x4, scoped, tag = 'scoped memory for tpu_custom_call.1']
    #allocation4 [shape = 's32[1]{0}', space=sflag, size = 0x4, scoped, tag = 'scoped memory for tpu_custom_call.1']
    #allocation5 [shape = 'u8[32768]{0}', space=vmem, size = 0x8000, scoped, tag = 'input window, operand 1, single buffered']
    #allocation6 [shape = 's32[1]{0}', space=sflag, size = 0x4, scoped, tag = 'scoped memory for tpu_custom_call.1']
    #allocation7 [shape = 'u8[32768]{0}', space=vmem, size = 0x8000, scoped, tag = 'input window, operand 3, single buffered']
    #allocation8 [shape = 'u8[131072]{0}', space=vmem, size = 0x20000, scoped, tag = 'input window, operand 5, single buffered']
    #allocation9 [shape = 's32[1]{0}', space=sflag, size = 0x4, scoped, tag = 'scoped memory for tpu_custom_call.1']
    #allocation10 [shape = 'u8[131072]{0}', space=vmem, size = 0x20000, scoped, tag = 'output window, operand 0, single buffered']
    %11 = vsyncpa [#allocation3], 0
    %12 = vsyncpa [#allocation6], 0
    %13 = vsyncpa [#allocation9], 0
    %14 = vsyncpa [#allocation4], 0
    // Predicated region
    $region2: #{tpu_custom_call.1} parent=1 // pred_check
      _
    $region3: #{tpu_custom_call.1} parent=1 // pred_check_branch
      %16 = sbr.rel (0) target = $region5
    $region4: #{tpu_custom_call.1} parent=1 // pred_region
      %s18 = ssub.s32 2048, 2048
      %19 = vsyncadd [#allocation3], %s18
      %s20 = sshll.u32 [#allocation2], 4
      %s21 = int_to_ptr.vmem [resolvable:$true] %s20
      %26 = dma.hbm_to_vmem [thread:$0]  %s0, 2048, %s21, [#allocation3], 64, 64, 4
    $region5: #{tpu_custom_call.1} parent=1 // pred_fallthru
      _
    // Predicated region
    $region6: #{tpu_custom_call.1} parent=1 // pred_check
      _
    $region7: #{tpu_custom_call.1} parent=1 // pred_check_branch
      %28 = sbr.rel (0) target = $region9
    $region8: #{tpu_custom_call.1} parent=1 // pred_region
      %s30 = ssub.s32 1024, 1024
      %31 = vsyncadd [#allocation6], %s30
      %s32 = sshll.u32 [#allocation5], 4
      %s33 = int_to_ptr.vmem [resolvable:$true] %s32
      %38 = dma.hbm_to_vmem [thread:$0]  %s1, 1024, %s33, [#allocation6], 64, 64, 4
    $region9: #{tpu_custom_call.1} parent=1 // pred_fallthru
      _
    // Predicated region
    $region10: #{tpu_custom_call.1} parent=1 // pred_check
      _
    $region11: #{tpu_custom_call.1} parent=1 // pred_check_branch
      %40 = sbr.rel (0) target = $region13
    $region12: #{tpu_custom_call.1} parent=1 // pred_region
      _
    $region13: #{tpu_custom_call.1} parent=1 // pred_fallthru
      _
    // Predicated region
    $region14: #{tpu_custom_call.1} parent=1 // pred_check
      _
    $region15: #{tpu_custom_call.1} parent=1 // pred_check_branch
      %42 = sbr.rel (0) target = $region17
    $region16: #{tpu_custom_call.1} parent=1 // pred_region
      %s44 = ssub.s32 1024, 1024
      %45 = vsyncadd [#allocation6], %s44
      %s46 = sshll.u32 [#allocation7], 4
      %s47 = int_to_ptr.vmem [resolvable:$true] %s46
      %52 = dma.hbm_to_vmem [thread:$0]  %s3, 1024, %s47, [#allocation6], 64, 64, 4
    $region17: #{tpu_custom_call.1} parent=1 // pred_fallthru
      _
    // Predicated region
    $region18: #{tpu_custom_call.1} parent=1 // pred_check
      _
    $region19: #{tpu_custom_call.1} parent=1 // pred_check_branch
      %54 = sbr.rel (0) target = $region21
    $region20: #{tpu_custom_call.1} parent=1 // pred_region
      _
    $region21: #{tpu_custom_call.1} parent=1 // pred_fallthru
      _
    // Predicated region
    $region22: #{tpu_custom_call.1} parent=1 // pred_check
      _
    $region23: #{tpu_custom_call.1} parent=1 // pred_check_branch
      %56 = sbr.rel (0) target = $region25
    $region24: #{tpu_custom_call.1} parent=1 // pred_region
      %s58 = ssub.s32 4096, 4096
      %59 = vsyncadd [#allocation9], %s58
      %s60 = sshll.u32 [#allocation8], 4
      %s61 = int_to_ptr.vmem [resolvable:$true] %s60
      %66 = dma.hbm_to_vmem [thread:$0]  %s5, 4096, %s61, [#allocation9], 128, 128, 8
    $region25: #{tpu_custom_call.1} parent=1 // pred_fallthru
      _
    // Predicated region
    $region26: #{tpu_custom_call.1} parent=1 // pred_check
      _
    $region27: #{tpu_custom_call.1} parent=1 // pred_check_branch
      %68 = sbr.rel (0) target = $region29
    $region28: #{tpu_custom_call.1} parent=1 // pred_region
      %69 = dma.done [#allocation3], 2048
    $region29: #{tpu_custom_call.1} parent=1 // pred_fallthru
      _
    // Predicated region
    $region30: #{tpu_custom_call.1} parent=1 // pred_check
      _
    $region31: #{tpu_custom_call.1} parent=1 // pred_check_branch
      %71 = sbr.rel (0) target = $region33
    $region32: #{tpu_custom_call.1} parent=1 // pred_region
      %72 = dma.done [#allocation6], 1024
    $region33: #{tpu_custom_call.1} parent=1 // pred_fallthru
      _
    // Predicated region
    $region34: #{tpu_custom_call.1} parent=1 // pred_check
      _
    $region35: #{tpu_custom_call.1} parent=1 // pred_check_branch
      %74 = sbr.rel (0) target = $region37
    $region36: #{tpu_custom_call.1} parent=1 // pred_region
      %75 = dma.done [#allocation6], 1024
    $region37: #{tpu_custom_call.1} parent=1 // pred_fallthru
      _
    // Predicated region
    $region38: #{tpu_custom_call.1} parent=1 // pred_check
      _
    $region39: #{tpu_custom_call.1} parent=1 // pred_check_branch
      %77 = sbr.rel (0) target = $region41
    $region40: #{tpu_custom_call.1} parent=1 // pred_region
      %78 = dma.done [#allocation9], 4096
    $region41: #{tpu_custom_call.1} parent=1 // pred_fallthru
      _
    %v80 = vld [vmem:[#allocation2] sm:$0xf]
    %v81 = vld [vmem:[#allocation2 + $0x4] sm:$0xf]
    %v82 = vld [vmem:[#allocation2 + $0x8] sm:$0xf]
    %v83 = vld [vmem:[#allocation2 + $0xc] sm:$0xf]
    %v84 = vld [vmem:[#allocation2 + $0x10] sm:$0xf]
    %v85 = vld [vmem:[#allocation2 + $0x14] sm:$0xf]
    %v86 = vld [vmem:[#allocation2 + $0x18] sm:$0xf]
    %v87 = vld [vmem:[#allocation2 + $0x1c] sm:$0xf]
    %v88 = vld [vmem:[#allocation2 + $0x20] sm:$0xf]
    %v89 = vld [vmem:[#allocation2 + $0x24] sm:$0xf]
    %v90 = vld [vmem:[#allocation2 + $0x28] sm:$0xf]
    %v91 = vld [vmem:[#allocation2 + $0x2c] sm:$0xf]
    %v92 = vld [vmem:[#allocation2 + $0x30] sm:$0xf]
    %v93 = vld [vmem:[#allocation2 + $0x34] sm:$0xf]
    %v94 = vld [vmem:[#allocation2 + $0x38] sm:$0xf]
    %v95 = vld [vmem:[#allocation2 + $0x3c] sm:$0xf]
    %v96 = vld [vmem:[#allocation2 + $0x40] sm:$0xf]
    %v97 = vld [vmem:[#allocation2 + $0x44] sm:$0xf]
    %v98 = vld [vmem:[#allocation2 + $0x48] sm:$0xf]
    %v99 = vld [vmem:[#allocation2 + $0x4c] sm:$0xf]
    %v100 = vld [vmem:[#allocation2 + $0x50] sm:$0xf]
    %v101 = vld [vmem:[#allocation2 + $0x54] sm:$0xf]
    %v102 = vld [vmem:[#allocation2 + $0x58] sm:$0xf]
    %v103 = vld [vmem:[#allocation2 + $0x5c] sm:$0xf]
    %v104 = vld [vmem:[#allocation2 + $0x60] sm:$0xf]
    %v105 = vld [vmem:[#allocation2 + $0x64] sm:$0xf]
    %v106 = vld [vmem:[#allocation2 + $0x68] sm:$0xf]
    %v107 = vld [vmem:[#allocation2 + $0x6c] sm:$0xf]
    %v108 = vld [vmem:[#allocation2 + $0x70] sm:$0xf]
    %v109 = vld [vmem:[#allocation2 + $0x74] sm:$0xf]
    %v110 = vld [vmem:[#allocation2 + $0x78] sm:$0xf]
    %v111 = vld [vmem:[#allocation2 + $0x7c] sm:$0xf]
    %v112 = vld [vmem:[#allocation5] sm:$0xf]
    %v113 = vld [vmem:[#allocation5 + $0x4] sm:$0xf]
    %v114 = vld [vmem:[#allocation5 + $0x8] sm:$0xf]
    %v115 = vld [vmem:[#allocation5 + $0xc] sm:$0xf]
    %v116 = vld [vmem:[#allocation5 + $0x10] sm:$0xf]
    %v117 = vld [vmem:[#allocation5 + $0x14] sm:$0xf]
    %v118 = vld [vmem:[#allocation5 + $0x18] sm:$0xf]
    %v119 = vld [vmem:[#allocation5 + $0x1c] sm:$0xf]
    %v120 = vld [vmem:[#allocation5 + $0x20] sm:$0xf]
    %v121 = vld [vmem:[#allocation5 + $0x24] sm:$0xf]
    %v122 = vld [vmem:[#allocation5 + $0x28] sm:$0xf]
    %v123 = vld [vmem:[#allocation5 + $0x2c] sm:$0xf]
    %v124 = vld [vmem:[#allocation5 + $0x30] sm:$0xf]
    %v125 = vld [vmem:[#allocation5 + $0x34] sm:$0xf]
    %v126 = vld [vmem:[#allocation5 + $0x38] sm:$0xf]
    %v127 = vld [vmem:[#allocation5 + $0x3c] sm:$0xf]
    %v128 = vld [vmem:[%s2] sm:$0x1]
    %v130 = vlaneseq
    %v131 = vshrl.u32 %v130, 7
    %v132 = vsub.s32 0, %v131
    %v133 = vrot.slane %v128, %v132
    %v167 = vunpack.c.l.b16 %v80
    %v168 = vunpack.c.l.b16 %v81
    %v169 = vunpack.c.l.b16 %v82
    %v170 = vunpack.c.l.b16 %v83
    %v171 = vunpack.c.l.b16 %v84
    %v172 = vunpack.c.l.b16 %v85
    %v173 = vunpack.c.l.b16 %v86
    %v174 = vunpack.c.l.b16 %v87
    %v175 = vunpack.c.l.b16 %v88
    %v176 = vunpack.c.l.b16 %v89
    %v177 = vunpack.c.l.b16 %v90
    %v178 = vunpack.c.l.b16 %v91
    %v179 = vunpack.c.l.b16 %v92
    %v180 = vunpack.c.l.b16 %v93
    %v181 = vunpack.c.l.b16 %v94
    %v182 = vunpack.c.l.b16 %v95
    %v183 = vunpack.c.l.b16 %v96
    %v184 = vunpack.c.l.b16 %v97
    %v185 = vunpack.c.l.b16 %v98
    %v186 = vunpack.c.l.b16 %v99
    %v187 = vunpack.c.l.b16 %v100
    %v188 = vunpack.c.l.b16 %v101
    %v189 = vunpack.c.l.b16 %v102
    %v190 = vunpack.c.l.b16 %v103
    %v191 = vunpack.c.l.b16 %v104
    %v192 = vunpack.c.l.b16 %v105
    %v193 = vunpack.c.l.b16 %v106
    %v194 = vunpack.c.l.b16 %v107
    %v195 = vunpack.c.l.b16 %v108
    %v196 = vunpack.c.l.b16 %v109
    %v197 = vunpack.c.l.b16 %v110
    %v198 = vunpack.c.l.b16 %v111
    %v199 = vpack.c.b16 %v168, %v167
    %v200 = vpack.c.b16 %v170, %v169
    %v201 = vpack.c.b16 %v172, %v171
    %v202 = vpack.c.b16 %v174, %v173
    %v203 = vpack.c.b16 %v176, %v175
    %v204 = vpack.c.b16 %v178, %v177
    %v205 = vpack.c.b16 %v180, %v179
    %v206 = vpack.c.b16 %v182, %v181
    %v207 = vpack.c.b16 %v184, %v183
    %v208 = vpack.c.b16 %v186, %v185
    %v209 = vpack.c.b16 %v188, %v187
    %v210 = vpack.c.b16 %v190, %v189
    %v211 = vpack.c.b16 %v192, %v191
    %v212 = vpack.c.b16 %v194, %v193
    %v213 = vpack.c.b16 %v196, %v195
    %v214 = vpack.c.b16 %v198, %v197
    %v247 = vunpack.c.l.b16 %v112
    %v248 = vunpack.c.l.b16 %v113
    %v249 = vunpack.c.l.b16 %v114
    %v250 = vunpack.c.l.b16 %v115
    %v251 = vunpack.c.l.b16 %v116
    %v252 = vunpack.c.l.b16 %v117
    %v253 = vunpack.c.l.b16 %v118
    %v254 = vunpack.c.l.b16 %v119
    %v255 = vunpack.c.l.b16 %v120
    %v256 = vunpack.c.l.b16 %v121
    %v257 = vunpack.c.l.b16 %v122
    %v258 = vunpack.c.l.b16 %v123
    %v259 = vunpack.c.l.b16 %v124
    %v260 = vunpack.c.l.b16 %v125
    %v261 = vunpack.c.l.b16 %v126
    %v262 = vunpack.c.l.b16 %v127
    %v263 = vpack.c.b16 %v248, %v247
    %v264 = vpack.c.b16 %v250, %v249
    %v265 = vpack.c.b16 %v252, %v251
    %v266 = vpack.c.b16 %v254, %v253
    %v267 = vpack.c.b16 %v256, %v255
    %v268 = vpack.c.b16 %v258, %v257
    %v269 = vpack.c.b16 %v260, %v259
    %v270 = vpack.c.b16 %v262, %v261
    %279 = vmatprep.subr.bf16.mxu0 0
    %280 = vmatpush1.bf16.msra.mxu0 %v263
    %281 = vmatprep.subr.bf16.mxu0 0
    %282 = vmatpush1.bf16.msra.mxu0 %v264
    %283 = vmatprep.subr.bf16.mxu0 0
    %284 = vmatpush1.bf16.msra.mxu0 %v265
    %285 = vmatprep.subr.bf16.mxu0 0
    %286 = vmatpush1.bf16.msra.mxu0 %v266
    %287 = vmatprep.subr.bf16.mxu0 0
    %288 = vmatpush1.bf16.msra.mxu0 %v267
    %289 = vmatprep.subr.bf16.mxu0 0
    %290 = vmatpush1.bf16.msra.mxu0 %v268
    %291 = vmatprep.subr.bf16.mxu0 0
    %292 = vmatpush1.bf16.msra.mxu0 %v269
    %293 = vmatprep.subr.bf16.mxu0 0
    %294 = vmatpush1.bf16.msra.mxu0 %v270
    %295 = vmatprep.subr.bf16.mxu0 0
    %296 = vmatpush1.bf16.msra.mxu0 0
    %297 = vmatprep.subr.bf16.mxu0 0
    %298 = vmatpush1.bf16.msra.mxu0 0
    %299 = vmatprep.subr.bf16.mxu0 0
    %300 = vmatpush1.bf16.msra.mxu0 0
    %301 = vmatprep.subr.bf16.mxu0 0
    %302 = vmatpush1.bf16.msra.mxu0 0
    %303 = vmatprep.subr.bf16.mxu0 0
    %304 = vmatpush1.bf16.msra.mxu0 0
    %305 = vmatprep.subr.bf16.mxu0 0
    %306 = vmatpush1.bf16.msra.mxu0 0
    %307 = vmatprep.subr.bf16.mxu0 0
    %308 = vmatpush1.bf16.msra.mxu0 0
    %309 = vmatprep.subr.bf16.mxu0 0
    %310 = vmatpush1.bf16.msra.mxu0 0
    %311 = vmatprep.mubr.bf16.mxu0 0
    %312 = vmatmul.mubr.bf16.gmra.mrb[0].mxu0 %v199
    %v313 = vpop.f32.mrb[0].mxu0
    %v314 = vadd.f32 %v133, %v313
    %v315 = vpop.f32.mrb[0].mxu0
    %v316 = vpop.f32.mrb[0].mxu0
    %v317 = vadd.f32 %v133, %v316
    %v318 = vpop.f32.mrb[0].mxu0
    %319 = vmatprep.mubr.bf16.mxu0 0
    %320 = vmatmul.mubr.bf16.gmra.mrb[0].mxu0 %v200
    %v321 = vpop.f32.mrb[0].mxu0
    %v322 = vadd.f32 %v133, %v321
    %v323 = vpop.f32.mrb[0].mxu0
    %v324 = vpop.f32.mrb[0].mxu0
    %v325 = vadd.f32 %v133, %v324
    %v326 = vpop.f32.mrb[0].mxu0
    %327 = vmatprep.mubr.bf16.mxu0 0
    %328 = vmatmul.mubr.bf16.gmra.mrb[0].mxu0 %v201
    %v329 = vpop.f32.mrb[0].mxu0
    %v330 = vadd.f32 %v133, %v329
    %v331 = vpop.f32.mrb[0].mxu0
    %v332 = vpop.f32.mrb[0].mxu0
    %v333 = vadd.f32 %v133, %v332
    %v334 = vpop.f32.mrb[0].mxu0
    %335 = vmatprep.mubr.bf16.mxu0 0
    %336 = vmatmul.mubr.bf16.gmra.mrb[0].mxu0 %v202
    %v337 = vpop.f32.mrb[0].mxu0
    %v338 = vadd.f32 %v133, %v337
    %v339 = vpop.f32.mrb[0].mxu0
    %v340 = vpop.f32.mrb[0].mxu0
    %v341 = vadd.f32 %v133, %v340
    %v342 = vpop.f32.mrb[0].mxu0
    %343 = vmatprep.mubr.bf16.mxu0 0
    %344 = vmatmul.mubr.bf16.gmra.mrb[0].mxu0 %v203
    %v345 = vpop.f32.mrb[0].mxu0
    %v346 = vadd.f32 %v133, %v345
    %v347 = vpop.f32.mrb[0].mxu0
    %v348 = vpop.f32.mrb[0].mxu0
    %v349 = vadd.f32 %v133, %v348
    %v350 = vpop.f32.mrb[0].mxu0
    %351 = vmatprep.mubr.bf16.mxu0 0
    %352 = vmatmul.mubr.bf16.gmra.mrb[0].mxu0 %v204
    %v353 = vpop.f32.mrb[0].mxu0
    %v354 = vadd.f32 %v133, %v353
    %v355 = vpop.f32.mrb[0].mxu0
    %v356 = vpop.f32.mrb[0].mxu0
    %v357 = vadd.f32 %v133, %v356
    %v358 = vpop.f32.mrb[0].mxu0
    %359 = vmatprep.mubr.bf16.mxu0 0
    %360 = vmatmul.mubr.bf16.gmra.mrb[0].mxu0 %v205
    %v361 = vpop.f32.mrb[0].mxu0
    %v362 = vadd.f32 %v133, %v361
    %v363 = vpop.f32.mrb[0].mxu0
    %v364 = vpop.f32.mrb[0].mxu0
    %v365 = vadd.f32 %v133, %v364
    %v366 = vpop.f32.mrb[0].mxu0
    %367 = vmatprep.mubr.bf16.mxu0 0
    %368 = vmatmul.mubr.bf16.gmra.mrb[0].mxu0 %v206
    %v369 = vpop.f32.mrb[0].mxu0
    %v370 = vadd.f32 %v133, %v369
    %v371 = vpop.f32.mrb[0].mxu0
    %v372 = vpop.f32.mrb[0].mxu0
    %v373 = vadd.f32 %v133, %v372
    %v374 = vpop.f32.mrb[0].mxu0
    %375 = vmatprep.mubr.bf16.mxu0 0
    %376 = vmatmul.mubr.bf16.gmra.mrb[0].mxu0 %v207
    %v377 = vpop.f32.mrb[0].mxu0
    %v378 = vadd.f32 %v133, %v377
    %v379 = vpop.f32.mrb[0].mxu0
    %v380 = vpop.f32.mrb[0].mxu0
    %v381 = vadd.f32 %v133, %v380
    %v382 = vpop.f32.mrb[0].mxu0
    %383 = vmatprep.mubr.bf16.mxu0 0
    %384 = vmatmul.mubr.bf16.gmra.mrb[0].mxu0 %v208
    %v385 = vpop.f32.mrb[0].mxu0
    %v386 = vadd.f32 %v133, %v385
    %v387 = vpop.f32.mrb[0].mxu0
    %v388 = vpop.f32.mrb[0].mxu0
    %v389 = vadd.f32 %v133, %v388
    %v390 = vpop.f32.mrb[0].mxu0
    %391 = vmatprep.mubr.bf16.mxu0 0
    %392 = vmatmul.mubr.bf16.gmra.mrb[0].mxu0 %v209
    %v393 = vpop.f32.mrb[0].mxu0
    %v394 = vadd.f32 %v133, %v393
    %v395 = vpop.f32.mrb[0].mxu0
    %v396 = vpop.f32.mrb[0].mxu0
    %v397 = vadd.f32 %v133, %v396
    %v398 = vpop.f32.mrb[0].mxu0
    %399 = vmatprep.mubr.bf16.mxu0 0
    %400 = vmatmul.mubr.bf16.gmra.mrb[0].mxu0 %v210
    %v401 = vpop.f32.mrb[0].mxu0
    %v402 = vadd.f32 %v133, %v401
    %v403 = vpop.f32.mrb[0].mxu0
    %v404 = vpop.f32.mrb[0].mxu0
    %v405 = vadd.f32 %v133, %v404
    %v406 = vpop.f32.mrb[0].mxu0
    %407 = vmatprep.mubr.bf16.mxu0 0
    %408 = vmatmul.mubr.bf16.gmra.mrb[0].mxu0 %v211
    %v409 = vpop.f32.mrb[0].mxu0
    %v410 = vadd.f32 %v133, %v409
    %v411 = vpop.f32.mrb[0].mxu0
    %v412 = vpop.f32.mrb[0].mxu0
    %v413 = vadd.f32 %v133, %v412
    %v414 = vpop.f32.mrb[0].mxu0
    %415 = vmatprep.mubr.bf16.mxu0 0
    %416 = vmatmul.mubr.bf16.gmra.mrb[0].mxu0 %v212
    %v417 = vpop.f32.mrb[0].mxu0
    %v418 = vadd.f32 %v133, %v417
    %v419 = vpop.f32.mrb[0].mxu0
    %v420 = vpop.f32.mrb[0].mxu0
    %v421 = vadd.f32 %v133, %v420
    %v422 = vpop.f32.mrb[0].mxu0
    %423 = vmatprep.mubr.bf16.mxu0 0
    %424 = vmatmul.mubr.bf16.gmra.mrb[0].mxu0 %v213
    %v425 = vpop.f32.mrb[0].mxu0
    %v426 = vadd.f32 %v133, %v425
    %v427 = vpop.f32.mrb[0].mxu0
    %v428 = vpop.f32.mrb[0].mxu0
    %v429 = vadd.f32 %v133, %v428
    %v430 = vpop.f32.mrb[0].mxu0
    %431 = vmatprep.mubr.bf16.mxu0 0
    %432 = vmatmul.mubr.bf16.gmra.mrb[0].mxu0 %v214
    %v433 = vpop.f32.mrb[0].mxu0
    %v434 = vadd.f32 %v133, %v433
    %v435 = vpop.f32.mrb[0].mxu0
    %v436 = vpop.f32.mrb[0].mxu0
    %v437 = vadd.f32 %v133, %v436
    %v438 = vpop.f32.mrb[0].mxu0
    %439 = vdwg.mxu0
    %v440 = vmax.f32 %v314, 0.0
    %v441 = vmax.f32 %v317, 0.0
    %v442 = vmax.f32 %v322, 0.0
    %v443 = vmax.f32 %v325, 0.0
    %v444 = vmax.f32 %v330, 0.0
    %v445 = vmax.f32 %v333, 0.0
    %v446 = vmax.f32 %v338, 0.0
    %v447 = vmax.f32 %v341, 0.0
    %v448 = vmax.f32 %v346, 0.0
    %v449 = vmax.f32 %v349, 0.0
    %v450 = vmax.f32 %v354, 0.0
    %v451 = vmax.f32 %v357, 0.0
    %v452 = vmax.f32 %v362, 0.0
    %v453 = vmax.f32 %v365, 0.0
    %v454 = vmax.f32 %v370, 0.0
    %v455 = vmax.f32 %v373, 0.0
    %v456 = vmax.f32 %v378, 0.0
    %v457 = vmax.f32 %v381, 0.0
    %v458 = vmax.f32 %v386, 0.0
    %v459 = vmax.f32 %v389, 0.0
    %v460 = vmax.f32 %v394, 0.0
    %v461 = vmax.f32 %v397, 0.0
    %v462 = vmax.f32 %v402, 0.0
    %v463 = vmax.f32 %v405, 0.0
    %v464 = vmax.f32 %v410, 0.0
    %v465 = vmax.f32 %v413, 0.0
    %v466 = vmax.f32 %v418, 0.0
    %v467 = vmax.f32 %v421, 0.0
    %v468 = vmax.f32 %v426, 0.0
    %v469 = vmax.f32 %v429, 0.0
    %v470 = vmax.f32 %v434, 0.0
    %v471 = vmax.f32 %v437, 0.0
    %v472 = vpack.c.bf16 %v441, %v440
    %v473 = vpack.c.bf16 %v443, %v442
    %v474 = vpack.c.bf16 %v445, %v444
    %v475 = vpack.c.bf16 %v447, %v446
    %v476 = vpack.c.bf16 %v449, %v448
    %v477 = vpack.c.bf16 %v451, %v450
    %v478 = vpack.c.bf16 %v453, %v452
    %v479 = vpack.c.bf16 %v455, %v454
    %v480 = vpack.c.bf16 %v457, %v456
    %v481 = vpack.c.bf16 %v459, %v458
    %v482 = vpack.c.bf16 %v461, %v460
    %v483 = vpack.c.bf16 %v463, %v462
    %v484 = vpack.c.bf16 %v465, %v464
    %v485 = vpack.c.bf16 %v467, %v466
    %v486 = vpack.c.bf16 %v469, %v468
    %v487 = vpack.c.bf16 %v471, %v470
    %v488 = vld [vmem:[#allocation7] sm:$0xf]
    %v489 = vld [vmem:[#allocation7 + $0x4] sm:$0xf]
    %v490 = vld [vmem:[#allocation7 + $0x8] sm:$0xf]
    %v491 = vld [vmem:[#allocation7 + $0xc] sm:$0xf]
    %v492 = vld [vmem:[#allocation7 + $0x10] sm:$0xf]
    %v493 = vld [vmem:[#allocation7 + $0x14] sm:$0xf]
    %v494 = vld [vmem:[#allocation7 + $0x18] sm:$0xf]
    %v495 = vld [vmem:[#allocation7 + $0x1c] sm:$0xf]
    %v496 = vld [vmem:[#allocation7 + $0x20] sm:$0xf]
    %v497 = vld [vmem:[#allocation7 + $0x24] sm:$0xf]
    %v498 = vld [vmem:[#allocation7 + $0x28] sm:$0xf]
    %v499 = vld [vmem:[#allocation7 + $0x2c] sm:$0xf]
    %v500 = vld [vmem:[#allocation7 + $0x30] sm:$0xf]
    %v501 = vld [vmem:[#allocation7 + $0x34] sm:$0xf]
    %v502 = vld [vmem:[#allocation7 + $0x38] sm:$0xf]
    %v503 = vld [vmem:[#allocation7 + $0x3c] sm:$0xf]
    %v504 = vld [vmem:[%s4] sm:$0x1]
    %v506 = vlaneseq
    %v507 = vshrl.u32 %v506, 7
    %v508 = vsub.s32 0, %v507
    %v509 = vrot.slane %v504, %v508
    %v527 = vunpack.c.l.b16 %v488
    %v528 = vunpack.c.l.b16 %v489
    %v529 = vunpack.c.l.b16 %v490
    %v530 = vunpack.c.l.b16 %v491
    %v531 = vunpack.c.l.b16 %v492
    %v532 = vunpack.c.l.b16 %v493
    %v533 = vunpack.c.l.b16 %v494
    %v534 = vunpack.c.l.b16 %v495
    %v535 = vunpack.c.l.b16 %v496
    %v536 = vunpack.c.l.b16 %v497
    %v537 = vunpack.c.l.b16 %v498
    %v538 = vunpack.c.l.b16 %v499
    %v539 = vunpack.c.l.b16 %v500
    %v540 = vunpack.c.l.b16 %v501
    %v541 = vunpack.c.l.b16 %v502
    %v542 = vunpack.c.l.b16 %v503
    %v543 = vpack.c.b16 %v528, %v527
    %v544 = vpack.c.b16 %v530, %v529
    %v545 = vpack.c.b16 %v532, %v531
    %v546 = vpack.c.b16 %v534, %v533
    %v547 = vpack.c.b16 %v536, %v535
    %v548 = vpack.c.b16 %v538, %v537
    %v549 = vpack.c.b16 %v540, %v539
    %v550 = vpack.c.b16 %v542, %v541
    %559 = vmatprep.subr.bf16.mxu0 0
    %560 = vmatpush1.bf16.msra.mxu0 %v543
    %561 = vmatprep.subr.bf16.mxu0 0
    %562 = vmatpush1.bf16.msra.mxu0 %v544
    %563 = vmatprep.subr.bf16.mxu0 0
    %564 = vmatpush1.bf16.msra.mxu0 %v545
    %565 = vmatprep.subr.bf16.mxu0 0
    %566 = vmatpush1.bf16.msra.mxu0 %v546
    %567 = vmatprep.subr.bf16.mxu0 0
    %568 = vmatpush1.bf16.msra.mxu0 %v547
    %569 = vmatprep.subr.bf16.mxu0 0
    %570 = vmatpush1.bf16.msra.mxu0 %v548
    %571 = vmatprep.subr.bf16.mxu0 0
    %572 = vmatpush1.bf16.msra.mxu0 %v549
    %573 = vmatprep.subr.bf16.mxu0 0
    %574 = vmatpush1.bf16.msra.mxu0 %v550
    %575 = vmatprep.subr.bf16.mxu0 0
    %576 = vmatpush1.bf16.msra.mxu0 0
    %577 = vmatprep.subr.bf16.mxu0 0
    %578 = vmatpush1.bf16.msra.mxu0 0
    %579 = vmatprep.subr.bf16.mxu0 0
    %580 = vmatpush1.bf16.msra.mxu0 0
    %581 = vmatprep.subr.bf16.mxu0 0
    %582 = vmatpush1.bf16.msra.mxu0 0
    %583 = vmatprep.subr.bf16.mxu0 0
    %584 = vmatpush1.bf16.msra.mxu0 0
    %585 = vmatprep.subr.bf16.mxu0 0
    %586 = vmatpush1.bf16.msra.mxu0 0
    %587 = vmatprep.subr.bf16.mxu0 0
    %588 = vmatpush1.bf16.msra.mxu0 0
    %589 = vmatprep.subr.bf16.mxu0 0
    %590 = vmatpush1.bf16.msra.mxu0 0
    %591 = vmatprep.mubr.bf16.mxu0 0
    %592 = vmatmul.mubr.bf16.gmra.mrb[0].mxu0 %v472
    %v593 = vpop.f32.mrb[0].mxu0
    %v594 = vadd.f32 %v509, %v593
    %v595 = vpop.f32.mrb[0].mxu0
    %v596 = vpop.f32.mrb[0].mxu0
    %v597 = vadd.f32 %v509, %v596
    %v598 = vpop.f32.mrb[0].mxu0
    %599 = vmatprep.mubr.bf16.mxu0 0
    %600 = vmatmul.mubr.bf16.gmra.mrb[0].mxu0 %v473
    %v601 = vpop.f32.mrb[0].mxu0
    %v602 = vadd.f32 %v509, %v601
    %v603 = vpop.f32.mrb[0].mxu0
    %v604 = vpop.f32.mrb[0].mxu0
    %v605 = vadd.f32 %v509, %v604
    %v606 = vpop.f32.mrb[0].mxu0
    %607 = vmatprep.mubr.bf16.mxu0 0
    %608 = vmatmul.mubr.bf16.gmra.mrb[0].mxu0 %v474
    %v609 = vpop.f32.mrb[0].mxu0
    %v610 = vadd.f32 %v509, %v609
    %v611 = vpop.f32.mrb[0].mxu0
    %v612 = vpop.f32.mrb[0].mxu0
    %v613 = vadd.f32 %v509, %v612
    %v614 = vpop.f32.mrb[0].mxu0
    %615 = vmatprep.mubr.bf16.mxu0 0
    %616 = vmatmul.mubr.bf16.gmra.mrb[0].mxu0 %v475
    %v617 = vpop.f32.mrb[0].mxu0
    %v618 = vadd.f32 %v509, %v617
    %v619 = vpop.f32.mrb[0].mxu0
    %v620 = vpop.f32.mrb[0].mxu0
    %v621 = vadd.f32 %v509, %v620
    %v622 = vpop.f32.mrb[0].mxu0
    %623 = vmatprep.mubr.bf16.mxu0 0
    %624 = vmatmul.mubr.bf16.gmra.mrb[0].mxu0 %v476
    %v625 = vpop.f32.mrb[0].mxu0
    %v626 = vadd.f32 %v509, %v625
    %v627 = vpop.f32.mrb[0].mxu0
    %v628 = vpop.f32.mrb[0].mxu0
    %v629 = vadd.f32 %v509, %v628
    %v630 = vpop.f32.mrb[0].mxu0
    %631 = vmatprep.mubr.bf16.mxu0 0
    %632 = vmatmul.mubr.bf16.gmra.mrb[0].mxu0 %v477
    %v633 = vpop.f32.mrb[0].mxu0
    %v634 = vadd.f32 %v509, %v633
    %v635 = vpop.f32.mrb[0].mxu0
    %v636 = vpop.f32.mrb[0].mxu0
    %v637 = vadd.f32 %v509, %v636
    %v638 = vpop.f32.mrb[0].mxu0
    %639 = vmatprep.mubr.bf16.mxu0 0
    %640 = vmatmul.mubr.bf16.gmra.mrb[0].mxu0 %v478
    %v641 = vpop.f32.mrb[0].mxu0
    %v642 = vadd.f32 %v509, %v641
    %v643 = vpop.f32.mrb[0].mxu0
    %v644 = vpop.f32.mrb[0].mxu0
    %v645 = vadd.f32 %v509, %v644
    %v646 = vpop.f32.mrb[0].mxu0
    %647 = vmatprep.mubr.bf16.mxu0 0
    %648 = vmatmul.mubr.bf16.gmra.mrb[0].mxu0 %v479
    %v649 = vpop.f32.mrb[0].mxu0
    %v650 = vadd.f32 %v509, %v649
    %v651 = vpop.f32.mrb[0].mxu0
    %v652 = vpop.f32.mrb[0].mxu0
    %v653 = vadd.f32 %v509, %v652
    %v654 = vpop.f32.mrb[0].mxu0
    %655 = vmatprep.mubr.bf16.mxu0 0
    %656 = vmatmul.mubr.bf16.gmra.mrb[0].mxu0 %v480
    %v657 = vpop.f32.mrb[0].mxu0
    %v658 = vadd.f32 %v509, %v657
    %v659 = vpop.f32.mrb[0].mxu0
    %v660 = vpop.f32.mrb[0].mxu0
    %v661 = vadd.f32 %v509, %v660
    %v662 = vpop.f32.mrb[0].mxu0
    %663 = vmatprep.mubr.bf16.mxu0 0
    %664 = vmatmul.mubr.bf16.gmra.mrb[0].mxu0 %v481
    %v665 = vpop.f32.mrb[0].mxu0
    %v666 = vadd.f32 %v509, %v665
    %v667 = vpop.f32.mrb[0].mxu0
    %v668 = vpop.f32.mrb[0].mxu0
    %v669 = vadd.f32 %v509, %v668
    %v670 = vpop.f32.mrb[0].mxu0
    %671 = vmatprep.mubr.bf16.mxu0 0
    %672 = vmatmul.mubr.bf16.gmra.mrb[0].mxu0 %v482
    %v673 = vpop.f32.mrb[0].mxu0
    %v674 = vadd.f32 %v509, %v673
    %v675 = vpop.f32.mrb[0].mxu0
    %v676 = vpop.f32.mrb[0].mxu0
    %v677 = vadd.f32 %v509, %v676
    %v678 = vpop.f32.mrb[0].mxu0
    %679 = vmatprep.mubr.bf16.mxu0 0
    %680 = vmatmul.mubr.bf16.gmra.mrb[0].mxu0 %v483
    %v681 = vpop.f32.mrb[0].mxu0
    %v682 = vadd.f32 %v509, %v681
    %v683 = vpop.f32.mrb[0].mxu0
    %v684 = vpop.f32.mrb[0].mxu0
    %v685 = vadd.f32 %v509, %v684
    %v686 = vpop.f32.mrb[0].mxu0
    %687 = vmatprep.mubr.bf16.mxu0 0
    %688 = vmatmul.mubr.bf16.gmra.mrb[0].mxu0 %v484
    %v689 = vpop.f32.mrb[0].mxu0
    %v690 = vadd.f32 %v509, %v689
    %v691 = vpop.f32.mrb[0].mxu0
    %v692 = vpop.f32.mrb[0].mxu0
    %v693 = vadd.f32 %v509, %v692
    %v694 = vpop.f32.mrb[0].mxu0
    %695 = vmatprep.mubr.bf16.mxu0 0
    %696 = vmatmul.mubr.bf16.gmra.mrb[0].mxu0 %v485
    %v697 = vpop.f32.mrb[0].mxu0
    %v698 = vadd.f32 %v509, %v697
    %v699 = vpop.f32.mrb[0].mxu0
    %v700 = vpop.f32.mrb[0].mxu0
    %v701 = vadd.f32 %v509, %v700
    %v702 = vpop.f32.mrb[0].mxu0
    %703 = vmatprep.mubr.bf16.mxu0 0
    %704 = vmatmul.mubr.bf16.gmra.mrb[0].mxu0 %v486
    %v705 = vpop.f32.mrb[0].mxu0
    %v706 = vadd.f32 %v509, %v705
    %v707 = vpop.f32.mrb[0].mxu0
    %v708 = vpop.f32.mrb[0].mxu0
    %v709 = vadd.f32 %v509, %v708
    %v710 = vpop.f32.mrb[0].mxu0
    %711 = vmatprep.mubr.bf16.mxu0 0
    %712 = vmatmul.mubr.bf16.gmra.mrb[0].mxu0 %v487
    %v713 = vpop.f32.mrb[0].mxu0
    %v714 = vadd.f32 %v509, %v713
    %v715 = vpop.f32.mrb[0].mxu0
    %v716 = vpop.f32.mrb[0].mxu0
    %v717 = vadd.f32 %v509, %v716
    %v718 = vpop.f32.mrb[0].mxu0
    %719 = vdwg.mxu0
    %v720 = vmul.f32 %v594, 0.1
    %v721 = vmul.f32 %v597, 0.1
    %v722 = vmul.f32 %v602, 0.1
    %v723 = vmul.f32 %v605, 0.1
    %v724 = vmul.f32 %v610, 0.1
    %v725 = vmul.f32 %v613, 0.1
    %v726 = vmul.f32 %v618, 0.1
    %v727 = vmul.f32 %v621, 0.1
    %v728 = vmul.f32 %v626, 0.1
    %v729 = vmul.f32 %v629, 0.1
    %v730 = vmul.f32 %v634, 0.1
    %v731 = vmul.f32 %v637, 0.1
    %v732 = vmul.f32 %v642, 0.1
    %v733 = vmul.f32 %v645, 0.1
    %v734 = vmul.f32 %v650, 0.1
    %v735 = vmul.f32 %v653, 0.1
    %v736 = vmul.f32 %v658, 0.1
    %v737 = vmul.f32 %v661, 0.1
    %v738 = vmul.f32 %v666, 0.1
    %v739 = vmul.f32 %v669, 0.1
    %v740 = vmul.f32 %v674, 0.1
    %v741 = vmul.f32 %v677, 0.1
    %v742 = vmul.f32 %v682, 0.1
    %v743 = vmul.f32 %v685, 0.1
    %v744 = vmul.f32 %v690, 0.1
    %v745 = vmul.f32 %v693, 0.1
    %v746 = vmul.f32 %v698, 0.1
    %v747 = vmul.f32 %v701, 0.1
    %v748 = vmul.f32 %v706, 0.1
    %v749 = vmul.f32 %v709, 0.1
    %v750 = vmul.f32 %v714, 0.1
    %v751 = vmul.f32 %v717, 0.1
    %v752 = vld [vmem:[#allocation8] sm:$0xff]
    %v753 = vld [vmem:[#allocation8 + $0x8] sm:$0xff]
    %v754 = vld [vmem:[#allocation8 + $0x10] sm:$0xff]
    %v755 = vld [vmem:[#allocation8 + $0x18] sm:$0xff]
    %v756 = vld [vmem:[#allocation8 + $0x20] sm:$0xff]
    %v757 = vld [vmem:[#allocation8 + $0x28] sm:$0xff]
    %v758 = vld [vmem:[#allocation8 + $0x30] sm:$0xff]
    %v759 = vld [vmem:[#allocation8 + $0x38] sm:$0xff]
    %v760 = vld [vmem:[#allocation8 + $0x40] sm:$0xff]
    %v761 = vld [vmem:[#allocation8 + $0x48] sm:$0xff]
    %v762 = vld [vmem:[#allocation8 + $0x50] sm:$0xff]
    %v763 = vld [vmem:[#allocation8 + $0x58] sm:$0xff]
    %v764 = vld [vmem:[#allocation8 + $0x60] sm:$0xff]
    %v765 = vld [vmem:[#allocation8 + $0x68] sm:$0xff]
    %v766 = vld [vmem:[#allocation8 + $0x70] sm:$0xff]
    %v767 = vld [vmem:[#allocation8 + $0x78] sm:$0xff]
    %v768 = vld [vmem:[#allocation8 + $0x80] sm:$0xff]
    %v769 = vld [vmem:[#allocation8 + $0x88] sm:$0xff]
    %v770 = vld [vmem:[#allocation8 + $0x90] sm:$0xff]
    %v771 = vld [vmem:[#allocation8 + $0x98] sm:$0xff]
    %v772 = vld [vmem:[#allocation8 + $0xa0] sm:$0xff]
    %v773 = vld [vmem:[#allocation8 + $0xa8] sm:$0xff]
    %v774 = vld [vmem:[#allocation8 + $0xb0] sm:$0xff]
    %v775 = vld [vmem:[#allocation8 + $0xb8] sm:$0xff]
    %v776 = vld [vmem:[#allocation8 + $0xc0] sm:$0xff]
    %v777 = vld [vmem:[#allocation8 + $0xc8] sm:$0xff]
    %v778 = vld [vmem:[#allocation8 + $0xd0] sm:$0xff]
    %v779 = vld [vmem:[#allocation8 + $0xd8] sm:$0xff]
    %v780 = vld [vmem:[#allocation8 + $0xe0] sm:$0xff]
    %v781 = vld [vmem:[#allocation8 + $0xe8] sm:$0xff]
    %v782 = vld [vmem:[#allocation8 + $0xf0] sm:$0xff]
    %v783 = vld [vmem:[#allocation8 + $0xf8] sm:$0xff]
    %v784 = vpack.c.bf16 %v597, %v594
    %v785 = vpack.c.bf16 %v605, %v602
    %v786 = vpack.c.bf16 %v613, %v610
    %v787 = vpack.c.bf16 %v621, %v618
    %v788 = vpack.c.bf16 %v629, %v626
    %v789 = vpack.c.bf16 %v637, %v634
    %v790 = vpack.c.bf16 %v645, %v642
    %v791 = vpack.c.bf16 %v653, %v650
    %v792 = vpack.c.bf16 %v661, %v658
    %v793 = vpack.c.bf16 %v669, %v666
    %v794 = vpack.c.bf16 %v677, %v674
    %v795 = vpack.c.bf16 %v685, %v682
    %v796 = vpack.c.bf16 %v693, %v690
    %v797 = vpack.c.bf16 %v701, %v698
    %v798 = vpack.c.bf16 %v709, %v706
    %v799 = vpack.c.bf16 %v717, %v714
    %v832 = vunpack.c.l.b16 %v752
    %v833 = vunpack.c.h.b16 %v752
    %v834 = vunpack.c.l.b16 %v753
    %v835 = vunpack.c.h.b16 %v753
    %v836 = vunpack.c.l.b16 %v754
    %v837 = vunpack.c.h.b16 %v754
    %v838 = vunpack.c.l.b16 %v755
    %v839 = vunpack.c.h.b16 %v755
    %v840 = vunpack.c.l.b16 %v756
    %v841 = vunpack.c.h.b16 %v756
    %v842 = vunpack.c.l.b16 %v757
    %v843 = vunpack.c.h.b16 %v757
    %v844 = vunpack.c.l.b16 %v758
    %v845 = vunpack.c.h.b16 %v758
    %v846 = vunpack.c.l.b16 %v759
    %v847 = vunpack.c.h.b16 %v759
    %v848 = vunpack.c.l.b16 %v760
    %v849 = vunpack.c.h.b16 %v760
    %v850 = vunpack.c.l.b16 %v761
    %v851 = vunpack.c.h.b16 %v761
    %v852 = vunpack.c.l.b16 %v762
    %v853 = vunpack.c.h.b16 %v762
    %v854 = vunpack.c.l.b16 %v763
    %v855 = vunpack.c.h.b16 %v763
    %v856 = vunpack.c.l.b16 %v764
    %v857 = vunpack.c.h.b16 %v764
    %v858 = vunpack.c.l.b16 %v765
    %v859 = vunpack.c.h.b16 %v765
    %v860 = vunpack.c.l.b16 %v766
    %v861 = vunpack.c.h.b16 %v766
    %v862 = vunpack.c.l.b16 %v767
    %v863 = vunpack.c.h.b16 %v767
    %v864 = vunpack.c.l.b16 %v768
    %v865 = vunpack.c.h.b16 %v768
    %v866 = vunpack.c.l.b16 %v769
    %v867 = vunpack.c.h.b16 %v769
    %v868 = vunpack.c.l.b16 %v770
    %v869 = vunpack.c.h.b16 %v770
    %v870 = vunpack.c.l.b16 %v771
    %v871 = vunpack.c.h.b16 %v771
    %v872 = vunpack.c.l.b16 %v772
    %v873 = vunpack.c.h.b16 %v772
    %v874 = vunpack.c.l.b16 %v773
    %v875 = vunpack.c.h.b16 %v773
    %v876 = vunpack.c.l.b16 %v774
    %v877 = vunpack.c.h.b16 %v774
    %v878 = vunpack.c.l.b16 %v775
    %v879 = vunpack.c.h.b16 %v775
    %v880 = vunpack.c.l.b16 %v776
    %v881 = vunpack.c.h.b16 %v776
    %v882 = vunpack.c.l.b16 %v777
    %v883 = vunpack.c.h.b16 %v777
    %v884 = vunpack.c.l.b16 %v778
    %v885 = vunpack.c.h.b16 %v778
    %v886 = vunpack.c.l.b16 %v779
    %v887 = vunpack.c.h.b16 %v779
    %v888 = vunpack.c.l.b16 %v780
    %v889 = vunpack.c.h.b16 %v780
    %v890 = vunpack.c.l.b16 %v781
    %v891 = vunpack.c.h.b16 %v781
    %v892 = vunpack.c.l.b16 %v782
    %v893 = vunpack.c.h.b16 %v782
    %v894 = vunpack.c.l.b16 %v783
    %v895 = vunpack.c.h.b16 %v783
    %v896 = vpack.c.b16 %v834, %v832
    %v897 = vpack.c.b16 %v835, %v833
    %v898 = vpack.c.b16 %v838, %v836
    %v899 = vpack.c.b16 %v839, %v837
    %v900 = vpack.c.b16 %v842, %v840
    %v901 = vpack.c.b16 %v843, %v841
    %v902 = vpack.c.b16 %v846, %v844
    %v903 = vpack.c.b16 %v847, %v845
    %v904 = vpack.c.b16 %v850, %v848
    %v905 = vpack.c.b16 %v851, %v849
    %v906 = vpack.c.b16 %v854, %v852
    %v907 = vpack.c.b16 %v855, %v853
    %v908 = vpack.c.b16 %v858, %v856
    %v909 = vpack.c.b16 %v859, %v857
    %v910 = vpack.c.b16 %v862, %v860
    %v911 = vpack.c.b16 %v863, %v861
    %v912 = vpack.c.b16 %v866, %v864
    %v913 = vpack.c.b16 %v867, %v865
    %v914 = vpack.c.b16 %v870, %v868
    %v915 = vpack.c.b16 %v871, %v869
    %v916 = vpack.c.b16 %v874, %v872
    %v917 = vpack.c.b16 %v875, %v873
    %v918 = vpack.c.b16 %v878, %v876
    %v919 = vpack.c.b16 %v879, %v877
    %v920 = vpack.c.b16 %v882, %v880
    %v921 = vpack.c.b16 %v883, %v881
    %v922 = vpack.c.b16 %v886, %v884
    %v923 = vpack.c.b16 %v887, %v885
    %v924 = vpack.c.b16 %v890, %v888
    %v925 = vpack.c.b16 %v891, %v889
    %v926 = vpack.c.b16 %v894, %v892
    %v927 = vpack.c.b16 %v895, %v893
    %960 = vmatprep.subr.bf16.mxu0 0
    %961 = vmatpush1.bf16.msra.mxu0 %v784
    %962 = vmatprep.subr.bf16.mxu0 0
    %963 = vmatpush1.bf16.msra.mxu0 %v785
    %964 = vmatprep.subr.bf16.mxu0 0
    %965 = vmatpush1.bf16.msra.mxu0 %v786
    %966 = vmatprep.subr.bf16.mxu0 0
    %967 = vmatpush1.bf16.msra.mxu0 %v787
    %968 = vmatprep.subr.bf16.mxu0 0
    %969 = vmatpush1.bf16.msra.mxu0 %v788
    %970 = vmatprep.subr.bf16.mxu0 0
    %971 = vmatpush1.bf16.msra.mxu0 %v789
    %972 = vmatprep.subr.bf16.mxu0 0
    %973 = vmatpush1.bf16.msra.mxu0 %v790
    %974 = vmatprep.subr.bf16.mxu0 0
    %975 = vmatpush1.bf16.msra.mxu0 %v791
    %976 = vmatprep.subr.bf16.mxu0 0
    %977 = vmatpush1.bf16.msra.mxu0 %v792
    %978 = vmatprep.subr.bf16.mxu0 0
    %979 = vmatpush1.bf16.msra.mxu0 %v793
    %980 = vmatprep.subr.bf16.mxu0 0
    %981 = vmatpush1.bf16.msra.mxu0 %v794
    %982 = vmatprep.subr.bf16.mxu0 0
    %983 = vmatpush1.bf16.msra.mxu0 %v795
    %984 = vmatprep.subr.bf16.mxu0 0
    %985 = vmatpush1.bf16.msra.mxu0 %v796
    %986 = vmatprep.subr.bf16.mxu0 0
    %987 = vmatpush1.bf16.msra.mxu0 %v797
    %988 = vmatprep.subr.bf16.mxu0 0
    %989 = vmatpush1.bf16.msra.mxu0 %v798
    %990 = vmatprep.subr.bf16.mxu0 0
    %991 = vmatpush1.bf16.msra.mxu0 %v799
    %992 = vmatprep.mubr.bf16.mxu0 %v897
    %993 = vmatmul.mubr.bf16.gmra.mrb[0].mxu0 %v896
    %v994 = vpop.f32.mrb[0].mxu0
    %v995 = vadd.f32 %v720, %v994
    %v996 = vpop.f32.mrb[0].mxu0
    %v997 = vpop.f32.mrb[0].mxu0
    %v998 = vadd.f32 %v721, %v997
    %v999 = vpop.f32.mrb[0].mxu0
    %1000 = vmatprep.mubr.bf16.mxu0 %v899
    %1001 = vmatmul.mubr.bf16.gmra.mrb[0].mxu0 %v898
    %v1002 = vpop.f32.mrb[0].mxu0
    %v1003 = vadd.f32 %v722, %v1002
    %v1004 = vpop.f32.mrb[0].mxu0
    %v1005 = vpop.f32.mrb[0].mxu0
    %v1006 = vadd.f32 %v723, %v1005
    %v1007 = vpop.f32.mrb[0].mxu0
    %1008 = vmatprep.mubr.bf16.mxu0 %v901
    %1009 = vmatmul.mubr.bf16.gmra.mrb[0].mxu0 %v900
    %v1010 = vpop.f32.mrb[0].mxu0
    %v1011 = vadd.f32 %v724, %v1010
    %v1012 = vpop.f32.mrb[0].mxu0
    %v1013 = vpop.f32.mrb[0].mxu0
    %v1014 = vadd.f32 %v725, %v1013
    %v1015 = vpop.f32.mrb[0].mxu0
    %1016 = vmatprep.mubr.bf16.mxu0 %v903
    %1017 = vmatmul.mubr.bf16.gmra.mrb[0].mxu0 %v902
    %v1018 = vpop.f32.mrb[0].mxu0
    %v1019 = vadd.f32 %v726, %v1018
    %v1020 = vpop.f32.mrb[0].mxu0
    %v1021 = vpop.f32.mrb[0].mxu0
    %v1022 = vadd.f32 %v727, %v1021
    %v1023 = vpop.f32.mrb[0].mxu0
    %1024 = vmatprep.mubr.bf16.mxu0 %v905
    %1025 = vmatmul.mubr.bf16.gmra.mrb[0].mxu0 %v904
    %v1026 = vpop.f32.mrb[0].mxu0
    %v1027 = vadd.f32 %v728, %v1026
    %v1028 = vpop.f32.mrb[0].mxu0
    %v1029 = vpop.f32.mrb[0].mxu0
    %v1030 = vadd.f32 %v729, %v1029
    %v1031 = vpop.f32.mrb[0].mxu0
    %1032 = vmatprep.mubr.bf16.mxu0 %v907
    %1033 = vmatmul.mubr.bf16.gmra.mrb[0].mxu0 %v906
    %v1034 = vpop.f32.mrb[0].mxu0
    %v1035 = vadd.f32 %v730, %v1034
    %v1036 = vpop.f32.mrb[0].mxu0
    %v1037 = vpop.f32.mrb[0].mxu0
    %v1038 = vadd.f32 %v731, %v1037
    %v1039 = vpop.f32.mrb[0].mxu0
    %1040 = vmatprep.mubr.bf16.mxu0 %v909
    %1041 = vmatmul.mubr.bf16.gmra.mrb[0].mxu0 %v908
    %v1042 = vpop.f32.mrb[0].mxu0
    %v1043 = vadd.f32 %v732, %v1042
    %v1044 = vpop.f32.mrb[0].mxu0
    %v1045 = vpop.f32.mrb[0].mxu0
    %v1046 = vadd.f32 %v733, %v1045
    %v1047 = vpop.f32.mrb[0].mxu0
    %1048 = vmatprep.mubr.bf16.mxu0 %v911
    %1049 = vmatmul.mubr.bf16.gmra.mrb[0].mxu0 %v910
    %v1050 = vpop.f32.mrb[0].mxu0
    %v1051 = vadd.f32 %v734, %v1050
    %v1052 = vpop.f32.mrb[0].mxu0
    %v1053 = vpop.f32.mrb[0].mxu0
    %v1054 = vadd.f32 %v735, %v1053
    %v1055 = vpop.f32.mrb[0].mxu0
    %1056 = vmatprep.mubr.bf16.mxu0 %v913
    %1057 = vmatmul.mubr.bf16.gmra.mrb[0].mxu0 %v912
    %v1058 = vpop.f32.mrb[0].mxu0
    %v1059 = vadd.f32 %v736, %v1058
    %v1060 = vpop.f32.mrb[0].mxu0
    %v1061 = vpop.f32.mrb[0].mxu0
    %v1062 = vadd.f32 %v737, %v1061
    %v1063 = vpop.f32.mrb[0].mxu0
    %1064 = vmatprep.mubr.bf16.mxu0 %v915
    %1065 = vmatmul.mubr.bf16.gmra.mrb[0].mxu0 %v914
    %v1066 = vpop.f32.mrb[0].mxu0
    %v1067 = vadd.f32 %v738, %v1066
    %v1068 = vpop.f32.mrb[0].mxu0
    %v1069 = vpop.f32.mrb[0].mxu0
    %v1070 = vadd.f32 %v739, %v1069
    %v1071 = vpop.f32.mrb[0].mxu0
    %1072 = vmatprep.mubr.bf16.mxu0 %v917
    %1073 = vmatmul.mubr.bf16.gmra.mrb[0].mxu0 %v916
    %v1074 = vpop.f32.mrb[0].mxu0
    %v1075 = vadd.f32 %v740, %v1074
    %v1076 = vpop.f32.mrb[0].mxu0
    %v1077 = vpop.f32.mrb[0].mxu0
    %v1078 = vadd.f32 %v741, %v1077
    %v1079 = vpop.f32.mrb[0].mxu0
    %1080 = vmatprep.mubr.bf16.mxu0 %v919
    %1081 = vmatmul.mubr.bf16.gmra.mrb[0].mxu0 %v918
    %v1082 = vpop.f32.mrb[0].mxu0
    %v1083 = vadd.f32 %v742, %v1082
    %v1084 = vpop.f32.mrb[0].mxu0
    %v1085 = vpop.f32.mrb[0].mxu0
    %v1086 = vadd.f32 %v743, %v1085
    %v1087 = vpop.f32.mrb[0].mxu0
    %1088 = vmatprep.mubr.bf16.mxu0 %v921
    %1089 = vmatmul.mubr.bf16.gmra.mrb[0].mxu0 %v920
    %v1090 = vpop.f32.mrb[0].mxu0
    %v1091 = vadd.f32 %v744, %v1090
    %v1092 = vpop.f32.mrb[0].mxu0
    %v1093 = vpop.f32.mrb[0].mxu0
    %v1094 = vadd.f32 %v745, %v1093
    %v1095 = vpop.f32.mrb[0].mxu0
    %1096 = vmatprep.mubr.bf16.mxu0 %v923
    %1097 = vmatmul.mubr.bf16.gmra.mrb[0].mxu0 %v922
    %v1098 = vpop.f32.mrb[0].mxu0
    %v1099 = vadd.f32 %v746, %v1098
    %v1100 = vpop.f32.mrb[0].mxu0
    %v1101 = vpop.f32.mrb[0].mxu0
    %v1102 = vadd.f32 %v747, %v1101
    %v1103 = vpop.f32.mrb[0].mxu0
    %1104 = vmatprep.mubr.bf16.mxu0 %v925
    %1105 = vmatmul.mubr.bf16.gmra.mrb[0].mxu0 %v924
    %v1106 = vpop.f32.mrb[0].mxu0
    %v1107 = vadd.f32 %v748, %v1106
    %v1108 = vpop.f32.mrb[0].mxu0
    %v1109 = vpop.f32.mrb[0].mxu0
    %v1110 = vadd.f32 %v749, %v1109
    %v1111 = vpop.f32.mrb[0].mxu0
    %1112 = vmatprep.mubr.bf16.mxu0 %v927
    %1113 = vmatmul.mubr.bf16.gmra.mrb[0].mxu0 %v926
    %v1114 = vpop.f32.mrb[0].mxu0
    %v1115 = vadd.f32 %v750, %v1114
    %v1116 = vpop.f32.mrb[0].mxu0
    %v1117 = vpop.f32.mrb[0].mxu0
    %v1118 = vadd.f32 %v751, %v1117
    %v1119 = vpop.f32.mrb[0].mxu0
    %1120 = vdwg.mxu0
    %v1121 = vpack.c.bf16 %v998, %v995
    %v1122 = vpack.c.bf16 %v1006, %v1003
    %v1123 = vpack.c.bf16 %v1014, %v1011
    %v1124 = vpack.c.bf16 %v1022, %v1019
    %v1125 = vpack.c.bf16 %v1030, %v1027
    %v1126 = vpack.c.bf16 %v1038, %v1035
    %v1127 = vpack.c.bf16 %v1046, %v1043
    %v1128 = vpack.c.bf16 %v1054, %v1051
    %v1129 = vpack.c.bf16 %v1062, %v1059
    %v1130 = vpack.c.bf16 %v1070, %v1067
    %v1131 = vpack.c.bf16 %v1078, %v1075
    %v1132 = vpack.c.bf16 %v1086, %v1083
    %v1133 = vpack.c.bf16 %v1094, %v1091
    %v1134 = vpack.c.bf16 %v1102, %v1099
    %v1135 = vpack.c.bf16 %v1110, %v1107
    %v1136 = vpack.c.bf16 %v1118, %v1115
    %1137 = vmatprep.subr.bf16.mxu0 0
    %1138 = vmatpush1.bf16.msra.mxu0 %v1121
    %1139 = vmatprep.subr.bf16.mxu0 0
    %1140 = vmatpush1.bf16.msra.mxu0 %v1122
    %1141 = vmatprep.subr.bf16.mxu0 0
    %1142 = vmatpush1.bf16.msra.mxu0 %v1123
    %1143 = vmatprep.subr.bf16.mxu0 0
    %1144 = vmatpush1.bf16.msra.mxu0 %v1124
    %1145 = vmatprep.subr.bf16.mxu0 0
    %1146 = vmatpush1.bf16.msra.mxu0 %v1125
    %1147 = vmatprep.subr.bf16.mxu0 0
    %1148 = vmatpush1.bf16.msra.mxu0 %v1126
    %1149 = vmatprep.subr.bf16.mxu0 0
    %1150 = vmatpush1.bf16.msra.mxu0 %v1127
    %1151 = vmatprep.subr.bf16.mxu0 0
    %1152 = vmatpush1.bf16.msra.mxu0 %v1128
    %1153 = vmatprep.subr.bf16.mxu0 0
    %1154 = vmatpush1.bf16.msra.mxu0 %v1129
    %1155 = vmatprep.subr.bf16.mxu0 0
    %1156 = vmatpush1.bf16.msra.mxu0 %v1130
    %1157 = vmatprep.subr.bf16.mxu0 0
    %1158 = vmatpush1.bf16.msra.mxu0 %v1131
    %1159 = vmatprep.subr.bf16.mxu0 0
    %1160 = vmatpush1.bf16.msra.mxu0 %v1132
    %1161 = vmatprep.subr.bf16.mxu0 0
    %1162 = vmatpush1.bf16.msra.mxu0 %v1133
    %1163 = vmatprep.subr.bf16.mxu0 0
    %1164 = vmatpush1.bf16.msra.mxu0 %v1134
    %1165 = vmatprep.subr.bf16.mxu0 0
    %1166 = vmatpush1.bf16.msra.mxu0 %v1135
    %1167 = vmatprep.subr.bf16.mxu0 0
    %1168 = vmatpush1.bf16.msra.mxu0 %v1136
    %1169 = vmatprep.mubr.bf16.mxu0 %v897
    %1170 = vmatmul.mubr.bf16.gmra.mrb[0].mxu0 %v896
    %v1171 = vpop.f32.mrb[0].mxu0
    %v1172 = vadd.f32 %v720, %v1171
    %v1173 = vpop.f32.mrb[0].mxu0
    %v1174 = vpop.f32.mrb[0].mxu0
    %v1175 = vadd.f32 %v721, %v1174
    %v1176 = vpop.f32.mrb[0].mxu0
    %1177 = vmatprep.mubr.bf16.mxu0 %v899
    %1178 = vmatmul.mubr.bf16.gmra.mrb[0].mxu0 %v898
    %v1179 = vpop.f32.mrb[0].mxu0
    %v1180 = vadd.f32 %v722, %v1179
    %v1181 = vpop.f32.mrb[0].mxu0
    %v1182 = vpop.f32.mrb[0].mxu0
    %v1183 = vadd.f32 %v723, %v1182
    %v1184 = vpop.f32.mrb[0].mxu0
    %1185 = vmatprep.mubr.bf16.mxu0 %v901
    %1186 = vmatmul.mubr.bf16.gmra.mrb[0].mxu0 %v900
    %v1187 = vpop.f32.mrb[0].mxu0
    %v1188 = vadd.f32 %v724, %v1187
    %v1189 = vpop.f32.mrb[0].mxu0
    %v1190 = vpop.f32.mrb[0].mxu0
    %v1191 = vadd.f32 %v725, %v1190
    %v1192 = vpop.f32.mrb[0].mxu0
    %1193 = vmatprep.mubr.bf16.mxu0 %v903
    %1194 = vmatmul.mubr.bf16.gmra.mrb[0].mxu0 %v902
    %v1195 = vpop.f32.mrb[0].mxu0
    %v1196 = vadd.f32 %v726, %v1195
    %v1197 = vpop.f32.mrb[0].mxu0
    %v1198 = vpop.f32.mrb[0].mxu0
    %v1199 = vadd.f32 %v727, %v1198
    %v1200 = vpop.f32.mrb[0].mxu0
    %1201 = vmatprep.mubr.bf16.mxu0 %v905
    %1202 = vmatmul.mubr.bf16.gmra.mrb[0].mxu0 %v904
    %v1203 = vpop.f32.mrb[0].mxu0
    %v1204 = vadd.f32 %v728, %v1203
    %v1205 = vpop.f32.mrb[0].mxu0
    %v1206 = vpop.f32.mrb[0].mxu0
    %v1207 = vadd.f32 %v729, %v1206
    %v1208 = vpop.f32.mrb[0].mxu0
    %1209 = vmatprep.mubr.bf16.mxu0 %v907
    %1210 = vmatmul.mubr.bf16.gmra.mrb[0].mxu0 %v906
    %v1211 = vpop.f32.mrb[0].mxu0
    %v1212 = vadd.f32 %v730, %v1211
    %v1213 = vpop.f32.mrb[0].mxu0
    %v1214 = vpop.f32.mrb[0].mxu0
    %v1215 = vadd.f32 %v731, %v1214
    %v1216 = vpop.f32.mrb[0].mxu0
    %1217 = vmatprep.mubr.bf16.mxu0 %v909
    %1218 = vmatmul.mubr.bf16.gmra.mrb[0].mxu0 %v908
    %v1219 = vpop.f32.mrb[0].mxu0
    %v1220 = vadd.f32 %v732, %v1219
    %v1221 = vpop.f32.mrb[0].mxu0
    %v1222 = vpop.f32.mrb[0].mxu0
    %v1223 = vadd.f32 %v733, %v1222
    %v1224 = vpop.f32.mrb[0].mxu0
    %1225 = vmatprep.mubr.bf16.mxu0 %v911
    %1226 = vmatmul.mubr.bf16.gmra.mrb[0].mxu0 %v910
    %v1227 = vpop.f32.mrb[0].mxu0
    %v1228 = vadd.f32 %v734, %v1227
    %v1229 = vpop.f32.mrb[0].mxu0
    %v1230 = vpop.f32.mrb[0].mxu0
    %v1231 = vadd.f32 %v735, %v1230
    %v1232 = vpop.f32.mrb[0].mxu0
    %1233 = vmatprep.mubr.bf16.mxu0 %v913
    %1234 = vmatmul.mubr.bf16.gmra.mrb[0].mxu0 %v912
    %v1235 = vpop.f32.mrb[0].mxu0
    %v1236 = vadd.f32 %v736, %v1235
    %v1237 = vpop.f32.mrb[0].mxu0
    %v1238 = vpop.f32.mrb[0].mxu0
    %v1239 = vadd.f32 %v737, %v1238
    %v1240 = vpop.f32.mrb[0].mxu0
    %1241 = vmatprep.mubr.bf16.mxu0 %v915
    %1242 = vmatmul.mubr.bf16.gmra.mrb[0].mxu0 %v914
    %v1243 = vpop.f32.mrb[0].mxu0
    %v1244 = vadd.f32 %v738, %v1243
    %v1245 = vpop.f32.mrb[0].mxu0
    %v1246 = vpop.f32.mrb[0].mxu0
    %v1247 = vadd.f32 %v739, %v1246
    %v1248 = vpop.f32.mrb[0].mxu0
    %1249 = vmatprep.mubr.bf16.mxu0 %v917
    %1250 = vmatmul.mubr.bf16.gmra.mrb[0].mxu0 %v916
    %v1251 = vpop.f32.mrb[0].mxu0
    %v1252 = vadd.f32 %v740, %v1251
    %v1253 = vpop.f32.mrb[0].mxu0
    %v1254 = vpop.f32.mrb[0].mxu0
    %v1255 = vadd.f32 %v741, %v1254
    %v1256 = vpop.f32.mrb[0].mxu0
    %1257 = vmatprep.mubr.bf16.mxu0 %v919
    %1258 = vmatmul.mubr.bf16.gmra.mrb[0].mxu0 %v918
    %v1259 = vpop.f32.mrb[0].mxu0
    %v1260 = vadd.f32 %v742, %v1259
    %v1261 = vpop.f32.mrb[0].mxu0
    %v1262 = vpop.f32.mrb[0].mxu0
    %v1263 = vadd.f32 %v743, %v1262
    %v1264 = vpop.f32.mrb[0].mxu0
    %1265 = vmatprep.mubr.bf16.mxu0 %v921
    %1266 = vmatmul.mubr.bf16.gmra.mrb[0].mxu0 %v920
    %v1267 = vpop.f32.mrb[0].mxu0
    %v1268 = vadd.f32 %v744, %v1267
    %v1269 = vpop.f32.mrb[0].mxu0
    %v1270 = vpop.f32.mrb[0].mxu0
    %v1271 = vadd.f32 %v745, %v1270
    %v1272 = vpop.f32.mrb[0].mxu0
    %1273 = vmatprep.mubr.bf16.mxu0 %v923
    %1274 = vmatmul.mubr.bf16.gmra.mrb[0].mxu0 %v922
    %v1275 = vpop.f32.mrb[0].mxu0
    %v1276 = vadd.f32 %v746, %v1275
    %v1277 = vpop.f32.mrb[0].mxu0
    %v1278 = vpop.f32.mrb[0].mxu0
    %v1279 = vadd.f32 %v747, %v1278
    %v1280 = vpop.f32.mrb[0].mxu0
    %1281 = vmatprep.mubr.bf16.mxu0 %v925
    %1282 = vmatmul.mubr.bf16.gmra.mrb[0].mxu0 %v924
    %v1283 = vpop.f32.mrb[0].mxu0
    %v1284 = vadd.f32 %v748, %v1283
    %v1285 = vpop.f32.mrb[0].mxu0
    %v1286 = vpop.f32.mrb[0].mxu0
    %v1287 = vadd.f32 %v749, %v1286
    %v1288 = vpop.f32.mrb[0].mxu0
    %1289 = vmatprep.mubr.bf16.mxu0 %v927
    %1290 = vmatmul.mubr.bf16.gmra.mrb[0].mxu0 %v926
    %v1291 = vpop.f32.mrb[0].mxu0
    %v1292 = vadd.f32 %v750, %v1291
    %v1293 = vpop.f32.mrb[0].mxu0
    %v1294 = vpop.f32.mrb[0].mxu0
    %v1295 = vadd.f32 %v751, %v1294
    %v1296 = vpop.f32.mrb[0].mxu0
    %1297 = vdwg.mxu0
    %v1298 = vpack.c.bf16 %v1175, %v1172
    %v1299 = vpack.c.bf16 %v1183, %v1180
    %v1300 = vpack.c.bf16 %v1191, %v1188
    %v1301 = vpack.c.bf16 %v1199, %v1196
    %v1302 = vpack.c.bf16 %v1207, %v1204
    %v1303 = vpack.c.bf16 %v1215, %v1212
    %v1304 = vpack.c.bf16 %v1223, %v1220
    %v1305 = vpack.c.bf16 %v1231, %v1228
    %v1306 = vpack.c.bf16 %v1239, %v1236
    %v1307 = vpack.c.bf16 %v1247, %v1244
    %v1308 = vpack.c.bf16 %v1255, %v1252
    %v1309 = vpack.c.bf16 %v1263, %v1260
    %v1310 = vpack.c.bf16 %v1271, %v1268
    %v1311 = vpack.c.bf16 %v1279, %v1276
    %v1312 = vpack.c.bf16 %v1287, %v1284
    %v1313 = vpack.c.bf16 %v1295, %v1292
    %1314 = vmatprep.subr.bf16.mxu0 0
    %1315 = vmatpush1.bf16.msra.mxu0 %v1298
    %1316 = vmatprep.subr.bf16.mxu0 0
    %1317 = vmatpush1.bf16.msra.mxu0 %v1299
    %1318 = vmatprep.subr.bf16.mxu0 0
    %1319 = vmatpush1.bf16.msra.mxu0 %v1300
    %1320 = vmatprep.subr.bf16.mxu0 0
    %1321 = vmatpush1.bf16.msra.mxu0 %v1301
    %1322 = vmatprep.subr.bf16.mxu0 0
    %1323 = vmatpush1.bf16.msra.mxu0 %v1302
    %1324 = vmatprep.subr.bf16.mxu0 0
    %1325 = vmatpush1.bf16.msra.mxu0 %v1303
    %1326 = vmatprep.subr.bf16.mxu0 0
    %1327 = vmatpush1.bf16.msra.mxu0 %v1304
    %1328 = vmatprep.subr.bf16.mxu0 0
    %1329 = vmatpush1.bf16.msra.mxu0 %v1305
    %1330 = vmatprep.subr.bf16.mxu0 0
    %1331 = vmatpush1.bf16.msra.mxu0 %v1306
    %1332 = vmatprep.subr.bf16.mxu0 0
    %1333 = vmatpush1.bf16.msra.mxu0 %v1307
    %1334 = vmatprep.subr.bf16.mxu0 0
    %1335 = vmatpush1.bf16.msra.mxu0 %v1308
    %1336 = vmatprep.subr.bf16.mxu0 0
    %1337 = vmatpush1.bf16.msra.mxu0 %v1309
    %1338 = vmatprep.subr.bf16.mxu0 0
    %1339 = vmatpush1.bf16.msra.mxu0 %v1310
    %1340 = vmatprep.subr.bf16.mxu0 0
    %1341 = vmatpush1.bf16.msra.mxu0 %v1311
    %1342 = vmatprep.subr.bf16.mxu0 0
    %1343 = vmatpush1.bf16.msra.mxu0 %v1312
    %1344 = vmatprep.subr.bf16.mxu0 0
    %1345 = vmatpush1.bf16.msra.mxu0 %v1313
    %1346 = vmatprep.mubr.bf16.mxu0 %v897
    %1347 = vmatmul.mubr.bf16.gmra.mrb[0].mxu0 %v896
    %v1348 = vpop.f32.mrb[0].mxu0
    %v1349 = vadd.f32 %v720, %v1348
    %v1350 = vpop.f32.mrb[0].mxu0
    %v1351 = vpop.f32.mrb[0].mxu0
    %v1352 = vadd.f32 %v721, %v1351
    %v1353 = vpop.f32.mrb[0].mxu0
    %1354 = vmatprep.mubr.bf16.mxu0 %v899
    %1355 = vmatmul.mubr.bf16.gmra.mrb[0].mxu0 %v898
    %v1356 = vpop.f32.mrb[0].mxu0
    %v1357 = vadd.f32 %v722, %v1356
    %v1358 = vpop.f32.mrb[0].mxu0
    %v1359 = vpop.f32.mrb[0].mxu0
    %v1360 = vadd.f32 %v723, %v1359
    %v1361 = vpop.f32.mrb[0].mxu0
    %1362 = vmatprep.mubr.bf16.mxu0 %v901
    %1363 = vmatmul.mubr.bf16.gmra.mrb[0].mxu0 %v900
    %v1364 = vpop.f32.mrb[0].mxu0
    %v1365 = vadd.f32 %v724, %v1364
    %v1366 = vpop.f32.mrb[0].mxu0
    %v1367 = vpop.f32.mrb[0].mxu0
    %v1368 = vadd.f32 %v725, %v1367
    %v1369 = vpop.f32.mrb[0].mxu0
    %1370 = vmatprep.mubr.bf16.mxu0 %v903
    %1371 = vmatmul.mubr.bf16.gmra.mrb[0].mxu0 %v902
    %v1372 = vpop.f32.mrb[0].mxu0
    %v1373 = vadd.f32 %v726, %v1372
    %v1374 = vpop.f32.mrb[0].mxu0
    %v1375 = vpop.f32.mrb[0].mxu0
    %v1376 = vadd.f32 %v727, %v1375
    %v1377 = vpop.f32.mrb[0].mxu0
    %1378 = vmatprep.mubr.bf16.mxu0 %v905
    %1379 = vmatmul.mubr.bf16.gmra.mrb[0].mxu0 %v904
    %v1380 = vpop.f32.mrb[0].mxu0
    %v1381 = vadd.f32 %v728, %v1380
    %v1382 = vpop.f32.mrb[0].mxu0
    %v1383 = vpop.f32.mrb[0].mxu0
    %v1384 = vadd.f32 %v729, %v1383
    %v1385 = vpop.f32.mrb[0].mxu0
    %1386 = vmatprep.mubr.bf16.mxu0 %v907
    %1387 = vmatmul.mubr.bf16.gmra.mrb[0].mxu0 %v906
    %v1388 = vpop.f32.mrb[0].mxu0
    %v1389 = vadd.f32 %v730, %v1388
    %v1390 = vpop.f32.mrb[0].mxu0
    %v1391 = vpop.f32.mrb[0].mxu0
    %v1392 = vadd.f32 %v731, %v1391
    %v1393 = vpop.f32.mrb[0].mxu0
    %1394 = vmatprep.mubr.bf16.mxu0 %v909
    %1395 = vmatmul.mubr.bf16.gmra.mrb[0].mxu0 %v908
    %v1396 = vpop.f32.mrb[0].mxu0
    %v1397 = vadd.f32 %v732, %v1396
    %v1398 = vpop.f32.mrb[0].mxu0
    %v1399 = vpop.f32.mrb[0].mxu0
    %v1400 = vadd.f32 %v733, %v1399
    %v1401 = vpop.f32.mrb[0].mxu0
    %1402 = vmatprep.mubr.bf16.mxu0 %v911
    %1403 = vmatmul.mubr.bf16.gmra.mrb[0].mxu0 %v910
    %v1404 = vpop.f32.mrb[0].mxu0
    %v1405 = vadd.f32 %v734, %v1404
    %v1406 = vpop.f32.mrb[0].mxu0
    %v1407 = vpop.f32.mrb[0].mxu0
    %v1408 = vadd.f32 %v735, %v1407
    %v1409 = vpop.f32.mrb[0].mxu0
    %1410 = vmatprep.mubr.bf16.mxu0 %v913
    %1411 = vmatmul.mubr.bf16.gmra.mrb[0].mxu0 %v912
    %v1412 = vpop.f32.mrb[0].mxu0
    %v1413 = vadd.f32 %v736, %v1412
    %v1414 = vpop.f32.mrb[0].mxu0
    %v1415 = vpop.f32.mrb[0].mxu0
    %v1416 = vadd.f32 %v737, %v1415
    %v1417 = vpop.f32.mrb[0].mxu0
    %1418 = vmatprep.mubr.bf16.mxu0 %v915
    %1419 = vmatmul.mubr.bf16.gmra.mrb[0].mxu0 %v914
    %v1420 = vpop.f32.mrb[0].mxu0
    %v1421 = vadd.f32 %v738, %v1420
    %v1422 = vpop.f32.mrb[0].mxu0
    %v1423 = vpop.f32.mrb[0].mxu0
    %v1424 = vadd.f32 %v739, %v1423
    %v1425 = vpop.f32.mrb[0].mxu0
    %1426 = vmatprep.mubr.bf16.mxu0 %v917
    %1427 = vmatmul.mubr.bf16.gmra.mrb[0].mxu0 %v916
    %v1428 = vpop.f32.mrb[0].mxu0
    %v1429 = vadd.f32 %v740, %v1428
    %v1430 = vpop.f32.mrb[0].mxu0
    %v1431 = vpop.f32.mrb[0].mxu0
    %v1432 = vadd.f32 %v741, %v1431
    %v1433 = vpop.f32.mrb[0].mxu0
    %1434 = vmatprep.mubr.bf16.mxu0 %v919
    %1435 = vmatmul.mubr.bf16.gmra.mrb[0].mxu0 %v918
    %v1436 = vpop.f32.mrb[0].mxu0
    %v1437 = vadd.f32 %v742, %v1436
    %v1438 = vpop.f32.mrb[0].mxu0
    %v1439 = vpop.f32.mrb[0].mxu0
    %v1440 = vadd.f32 %v743, %v1439
    %v1441 = vpop.f32.mrb[0].mxu0
    %1442 = vmatprep.mubr.bf16.mxu0 %v921
    %1443 = vmatmul.mubr.bf16.gmra.mrb[0].mxu0 %v920
    %v1444 = vpop.f32.mrb[0].mxu0
    %v1445 = vadd.f32 %v744, %v1444
    %v1446 = vpop.f32.mrb[0].mxu0
    %v1447 = vpop.f32.mrb[0].mxu0
    %v1448 = vadd.f32 %v745, %v1447
    %v1449 = vpop.f32.mrb[0].mxu0
    %1450 = vmatprep.mubr.bf16.mxu0 %v923
    %1451 = vmatmul.mubr.bf16.gmra.mrb[0].mxu0 %v922
    %v1452 = vpop.f32.mrb[0].mxu0
    %v1453 = vadd.f32 %v746, %v1452
    %v1454 = vpop.f32.mrb[0].mxu0
    %v1455 = vpop.f32.mrb[0].mxu0
    %v1456 = vadd.f32 %v747, %v1455
    %v1457 = vpop.f32.mrb[0].mxu0
    %1458 = vmatprep.mubr.bf16.mxu0 %v925
    %1459 = vmatmul.mubr.bf16.gmra.mrb[0].mxu0 %v924
    %v1460 = vpop.f32.mrb[0].mxu0
    %v1461 = vadd.f32 %v748, %v1460
    %v1462 = vpop.f32.mrb[0].mxu0
    %v1463 = vpop.f32.mrb[0].mxu0
    %v1464 = vadd.f32 %v749, %v1463
    %v1465 = vpop.f32.mrb[0].mxu0
    %1466 = vmatprep.mubr.bf16.mxu0 %v927
    %1467 = vmatmul.mubr.bf16.gmra.mrb[0].mxu0 %v926
    %v1468 = vpop.f32.mrb[0].mxu0
    %v1469 = vadd.f32 %v750, %v1468
    %v1470 = vpop.f32.mrb[0].mxu0
    %v1471 = vpop.f32.mrb[0].mxu0
    %v1472 = vadd.f32 %v751, %v1471
    %v1473 = vpop.f32.mrb[0].mxu0
    %1474 = vdwg.mxu0
    %v1475 = vpack.c.bf16 %v1352, %v1349
    %v1476 = vpack.c.bf16 %v1360, %v1357
    %v1477 = vpack.c.bf16 %v1368, %v1365
    %v1478 = vpack.c.bf16 %v1376, %v1373
    %v1479 = vpack.c.bf16 %v1384, %v1381
    %v1480 = vpack.c.bf16 %v1392, %v1389
    %v1481 = vpack.c.bf16 %v1400, %v1397
    %v1482 = vpack.c.bf16 %v1408, %v1405
    %v1483 = vpack.c.bf16 %v1416, %v1413
    %v1484 = vpack.c.bf16 %v1424, %v1421
    %v1485 = vpack.c.bf16 %v1432, %v1429
    %v1486 = vpack.c.bf16 %v1440, %v1437
    %v1487 = vpack.c.bf16 %v1448, %v1445
    %v1488 = vpack.c.bf16 %v1456, %v1453
    %v1489 = vpack.c.bf16 %v1464, %v1461
    %v1490 = vpack.c.bf16 %v1472, %v1469
    %1491 = vmatprep.subr.bf16.mxu0 0
    %1492 = vmatpush1.bf16.msra.mxu0 %v1475
    %1493 = vmatprep.subr.bf16.mxu0 0
    %1494 = vmatpush1.bf16.msra.mxu0 %v1476
    %1495 = vmatprep.subr.bf16.mxu0 0
    %1496 = vmatpush1.bf16.msra.mxu0 %v1477
    %1497 = vmatprep.subr.bf16.mxu0 0
    %1498 = vmatpush1.bf16.msra.mxu0 %v1478
    %1499 = vmatprep.subr.bf16.mxu0 0
    %1500 = vmatpush1.bf16.msra.mxu0 %v1479
    %1501 = vmatprep.subr.bf16.mxu0 0
    %1502 = vmatpush1.bf16.msra.mxu0 %v1480
    %1503 = vmatprep.subr.bf16.mxu0 0
    %1504 = vmatpush1.bf16.msra.mxu0 %v1481
    %1505 = vmatprep.subr.bf16.mxu0 0
    %1506 = vmatpush1.bf16.msra.mxu0 %v1482
    %1507 = vmatprep.subr.bf16.mxu0 0
    %1508 = vmatpush1.bf16.msra.mxu0 %v1483
    %1509 = vmatprep.subr.bf16.mxu0 0
    %1510 = vmatpush1.bf16.msra.mxu0 %v1484
    %1511 = vmatprep.subr.bf16.mxu0 0
    %1512 = vmatpush1.bf16.msra.mxu0 %v1485
    %1513 = vmatprep.subr.bf16.mxu0 0
    %1514 = vmatpush1.bf16.msra.mxu0 %v1486
    %1515 = vmatprep.subr.bf16.mxu0 0
    %1516 = vmatpush1.bf16.msra.mxu0 %v1487
    %1517 = vmatprep.subr.bf16.mxu0 0
    %1518 = vmatpush1.bf16.msra.mxu0 %v1488
    %1519 = vmatprep.subr.bf16.mxu0 0
    %1520 = vmatpush1.bf16.msra.mxu0 %v1489
    %1521 = vmatprep.subr.bf16.mxu0 0
    %1522 = vmatpush1.bf16.msra.mxu0 %v1490
    %1523 = vmatprep.mubr.bf16.mxu0 %v897
    %1524 = vmatmul.mubr.bf16.gmra.mrb[0].mxu0 %v896
    %v1525 = vpop.f32.mrb[0].mxu0
    %v1526 = vadd.f32 %v720, %v1525
    %v1527 = vpop.f32.mrb[0].mxu0
    %v1528 = vpop.f32.mrb[0].mxu0
    %v1529 = vadd.f32 %v721, %v1528
    %v1530 = vpop.f32.mrb[0].mxu0
    %1531 = vmatprep.mubr.bf16.mxu0 %v899
    %1532 = vmatmul.mubr.bf16.gmra.mrb[0].mxu0 %v898
    %v1533 = vpop.f32.mrb[0].mxu0
    %v1534 = vadd.f32 %v722, %v1533
    %v1535 = vpop.f32.mrb[0].mxu0
    %v1536 = vpop.f32.mrb[0].mxu0
    %v1537 = vadd.f32 %v723, %v1536
    %v1538 = vpop.f32.mrb[0].mxu0
    %1539 = vmatprep.mubr.bf16.mxu0 %v901
    %1540 = vmatmul.mubr.bf16.gmra.mrb[0].mxu0 %v900
    %v1541 = vpop.f32.mrb[0].mxu0
    %v1542 = vadd.f32 %v724, %v1541
    %v1543 = vpop.f32.mrb[0].mxu0
    %v1544 = vpop.f32.mrb[0].mxu0
    %v1545 = vadd.f32 %v725, %v1544
    %v1546 = vpop.f32.mrb[0].mxu0
    %1547 = vmatprep.mubr.bf16.mxu0 %v903
    %1548 = vmatmul.mubr.bf16.gmra.mrb[0].mxu0 %v902
    %v1549 = vpop.f32.mrb[0].mxu0
    %v1550 = vadd.f32 %v726, %v1549
    %v1551 = vpop.f32.mrb[0].mxu0
    %v1552 = vpop.f32.mrb[0].mxu0
    %v1553 = vadd.f32 %v727, %v1552
    %v1554 = vpop.f32.mrb[0].mxu0
    %1555 = vmatprep.mubr.bf16.mxu0 %v905
    %1556 = vmatmul.mubr.bf16.gmra.mrb[0].mxu0 %v904
    %v1557 = vpop.f32.mrb[0].mxu0
    %v1558 = vadd.f32 %v728, %v1557
    %v1559 = vpop.f32.mrb[0].mxu0
    %v1560 = vpop.f32.mrb[0].mxu0
    %v1561 = vadd.f32 %v729, %v1560
    %v1562 = vpop.f32.mrb[0].mxu0
    %1563 = vmatprep.mubr.bf16.mxu0 %v907
    %1564 = vmatmul.mubr.bf16.gmra.mrb[0].mxu0 %v906
    %v1565 = vpop.f32.mrb[0].mxu0
    %v1566 = vadd.f32 %v730, %v1565
    %v1567 = vpop.f32.mrb[0].mxu0
    %v1568 = vpop.f32.mrb[0].mxu0
    %v1569 = vadd.f32 %v731, %v1568
    %v1570 = vpop.f32.mrb[0].mxu0
    %1571 = vmatprep.mubr.bf16.mxu0 %v909
    %1572 = vmatmul.mubr.bf16.gmra.mrb[0].mxu0 %v908
    %v1573 = vpop.f32.mrb[0].mxu0
    %v1574 = vadd.f32 %v732, %v1573
    %v1575 = vpop.f32.mrb[0].mxu0
    %v1576 = vpop.f32.mrb[0].mxu0
    %v1577 = vadd.f32 %v733, %v1576
    %v1578 = vpop.f32.mrb[0].mxu0
    %1579 = vmatprep.mubr.bf16.mxu0 %v911
    %1580 = vmatmul.mubr.bf16.gmra.mrb[0].mxu0 %v910
    %v1581 = vpop.f32.mrb[0].mxu0
    %v1582 = vadd.f32 %v734, %v1581
    %v1583 = vpop.f32.mrb[0].mxu0
    %v1584 = vpop.f32.mrb[0].mxu0
    %v1585 = vadd.f32 %v735, %v1584
    %v1586 = vpop.f32.mrb[0].mxu0
    %1587 = vmatprep.mubr.bf16.mxu0 %v913
    %1588 = vmatmul.mubr.bf16.gmra.mrb[0].mxu0 %v912
    %v1589 = vpop.f32.mrb[0].mxu0
    %v1590 = vadd.f32 %v736, %v1589
    %v1591 = vpop.f32.mrb[0].mxu0
    %v1592 = vpop.f32.mrb[0].mxu0
    %v1593 = vadd.f32 %v737, %v1592
    %v1594 = vpop.f32.mrb[0].mxu0
    %1595 = vmatprep.mubr.bf16.mxu0 %v915
    %1596 = vmatmul.mubr.bf16.gmra.mrb[0].mxu0 %v914
    %v1597 = vpop.f32.mrb[0].mxu0
    %v1598 = vadd.f32 %v738, %v1597
    %v1599 = vpop.f32.mrb[0].mxu0
    %v1600 = vpop.f32.mrb[0].mxu0
    %v1601 = vadd.f32 %v739, %v1600
    %v1602 = vpop.f32.mrb[0].mxu0
    %1603 = vmatprep.mubr.bf16.mxu0 %v917
    %1604 = vmatmul.mubr.bf16.gmra.mrb[0].mxu0 %v916
    %v1605 = vpop.f32.mrb[0].mxu0
    %v1606 = vadd.f32 %v740, %v1605
    %v1607 = vpop.f32.mrb[0].mxu0
    %v1608 = vpop.f32.mrb[0].mxu0
    %v1609 = vadd.f32 %v741, %v1608
    %v1610 = vpop.f32.mrb[0].mxu0
    %1611 = vmatprep.mubr.bf16.mxu0 %v919
    %1612 = vmatmul.mubr.bf16.gmra.mrb[0].mxu0 %v918
    %v1613 = vpop.f32.mrb[0].mxu0
    %v1614 = vadd.f32 %v742, %v1613
    %v1615 = vpop.f32.mrb[0].mxu0
    %v1616 = vpop.f32.mrb[0].mxu0
    %v1617 = vadd.f32 %v743, %v1616
    %v1618 = vpop.f32.mrb[0].mxu0
    %1619 = vmatprep.mubr.bf16.mxu0 %v921
    %1620 = vmatmul.mubr.bf16.gmra.mrb[0].mxu0 %v920
    %v1621 = vpop.f32.mrb[0].mxu0
    %v1622 = vadd.f32 %v744, %v1621
    %v1623 = vpop.f32.mrb[0].mxu0
    %v1624 = vpop.f32.mrb[0].mxu0
    %v1625 = vadd.f32 %v745, %v1624
    %v1626 = vpop.f32.mrb[0].mxu0
    %1627 = vmatprep.mubr.bf16.mxu0 %v923
    %1628 = vmatmul.mubr.bf16.gmra.mrb[0].mxu0 %v922
    %v1629 = vpop.f32.mrb[0].mxu0
    %v1630 = vadd.f32 %v746, %v1629
    %v1631 = vpop.f32.mrb[0].mxu0
    %v1632 = vpop.f32.mrb[0].mxu0
    %v1633 = vadd.f32 %v747, %v1632
    %v1634 = vpop.f32.mrb[0].mxu0
    %1635 = vmatprep.mubr.bf16.mxu0 %v925
    %1636 = vmatmul.mubr.bf16.gmra.mrb[0].mxu0 %v924
    %v1637 = vpop.f32.mrb[0].mxu0
    %v1638 = vadd.f32 %v748, %v1637
    %v1639 = vpop.f32.mrb[0].mxu0
    %v1640 = vpop.f32.mrb[0].mxu0
    %v1641 = vadd.f32 %v749, %v1640
    %v1642 = vpop.f32.mrb[0].mxu0
    %1643 = vmatprep.mubr.bf16.mxu0 %v927
    %1644 = vmatmul.mubr.bf16.gmra.mrb[0].mxu0 %v926
    %v1645 = vpop.f32.mrb[0].mxu0
    %v1646 = vadd.f32 %v750, %v1645
    %v1647 = vpop.f32.mrb[0].mxu0
    %v1648 = vpop.f32.mrb[0].mxu0
    %v1649 = vadd.f32 %v751, %v1648
    %v1650 = vpop.f32.mrb[0].mxu0
    %1651 = vdwg.mxu0
    %v1652 = vpack.c.bf16 %v1529, %v1526
    %v1653 = vpack.c.bf16 %v1537, %v1534
    %v1654 = vpack.c.bf16 %v1545, %v1542
    %v1655 = vpack.c.bf16 %v1553, %v1550
    %v1656 = vpack.c.bf16 %v1561, %v1558
    %v1657 = vpack.c.bf16 %v1569, %v1566
    %v1658 = vpack.c.bf16 %v1577, %v1574
    %v1659 = vpack.c.bf16 %v1585, %v1582
    %v1660 = vpack.c.bf16 %v1593, %v1590
    %v1661 = vpack.c.bf16 %v1601, %v1598
    %v1662 = vpack.c.bf16 %v1609, %v1606
    %v1663 = vpack.c.bf16 %v1617, %v1614
    %v1664 = vpack.c.bf16 %v1625, %v1622
    %v1665 = vpack.c.bf16 %v1633, %v1630
    %v1666 = vpack.c.bf16 %v1641, %v1638
    %v1667 = vpack.c.bf16 %v1649, %v1646
    %1668 = vmatprep.subr.bf16.mxu0 0
    %1669 = vmatpush1.bf16.msra.mxu0 %v1652
    %1670 = vmatprep.subr.bf16.mxu0 0
    %1671 = vmatpush1.bf16.msra.mxu0 %v1653
    %1672 = vmatprep.subr.bf16.mxu0 0
    %1673 = vmatpush1.bf16.msra.mxu0 %v1654
    %1674 = vmatprep.subr.bf16.mxu0 0
    %1675 = vmatpush1.bf16.msra.mxu0 %v1655
    %1676 = vmatprep.subr.bf16.mxu0 0
    %1677 = vmatpush1.bf16.msra.mxu0 %v1656
    %1678 = vmatprep.subr.bf16.mxu0 0
    %1679 = vmatpush1.bf16.msra.mxu0 %v1657
    %1680 = vmatprep.subr.bf16.mxu0 0
    %1681 = vmatpush1.bf16.msra.mxu0 %v1658
    %1682 = vmatprep.subr.bf16.mxu0 0
    %1683 = vmatpush1.bf16.msra.mxu0 %v1659
    %1684 = vmatprep.subr.bf16.mxu0 0
    %1685 = vmatpush1.bf16.msra.mxu0 %v1660
    %1686 = vmatprep.subr.bf16.mxu0 0
    %1687 = vmatpush1.bf16.msra.mxu0 %v1661
    %1688 = vmatprep.subr.bf16.mxu0 0
    %1689 = vmatpush1.bf16.msra.mxu0 %v1662
    %1690 = vmatprep.subr.bf16.mxu0 0
    %1691 = vmatpush1.bf16.msra.mxu0 %v1663
    %1692 = vmatprep.subr.bf16.mxu0 0
    %1693 = vmatpush1.bf16.msra.mxu0 %v1664
    %1694 = vmatprep.subr.bf16.mxu0 0
    %1695 = vmatpush1.bf16.msra.mxu0 %v1665
    %1696 = vmatprep.subr.bf16.mxu0 0
    %1697 = vmatpush1.bf16.msra.mxu0 %v1666
    %1698 = vmatprep.subr.bf16.mxu0 0
    %1699 = vmatpush1.bf16.msra.mxu0 %v1667
    %1700 = vmatprep.mubr.bf16.mxu0 %v897
    %1701 = vmatmul.mubr.bf16.gmra.mrb[0].mxu0 %v896
    %v1702 = vpop.f32.mrb[0].mxu0
    %v1703 = vadd.f32 %v720, %v1702
    %v1704 = vpop.f32.mrb[0].mxu0
    %v1705 = vpop.f32.mrb[0].mxu0
    %v1706 = vadd.f32 %v721, %v1705
    %v1707 = vpop.f32.mrb[0].mxu0
    %1708 = vmatprep.mubr.bf16.mxu0 %v899
    %1709 = vmatmul.mubr.bf16.gmra.mrb[0].mxu0 %v898
    %v1710 = vpop.f32.mrb[0].mxu0
    %v1711 = vadd.f32 %v722, %v1710
    %v1712 = vpop.f32.mrb[0].mxu0
    %v1713 = vpop.f32.mrb[0].mxu0
    %v1714 = vadd.f32 %v723, %v1713
    %v1715 = vpop.f32.mrb[0].mxu0
    %1716 = vmatprep.mubr.bf16.mxu0 %v901
    %1717 = vmatmul.mubr.bf16.gmra.mrb[0].mxu0 %v900
    %v1718 = vpop.f32.mrb[0].mxu0
    %v1719 = vadd.f32 %v724, %v1718
    %v1720 = vpop.f32.mrb[0].mxu0
    %v1721 = vpop.f32.mrb[0].mxu0
    %v1722 = vadd.f32 %v725, %v1721
    %v1723 = vpop.f32.mrb[0].mxu0
    %1724 = vmatprep.mubr.bf16.mxu0 %v903
    %1725 = vmatmul.mubr.bf16.gmra.mrb[0].mxu0 %v902
    %v1726 = vpop.f32.mrb[0].mxu0
    %v1727 = vadd.f32 %v726, %v1726
    %v1728 = vpop.f32.mrb[0].mxu0
    %v1729 = vpop.f32.mrb[0].mxu0
    %v1730 = vadd.f32 %v727, %v1729
    %v1731 = vpop.f32.mrb[0].mxu0
    %1732 = vmatprep.mubr.bf16.mxu0 %v905
    %1733 = vmatmul.mubr.bf16.gmra.mrb[0].mxu0 %v904
    %v1734 = vpop.f32.mrb[0].mxu0
    %v1735 = vadd.f32 %v728, %v1734
    %v1736 = vpop.f32.mrb[0].mxu0
    %v1737 = vpop.f32.mrb[0].mxu0
    %v1738 = vadd.f32 %v729, %v1737
    %v1739 = vpop.f32.mrb[0].mxu0
    %1740 = vmatprep.mubr.bf16.mxu0 %v907
    %1741 = vmatmul.mubr.bf16.gmra.mrb[0].mxu0 %v906
    %v1742 = vpop.f32.mrb[0].mxu0
    %v1743 = vadd.f32 %v730, %v1742
    %v1744 = vpop.f32.mrb[0].mxu0
    %v1745 = vpop.f32.mrb[0].mxu0
    %v1746 = vadd.f32 %v731, %v1745
    %v1747 = vpop.f32.mrb[0].mxu0
    %1748 = vmatprep.mubr.bf16.mxu0 %v909
    %1749 = vmatmul.mubr.bf16.gmra.mrb[0].mxu0 %v908
    %v1750 = vpop.f32.mrb[0].mxu0
    %v1751 = vadd.f32 %v732, %v1750
    %v1752 = vpop.f32.mrb[0].mxu0
    %v1753 = vpop.f32.mrb[0].mxu0
    %v1754 = vadd.f32 %v733, %v1753
    %v1755 = vpop.f32.mrb[0].mxu0
    %1756 = vmatprep.mubr.bf16.mxu0 %v911
    %1757 = vmatmul.mubr.bf16.gmra.mrb[0].mxu0 %v910
    %v1758 = vpop.f32.mrb[0].mxu0
    %v1759 = vadd.f32 %v734, %v1758
    %v1760 = vpop.f32.mrb[0].mxu0
    %v1761 = vpop.f32.mrb[0].mxu0
    %v1762 = vadd.f32 %v735, %v1761
    %v1763 = vpop.f32.mrb[0].mxu0
    %1764 = vmatprep.mubr.bf16.mxu0 %v913
    %1765 = vmatmul.mubr.bf16.gmra.mrb[0].mxu0 %v912
    %v1766 = vpop.f32.mrb[0].mxu0
    %v1767 = vadd.f32 %v736, %v1766
    %v1768 = vpop.f32.mrb[0].mxu0
    %v1769 = vpop.f32.mrb[0].mxu0
    %v1770 = vadd.f32 %v737, %v1769
    %v1771 = vpop.f32.mrb[0].mxu0
    %1772 = vmatprep.mubr.bf16.mxu0 %v915
    %1773 = vmatmul.mubr.bf16.gmra.mrb[0].mxu0 %v914
    %v1774 = vpop.f32.mrb[0].mxu0
    %v1775 = vadd.f32 %v738, %v1774
    %v1776 = vpop.f32.mrb[0].mxu0
    %v1777 = vpop.f32.mrb[0].mxu0
    %v1778 = vadd.f32 %v739, %v1777
    %v1779 = vpop.f32.mrb[0].mxu0
    %1780 = vmatprep.mubr.bf16.mxu0 %v917
    %1781 = vmatmul.mubr.bf16.gmra.mrb[0].mxu0 %v916
    %v1782 = vpop.f32.mrb[0].mxu0
    %v1783 = vadd.f32 %v740, %v1782
    %v1784 = vpop.f32.mrb[0].mxu0
    %v1785 = vpop.f32.mrb[0].mxu0
    %v1786 = vadd.f32 %v741, %v1785
    %v1787 = vpop.f32.mrb[0].mxu0
    %1788 = vmatprep.mubr.bf16.mxu0 %v919
    %1789 = vmatmul.mubr.bf16.gmra.mrb[0].mxu0 %v918
    %v1790 = vpop.f32.mrb[0].mxu0
    %v1791 = vadd.f32 %v742, %v1790
    %v1792 = vpop.f32.mrb[0].mxu0
    %v1793 = vpop.f32.mrb[0].mxu0
    %v1794 = vadd.f32 %v743, %v1793
    %v1795 = vpop.f32.mrb[0].mxu0
    %1796 = vmatprep.mubr.bf16.mxu0 %v921
    %1797 = vmatmul.mubr.bf16.gmra.mrb[0].mxu0 %v920
    %v1798 = vpop.f32.mrb[0].mxu0
    %v1799 = vadd.f32 %v744, %v1798
    %v1800 = vpop.f32.mrb[0].mxu0
    %v1801 = vpop.f32.mrb[0].mxu0
    %v1802 = vadd.f32 %v745, %v1801
    %v1803 = vpop.f32.mrb[0].mxu0
    %1804 = vmatprep.mubr.bf16.mxu0 %v923
    %1805 = vmatmul.mubr.bf16.gmra.mrb[0].mxu0 %v922
    %v1806 = vpop.f32.mrb[0].mxu0
    %v1807 = vadd.f32 %v746, %v1806
    %v1808 = vpop.f32.mrb[0].mxu0
    %v1809 = vpop.f32.mrb[0].mxu0
    %v1810 = vadd.f32 %v747, %v1809
    %v1811 = vpop.f32.mrb[0].mxu0
    %1812 = vmatprep.mubr.bf16.mxu0 %v925
    %1813 = vmatmul.mubr.bf16.gmra.mrb[0].mxu0 %v924
    %v1814 = vpop.f32.mrb[0].mxu0
    %v1815 = vadd.f32 %v748, %v1814
    %v1816 = vpop.f32.mrb[0].mxu0
    %v1817 = vpop.f32.mrb[0].mxu0
    %v1818 = vadd.f32 %v749, %v1817
    %v1819 = vpop.f32.mrb[0].mxu0
    %1820 = vmatprep.mubr.bf16.mxu0 %v927
    %1821 = vmatmul.mubr.bf16.gmra.mrb[0].mxu0 %v926
    %v1822 = vpop.f32.mrb[0].mxu0
    %v1823 = vadd.f32 %v750, %v1822
    %v1824 = vpop.f32.mrb[0].mxu0
    %v1825 = vpop.f32.mrb[0].mxu0
    %v1826 = vadd.f32 %v751, %v1825
    %v1827 = vpop.f32.mrb[0].mxu0
    %1828 = vdwg.mxu0
    %v1829 = vpack.c.bf16 %v1706, %v1703
    %v1830 = vpack.c.bf16 %v1714, %v1711
    %v1831 = vpack.c.bf16 %v1722, %v1719
    %v1832 = vpack.c.bf16 %v1730, %v1727
    %v1833 = vpack.c.bf16 %v1738, %v1735
    %v1834 = vpack.c.bf16 %v1746, %v1743
    %v1835 = vpack.c.bf16 %v1754, %v1751
    %v1836 = vpack.c.bf16 %v1762, %v1759
    %v1837 = vpack.c.bf16 %v1770, %v1767
    %v1838 = vpack.c.bf16 %v1778, %v1775
    %v1839 = vpack.c.bf16 %v1786, %v1783
    %v1840 = vpack.c.bf16 %v1794, %v1791
    %v1841 = vpack.c.bf16 %v1802, %v1799
    %v1842 = vpack.c.bf16 %v1810, %v1807
    %v1843 = vpack.c.bf16 %v1818, %v1815
    %v1844 = vpack.c.bf16 %v1826, %v1823
    %1845 = vmatprep.subr.bf16.mxu0 0
    %1846 = vmatpush1.bf16.msra.mxu0 %v1829
    %1847 = vmatprep.subr.bf16.mxu0 0
    %1848 = vmatpush1.bf16.msra.mxu0 %v1830
    %1849 = vmatprep.subr.bf16.mxu0 0
    %1850 = vmatpush1.bf16.msra.mxu0 %v1831
    %1851 = vmatprep.subr.bf16.mxu0 0
    %1852 = vmatpush1.bf16.msra.mxu0 %v1832
    %1853 = vmatprep.subr.bf16.mxu0 0
    %1854 = vmatpush1.bf16.msra.mxu0 %v1833
    %1855 = vmatprep.subr.bf16.mxu0 0
    %1856 = vmatpush1.bf16.msra.mxu0 %v1834
    %1857 = vmatprep.subr.bf16.mxu0 0
    %1858 = vmatpush1.bf16.msra.mxu0 %v1835
    %1859 = vmatprep.subr.bf16.mxu0 0
    %1860 = vmatpush1.bf16.msra.mxu0 %v1836
    %1861 = vmatprep.subr.bf16.mxu0 0
    %1862 = vmatpush1.bf16.msra.mxu0 %v1837
    %1863 = vmatprep.subr.bf16.mxu0 0
    %1864 = vmatpush1.bf16.msra.mxu0 %v1838
    %1865 = vmatprep.subr.bf16.mxu0 0
    %1866 = vmatpush1.bf16.msra.mxu0 %v1839
    %1867 = vmatprep.subr.bf16.mxu0 0
    %1868 = vmatpush1.bf16.msra.mxu0 %v1840
    %1869 = vmatprep.subr.bf16.mxu0 0
    %1870 = vmatpush1.bf16.msra.mxu0 %v1841
    %1871 = vmatprep.subr.bf16.mxu0 0
    %1872 = vmatpush1.bf16.msra.mxu0 %v1842
    %1873 = vmatprep.subr.bf16.mxu0 0
    %1874 = vmatpush1.bf16.msra.mxu0 %v1843
    %1875 = vmatprep.subr.bf16.mxu0 0
    %1876 = vmatpush1.bf16.msra.mxu0 %v1844
    %1877 = vmatprep.mubr.bf16.mxu0 %v897
    %1878 = vmatmul.mubr.bf16.gmra.mrb[0].mxu0 %v896
    %v1879 = vpop.f32.mrb[0].mxu0
    %v1880 = vadd.f32 %v720, %v1879
    %v1881 = vpop.f32.mrb[0].mxu0
    %v1882 = vpop.f32.mrb[0].mxu0
    %v1883 = vadd.f32 %v721, %v1882
    %v1884 = vpop.f32.mrb[0].mxu0
    %1885 = vmatprep.mubr.bf16.mxu0 %v899
    %1886 = vmatmul.mubr.bf16.gmra.mrb[0].mxu0 %v898
    %v1887 = vpop.f32.mrb[0].mxu0
    %v1888 = vadd.f32 %v722, %v1887
    %v1889 = vpop.f32.mrb[0].mxu0
    %v1890 = vpop.f32.mrb[0].mxu0
    %v1891 = vadd.f32 %v723, %v1890
    %v1892 = vpop.f32.mrb[0].mxu0
    %1893 = vmatprep.mubr.bf16.mxu0 %v901
    %1894 = vmatmul.mubr.bf16.gmra.mrb[0].mxu0 %v900
    %v1895 = vpop.f32.mrb[0].mxu0
    %v1896 = vadd.f32 %v724, %v1895
    %v1897 = vpop.f32.mrb[0].mxu0
    %v1898 = vpop.f32.mrb[0].mxu0
    %v1899 = vadd.f32 %v725, %v1898
    %v1900 = vpop.f32.mrb[0].mxu0
    %1901 = vmatprep.mubr.bf16.mxu0 %v903
    %1902 = vmatmul.mubr.bf16.gmra.mrb[0].mxu0 %v902
    %v1903 = vpop.f32.mrb[0].mxu0
    %v1904 = vadd.f32 %v726, %v1903
    %v1905 = vpop.f32.mrb[0].mxu0
    %v1906 = vpop.f32.mrb[0].mxu0
    %v1907 = vadd.f32 %v727, %v1906
    %v1908 = vpop.f32.mrb[0].mxu0
    %1909 = vmatprep.mubr.bf16.mxu0 %v905
    %1910 = vmatmul.mubr.bf16.gmra.mrb[0].mxu0 %v904
    %v1911 = vpop.f32.mrb[0].mxu0
    %v1912 = vadd.f32 %v728, %v1911
    %v1913 = vpop.f32.mrb[0].mxu0
    %v1914 = vpop.f32.mrb[0].mxu0
    %v1915 = vadd.f32 %v729, %v1914
    %v1916 = vpop.f32.mrb[0].mxu0
    %1917 = vmatprep.mubr.bf16.mxu0 %v907
    %1918 = vmatmul.mubr.bf16.gmra.mrb[0].mxu0 %v906
    %v1919 = vpop.f32.mrb[0].mxu0
    %v1920 = vadd.f32 %v730, %v1919
    %v1921 = vpop.f32.mrb[0].mxu0
    %v1922 = vpop.f32.mrb[0].mxu0
    %v1923 = vadd.f32 %v731, %v1922
    %v1924 = vpop.f32.mrb[0].mxu0
    %1925 = vmatprep.mubr.bf16.mxu0 %v909
    %1926 = vmatmul.mubr.bf16.gmra.mrb[0].mxu0 %v908
    %v1927 = vpop.f32.mrb[0].mxu0
    %v1928 = vadd.f32 %v732, %v1927
    %v1929 = vpop.f32.mrb[0].mxu0
    %v1930 = vpop.f32.mrb[0].mxu0
    %v1931 = vadd.f32 %v733, %v1930
    %v1932 = vpop.f32.mrb[0].mxu0
    %1933 = vmatprep.mubr.bf16.mxu0 %v911
    %1934 = vmatmul.mubr.bf16.gmra.mrb[0].mxu0 %v910
    %v1935 = vpop.f32.mrb[0].mxu0
    %v1936 = vadd.f32 %v734, %v1935
    %v1937 = vpop.f32.mrb[0].mxu0
    %v1938 = vpop.f32.mrb[0].mxu0
    %v1939 = vadd.f32 %v735, %v1938
    %v1940 = vpop.f32.mrb[0].mxu0
    %1941 = vmatprep.mubr.bf16.mxu0 %v913
    %1942 = vmatmul.mubr.bf16.gmra.mrb[0].mxu0 %v912
    %v1943 = vpop.f32.mrb[0].mxu0
    %v1944 = vadd.f32 %v736, %v1943
    %v1945 = vpop.f32.mrb[0].mxu0
    %v1946 = vpop.f32.mrb[0].mxu0
    %v1947 = vadd.f32 %v737, %v1946
    %v1948 = vpop.f32.mrb[0].mxu0
    %1949 = vmatprep.mubr.bf16.mxu0 %v915
    %1950 = vmatmul.mubr.bf16.gmra.mrb[0].mxu0 %v914
    %v1951 = vpop.f32.mrb[0].mxu0
    %v1952 = vadd.f32 %v738, %v1951
    %v1953 = vpop.f32.mrb[0].mxu0
    %v1954 = vpop.f32.mrb[0].mxu0
    %v1955 = vadd.f32 %v739, %v1954
    %v1956 = vpop.f32.mrb[0].mxu0
    %1957 = vmatprep.mubr.bf16.mxu0 %v917
    %1958 = vmatmul.mubr.bf16.gmra.mrb[0].mxu0 %v916
    %v1959 = vpop.f32.mrb[0].mxu0
    %v1960 = vadd.f32 %v740, %v1959
    %v1961 = vpop.f32.mrb[0].mxu0
    %v1962 = vpop.f32.mrb[0].mxu0
    %v1963 = vadd.f32 %v741, %v1962
    %v1964 = vpop.f32.mrb[0].mxu0
    %1965 = vmatprep.mubr.bf16.mxu0 %v919
    %1966 = vmatmul.mubr.bf16.gmra.mrb[0].mxu0 %v918
    %v1967 = vpop.f32.mrb[0].mxu0
    %v1968 = vadd.f32 %v742, %v1967
    %v1969 = vpop.f32.mrb[0].mxu0
    %v1970 = vpop.f32.mrb[0].mxu0
    %v1971 = vadd.f32 %v743, %v1970
    %v1972 = vpop.f32.mrb[0].mxu0
    %1973 = vmatprep.mubr.bf16.mxu0 %v921
    %1974 = vmatmul.mubr.bf16.gmra.mrb[0].mxu0 %v920
    %v1975 = vpop.f32.mrb[0].mxu0
    %v1976 = vadd.f32 %v744, %v1975
    %v1977 = vpop.f32.mrb[0].mxu0
    %v1978 = vpop.f32.mrb[0].mxu0
    %v1979 = vadd.f32 %v745, %v1978
    %v1980 = vpop.f32.mrb[0].mxu0
    %1981 = vmatprep.mubr.bf16.mxu0 %v923
    %1982 = vmatmul.mubr.bf16.gmra.mrb[0].mxu0 %v922
    %v1983 = vpop.f32.mrb[0].mxu0
    %v1984 = vadd.f32 %v746, %v1983
    %v1985 = vpop.f32.mrb[0].mxu0
    %v1986 = vpop.f32.mrb[0].mxu0
    %v1987 = vadd.f32 %v747, %v1986
    %v1988 = vpop.f32.mrb[0].mxu0
    %1989 = vmatprep.mubr.bf16.mxu0 %v925
    %1990 = vmatmul.mubr.bf16.gmra.mrb[0].mxu0 %v924
    %v1991 = vpop.f32.mrb[0].mxu0
    %v1992 = vadd.f32 %v748, %v1991
    %v1993 = vpop.f32.mrb[0].mxu0
    %v1994 = vpop.f32.mrb[0].mxu0
    %v1995 = vadd.f32 %v749, %v1994
    %v1996 = vpop.f32.mrb[0].mxu0
    %1997 = vmatprep.mubr.bf16.mxu0 %v927
    %1998 = vmatmul.mubr.bf16.gmra.mrb[0].mxu0 %v926
    %v1999 = vpop.f32.mrb[0].mxu0
    %v2000 = vadd.f32 %v750, %v1999
    %v2001 = vpop.f32.mrb[0].mxu0
    %v2002 = vpop.f32.mrb[0].mxu0
    %v2003 = vadd.f32 %v751, %v2002
    %v2004 = vpop.f32.mrb[0].mxu0
    %2005 = vdwg.mxu0
    %v2006 = vpack.c.bf16 %v1883, %v1880
    %v2007 = vpack.c.bf16 %v1891, %v1888
    %v2008 = vpack.c.bf16 %v1899, %v1896
    %v2009 = vpack.c.bf16 %v1907, %v1904
    %v2010 = vpack.c.bf16 %v1915, %v1912
    %v2011 = vpack.c.bf16 %v1923, %v1920
    %v2012 = vpack.c.bf16 %v1931, %v1928
    %v2013 = vpack.c.bf16 %v1939, %v1936
    %v2014 = vpack.c.bf16 %v1947, %v1944
    %v2015 = vpack.c.bf16 %v1955, %v1952
    %v2016 = vpack.c.bf16 %v1963, %v1960
    %v2017 = vpack.c.bf16 %v1971, %v1968
    %v2018 = vpack.c.bf16 %v1979, %v1976
    %v2019 = vpack.c.bf16 %v1987, %v1984
    %v2020 = vpack.c.bf16 %v1995, %v1992
    %v2021 = vpack.c.bf16 %v2003, %v2000
    %2022 = vmatprep.subr.bf16.mxu0 0
    %2023 = vmatpush1.bf16.msra.mxu0 %v2006
    %2024 = vmatprep.subr.bf16.mxu0 0
    %2025 = vmatpush1.bf16.msra.mxu0 %v2007
    %2026 = vmatprep.subr.bf16.mxu0 0
    %2027 = vmatpush1.bf16.msra.mxu0 %v2008
    %2028 = vmatprep.subr.bf16.mxu0 0
    %2029 = vmatpush1.bf16.msra.mxu0 %v2009
    %2030 = vmatprep.subr.bf16.mxu0 0
    %2031 = vmatpush1.bf16.msra.mxu0 %v2010
    %2032 = vmatprep.subr.bf16.mxu0 0
    %2033 = vmatpush1.bf16.msra.mxu0 %v2011
    %2034 = vmatprep.subr.bf16.mxu0 0
    %2035 = vmatpush1.bf16.msra.mxu0 %v2012
    %2036 = vmatprep.subr.bf16.mxu0 0
    %2037 = vmatpush1.bf16.msra.mxu0 %v2013
    %2038 = vmatprep.subr.bf16.mxu0 0
    %2039 = vmatpush1.bf16.msra.mxu0 %v2014
    %2040 = vmatprep.subr.bf16.mxu0 0
    %2041 = vmatpush1.bf16.msra.mxu0 %v2015
    %2042 = vmatprep.subr.bf16.mxu0 0
    %2043 = vmatpush1.bf16.msra.mxu0 %v2016
    %2044 = vmatprep.subr.bf16.mxu0 0
    %2045 = vmatpush1.bf16.msra.mxu0 %v2017
    %2046 = vmatprep.subr.bf16.mxu0 0
    %2047 = vmatpush1.bf16.msra.mxu0 %v2018
    %2048 = vmatprep.subr.bf16.mxu0 0
    %2049 = vmatpush1.bf16.msra.mxu0 %v2019
    %2050 = vmatprep.subr.bf16.mxu0 0
    %2051 = vmatpush1.bf16.msra.mxu0 %v2020
    %2052 = vmatprep.subr.bf16.mxu0 0
    %2053 = vmatpush1.bf16.msra.mxu0 %v2021
    %2054 = vmatprep.mubr.bf16.mxu0 %v897
    %2055 = vmatmul.mubr.bf16.gmra.mrb[0].mxu0 %v896
    %v2056 = vpop.f32.mrb[0].mxu0
    %v2057 = vadd.f32 %v720, %v2056
    %v2058 = vpop.f32.mrb[0].mxu0
    %v2059 = vpop.f32.mrb[0].mxu0
    %v2060 = vadd.f32 %v721, %v2059
    %v2061 = vpop.f32.mrb[0].mxu0
    %2062 = vmatprep.mubr.bf16.mxu0 %v899
    %2063 = vmatmul.mubr.bf16.gmra.mrb[0].mxu0 %v898
    %v2064 = vpop.f32.mrb[0].mxu0
    %v2065 = vadd.f32 %v722, %v2064
    %v2066 = vpop.f32.mrb[0].mxu0
    %v2067 = vpop.f32.mrb[0].mxu0
    %v2068 = vadd.f32 %v723, %v2067
    %v2069 = vpop.f32.mrb[0].mxu0
    %2070 = vmatprep.mubr.bf16.mxu0 %v901
    %2071 = vmatmul.mubr.bf16.gmra.mrb[0].mxu0 %v900
    %v2072 = vpop.f32.mrb[0].mxu0
    %v2073 = vadd.f32 %v724, %v2072
    %v2074 = vpop.f32.mrb[0].mxu0
    %v2075 = vpop.f32.mrb[0].mxu0
    %v2076 = vadd.f32 %v725, %v2075
    %v2077 = vpop.f32.mrb[0].mxu0
    %2078 = vmatprep.mubr.bf16.mxu0 %v903
    %2079 = vmatmul.mubr.bf16.gmra.mrb[0].mxu0 %v902
    %v2080 = vpop.f32.mrb[0].mxu0
    %v2081 = vadd.f32 %v726, %v2080
    %v2082 = vpop.f32.mrb[0].mxu0
    %v2083 = vpop.f32.mrb[0].mxu0
    %v2084 = vadd.f32 %v727, %v2083
    %v2085 = vpop.f32.mrb[0].mxu0
    %2086 = vmatprep.mubr.bf16.mxu0 %v905
    %2087 = vmatmul.mubr.bf16.gmra.mrb[0].mxu0 %v904
    %v2088 = vpop.f32.mrb[0].mxu0
    %v2089 = vadd.f32 %v728, %v2088
    %v2090 = vpop.f32.mrb[0].mxu0
    %v2091 = vpop.f32.mrb[0].mxu0
    %v2092 = vadd.f32 %v729, %v2091
    %v2093 = vpop.f32.mrb[0].mxu0
    %2094 = vmatprep.mubr.bf16.mxu0 %v907
    %2095 = vmatmul.mubr.bf16.gmra.mrb[0].mxu0 %v906
    %v2096 = vpop.f32.mrb[0].mxu0
    %v2097 = vadd.f32 %v730, %v2096
    %v2098 = vpop.f32.mrb[0].mxu0
    %v2099 = vpop.f32.mrb[0].mxu0
    %v2100 = vadd.f32 %v731, %v2099
    %v2101 = vpop.f32.mrb[0].mxu0
    %2102 = vmatprep.mubr.bf16.mxu0 %v909
    %2103 = vmatmul.mubr.bf16.gmra.mrb[0].mxu0 %v908
    %v2104 = vpop.f32.mrb[0].mxu0
    %v2105 = vadd.f32 %v732, %v2104
    %v2106 = vpop.f32.mrb[0].mxu0
    %v2107 = vpop.f32.mrb[0].mxu0
    %v2108 = vadd.f32 %v733, %v2107
    %v2109 = vpop.f32.mrb[0].mxu0
    %2110 = vmatprep.mubr.bf16.mxu0 %v911
    %2111 = vmatmul.mubr.bf16.gmra.mrb[0].mxu0 %v910
    %v2112 = vpop.f32.mrb[0].mxu0
    %v2113 = vadd.f32 %v734, %v2112
    %v2114 = vpop.f32.mrb[0].mxu0
    %v2115 = vpop.f32.mrb[0].mxu0
    %v2116 = vadd.f32 %v735, %v2115
    %v2117 = vpop.f32.mrb[0].mxu0
    %2118 = vmatprep.mubr.bf16.mxu0 %v913
    %2119 = vmatmul.mubr.bf16.gmra.mrb[0].mxu0 %v912
    %v2120 = vpop.f32.mrb[0].mxu0
    %v2121 = vadd.f32 %v736, %v2120
    %v2122 = vpop.f32.mrb[0].mxu0
    %v2123 = vpop.f32.mrb[0].mxu0
    %v2124 = vadd.f32 %v737, %v2123
    %v2125 = vpop.f32.mrb[0].mxu0
    %2126 = vmatprep.mubr.bf16.mxu0 %v915
    %2127 = vmatmul.mubr.bf16.gmra.mrb[0].mxu0 %v914
    %v2128 = vpop.f32.mrb[0].mxu0
    %v2129 = vadd.f32 %v738, %v2128
    %v2130 = vpop.f32.mrb[0].mxu0
    %v2131 = vpop.f32.mrb[0].mxu0
    %v2132 = vadd.f32 %v739, %v2131
    %v2133 = vpop.f32.mrb[0].mxu0
    %2134 = vmatprep.mubr.bf16.mxu0 %v917
    %2135 = vmatmul.mubr.bf16.gmra.mrb[0].mxu0 %v916
    %v2136 = vpop.f32.mrb[0].mxu0
    %v2137 = vadd.f32 %v740, %v2136
    %v2138 = vpop.f32.mrb[0].mxu0
    %v2139 = vpop.f32.mrb[0].mxu0
    %v2140 = vadd.f32 %v741, %v2139
    %v2141 = vpop.f32.mrb[0].mxu0
    %2142 = vmatprep.mubr.bf16.mxu0 %v919
    %2143 = vmatmul.mubr.bf16.gmra.mrb[0].mxu0 %v918
    %v2144 = vpop.f32.mrb[0].mxu0
    %v2145 = vadd.f32 %v742, %v2144
    %v2146 = vpop.f32.mrb[0].mxu0
    %v2147 = vpop.f32.mrb[0].mxu0
    %v2148 = vadd.f32 %v743, %v2147
    %v2149 = vpop.f32.mrb[0].mxu0
    %2150 = vmatprep.mubr.bf16.mxu0 %v921
    %2151 = vmatmul.mubr.bf16.gmra.mrb[0].mxu0 %v920
    %v2152 = vpop.f32.mrb[0].mxu0
    %v2153 = vadd.f32 %v744, %v2152
    %v2154 = vpop.f32.mrb[0].mxu0
    %v2155 = vpop.f32.mrb[0].mxu0
    %v2156 = vadd.f32 %v745, %v2155
    %v2157 = vpop.f32.mrb[0].mxu0
    %2158 = vmatprep.mubr.bf16.mxu0 %v923
    %2159 = vmatmul.mubr.bf16.gmra.mrb[0].mxu0 %v922
    %v2160 = vpop.f32.mrb[0].mxu0
    %v2161 = vadd.f32 %v746, %v2160
    %v2162 = vpop.f32.mrb[0].mxu0
    %v2163 = vpop.f32.mrb[0].mxu0
    %v2164 = vadd.f32 %v747, %v2163
    %v2165 = vpop.f32.mrb[0].mxu0
    %2166 = vmatprep.mubr.bf16.mxu0 %v925
    %2167 = vmatmul.mubr.bf16.gmra.mrb[0].mxu0 %v924
    %v2168 = vpop.f32.mrb[0].mxu0
    %v2169 = vadd.f32 %v748, %v2168
    %v2170 = vpop.f32.mrb[0].mxu0
    %v2171 = vpop.f32.mrb[0].mxu0
    %v2172 = vadd.f32 %v749, %v2171
    %v2173 = vpop.f32.mrb[0].mxu0
    %2174 = vmatprep.mubr.bf16.mxu0 %v927
    %2175 = vmatmul.mubr.bf16.gmra.mrb[0].mxu0 %v926
    %v2176 = vpop.f32.mrb[0].mxu0
    %v2177 = vadd.f32 %v750, %v2176
    %v2178 = vpop.f32.mrb[0].mxu0
    %v2179 = vpop.f32.mrb[0].mxu0
    %v2180 = vadd.f32 %v751, %v2179
    %v2181 = vpop.f32.mrb[0].mxu0
    %2182 = vdwg.mxu0
    %v2183 = vpack.c.bf16 %v2060, %v2057
    %v2184 = vpack.c.bf16 %v2068, %v2065
    %v2185 = vpack.c.bf16 %v2076, %v2073
    %v2186 = vpack.c.bf16 %v2084, %v2081
    %v2187 = vpack.c.bf16 %v2092, %v2089
    %v2188 = vpack.c.bf16 %v2100, %v2097
    %v2189 = vpack.c.bf16 %v2108, %v2105
    %v2190 = vpack.c.bf16 %v2116, %v2113
    %v2191 = vpack.c.bf16 %v2124, %v2121
    %v2192 = vpack.c.bf16 %v2132, %v2129
    %v2193 = vpack.c.bf16 %v2140, %v2137
    %v2194 = vpack.c.bf16 %v2148, %v2145
    %v2195 = vpack.c.bf16 %v2156, %v2153
    %v2196 = vpack.c.bf16 %v2164, %v2161
    %v2197 = vpack.c.bf16 %v2172, %v2169
    %v2198 = vpack.c.bf16 %v2180, %v2177
    %2199 = vmatprep.subr.bf16.mxu0 0
    %2200 = vmatpush1.bf16.msra.mxu0 %v2183
    %2201 = vmatprep.subr.bf16.mxu0 0
    %2202 = vmatpush1.bf16.msra.mxu0 %v2184
    %2203 = vmatprep.subr.bf16.mxu0 0
    %2204 = vmatpush1.bf16.msra.mxu0 %v2185
    %2205 = vmatprep.subr.bf16.mxu0 0
    %2206 = vmatpush1.bf16.msra.mxu0 %v2186
    %2207 = vmatprep.subr.bf16.mxu0 0
    %2208 = vmatpush1.bf16.msra.mxu0 %v2187
    %2209 = vmatprep.subr.bf16.mxu0 0
    %2210 = vmatpush1.bf16.msra.mxu0 %v2188
    %2211 = vmatprep.subr.bf16.mxu0 0
    %2212 = vmatpush1.bf16.msra.mxu0 %v2189
    %2213 = vmatprep.subr.bf16.mxu0 0
    %2214 = vmatpush1.bf16.msra.mxu0 %v2190
    %2215 = vmatprep.subr.bf16.mxu0 0
    %2216 = vmatpush1.bf16.msra.mxu0 %v2191
    %2217 = vmatprep.subr.bf16.mxu0 0
    %2218 = vmatpush1.bf16.msra.mxu0 %v2192
    %2219 = vmatprep.subr.bf16.mxu0 0
    %2220 = vmatpush1.bf16.msra.mxu0 %v2193
    %2221 = vmatprep.subr.bf16.mxu0 0
    %2222 = vmatpush1.bf16.msra.mxu0 %v2194
    %2223 = vmatprep.subr.bf16.mxu0 0
    %2224 = vmatpush1.bf16.msra.mxu0 %v2195
    %2225 = vmatprep.subr.bf16.mxu0 0
    %2226 = vmatpush1.bf16.msra.mxu0 %v2196
    %2227 = vmatprep.subr.bf16.mxu0 0
    %2228 = vmatpush1.bf16.msra.mxu0 %v2197
    %2229 = vmatprep.subr.bf16.mxu0 0
    %2230 = vmatpush1.bf16.msra.mxu0 %v2198
    %2231 = vmatprep.mubr.bf16.mxu0 %v897
    %2232 = vmatmul.mubr.bf16.gmra.mrb[0].mxu0 %v896
    %v2233 = vpop.f32.mrb[0].mxu0
    %v2234 = vadd.f32 %v720, %v2233
    %v2235 = vpop.f32.mrb[0].mxu0
    %v2236 = vpop.f32.mrb[0].mxu0
    %v2237 = vadd.f32 %v721, %v2236
    %v2238 = vpop.f32.mrb[0].mxu0
    %2239 = vmatprep.mubr.bf16.mxu0 %v899
    %2240 = vmatmul.mubr.bf16.gmra.mrb[0].mxu0 %v898
    %v2241 = vpop.f32.mrb[0].mxu0
    %v2242 = vadd.f32 %v722, %v2241
    %v2243 = vpop.f32.mrb[0].mxu0
    %v2244 = vpop.f32.mrb[0].mxu0
    %v2245 = vadd.f32 %v723, %v2244
    %v2246 = vpop.f32.mrb[0].mxu0
    %2247 = vmatprep.mubr.bf16.mxu0 %v901
    %2248 = vmatmul.mubr.bf16.gmra.mrb[0].mxu0 %v900
    %v2249 = vpop.f32.mrb[0].mxu0
    %v2250 = vadd.f32 %v724, %v2249
    %v2251 = vpop.f32.mrb[0].mxu0
    %v2252 = vpop.f32.mrb[0].mxu0
    %v2253 = vadd.f32 %v725, %v2252
    %v2254 = vpop.f32.mrb[0].mxu0
    %2255 = vmatprep.mubr.bf16.mxu0 %v903
    %2256 = vmatmul.mubr.bf16.gmra.mrb[0].mxu0 %v902
    %v2257 = vpop.f32.mrb[0].mxu0
    %v2258 = vadd.f32 %v726, %v2257
    %v2259 = vpop.f32.mrb[0].mxu0
    %v2260 = vpop.f32.mrb[0].mxu0
    %v2261 = vadd.f32 %v727, %v2260
    %v2262 = vpop.f32.mrb[0].mxu0
    %2263 = vmatprep.mubr.bf16.mxu0 %v905
    %2264 = vmatmul.mubr.bf16.gmra.mrb[0].mxu0 %v904
    %v2265 = vpop.f32.mrb[0].mxu0
    %v2266 = vadd.f32 %v728, %v2265
    %v2267 = vpop.f32.mrb[0].mxu0
    %v2268 = vpop.f32.mrb[0].mxu0
    %v2269 = vadd.f32 %v729, %v2268
    %v2270 = vpop.f32.mrb[0].mxu0
    %2271 = vmatprep.mubr.bf16.mxu0 %v907
    %2272 = vmatmul.mubr.bf16.gmra.mrb[0].mxu0 %v906
    %v2273 = vpop.f32.mrb[0].mxu0
    %v2274 = vadd.f32 %v730, %v2273
    %v2275 = vpop.f32.mrb[0].mxu0
    %v2276 = vpop.f32.mrb[0].mxu0
    %v2277 = vadd.f32 %v731, %v2276
    %v2278 = vpop.f32.mrb[0].mxu0
    %2279 = vmatprep.mubr.bf16.mxu0 %v909
    %2280 = vmatmul.mubr.bf16.gmra.mrb[0].mxu0 %v908
    %v2281 = vpop.f32.mrb[0].mxu0
    %v2282 = vadd.f32 %v732, %v2281
    %v2283 = vpop.f32.mrb[0].mxu0
    %v2284 = vpop.f32.mrb[0].mxu0
    %v2285 = vadd.f32 %v733, %v2284
    %v2286 = vpop.f32.mrb[0].mxu0
    %2287 = vmatprep.mubr.bf16.mxu0 %v911
    %2288 = vmatmul.mubr.bf16.gmra.mrb[0].mxu0 %v910
    %v2289 = vpop.f32.mrb[0].mxu0
    %v2290 = vadd.f32 %v734, %v2289
    %v2291 = vpop.f32.mrb[0].mxu0
    %v2292 = vpop.f32.mrb[0].mxu0
    %v2293 = vadd.f32 %v735, %v2292
    %v2294 = vpop.f32.mrb[0].mxu0
    %2295 = vmatprep.mubr.bf16.mxu0 %v913
    %2296 = vmatmul.mubr.bf16.gmra.mrb[0].mxu0 %v912
    %v2297 = vpop.f32.mrb[0].mxu0
    %v2298 = vadd.f32 %v736, %v2297
    %v2299 = vpop.f32.mrb[0].mxu0
    %v2300 = vpop.f32.mrb[0].mxu0
    %v2301 = vadd.f32 %v737, %v2300
    %v2302 = vpop.f32.mrb[0].mxu0
    %2303 = vmatprep.mubr.bf16.mxu0 %v915
    %2304 = vmatmul.mubr.bf16.gmra.mrb[0].mxu0 %v914
    %v2305 = vpop.f32.mrb[0].mxu0
    %v2306 = vadd.f32 %v738, %v2305
    %v2307 = vpop.f32.mrb[0].mxu0
    %v2308 = vpop.f32.mrb[0].mxu0
    %v2309 = vadd.f32 %v739, %v2308
    %v2310 = vpop.f32.mrb[0].mxu0
    %2311 = vmatprep.mubr.bf16.mxu0 %v917
    %2312 = vmatmul.mubr.bf16.gmra.mrb[0].mxu0 %v916
    %v2313 = vpop.f32.mrb[0].mxu0
    %v2314 = vadd.f32 %v740, %v2313
    %v2315 = vpop.f32.mrb[0].mxu0
    %v2316 = vpop.f32.mrb[0].mxu0
    %v2317 = vadd.f32 %v741, %v2316
    %v2318 = vpop.f32.mrb[0].mxu0
    %2319 = vmatprep.mubr.bf16.mxu0 %v919
    %2320 = vmatmul.mubr.bf16.gmra.mrb[0].mxu0 %v918
    %v2321 = vpop.f32.mrb[0].mxu0
    %v2322 = vadd.f32 %v742, %v2321
    %v2323 = vpop.f32.mrb[0].mxu0
    %v2324 = vpop.f32.mrb[0].mxu0
    %v2325 = vadd.f32 %v743, %v2324
    %v2326 = vpop.f32.mrb[0].mxu0
    %2327 = vmatprep.mubr.bf16.mxu0 %v921
    %2328 = vmatmul.mubr.bf16.gmra.mrb[0].mxu0 %v920
    %v2329 = vpop.f32.mrb[0].mxu0
    %v2330 = vadd.f32 %v744, %v2329
    %v2331 = vpop.f32.mrb[0].mxu0
    %v2332 = vpop.f32.mrb[0].mxu0
    %v2333 = vadd.f32 %v745, %v2332
    %v2334 = vpop.f32.mrb[0].mxu0
    %2335 = vmatprep.mubr.bf16.mxu0 %v923
    %2336 = vmatmul.mubr.bf16.gmra.mrb[0].mxu0 %v922
    %v2337 = vpop.f32.mrb[0].mxu0
    %v2338 = vadd.f32 %v746, %v2337
    %v2339 = vpop.f32.mrb[0].mxu0
    %v2340 = vpop.f32.mrb[0].mxu0
    %v2341 = vadd.f32 %v747, %v2340
    %v2342 = vpop.f32.mrb[0].mxu0
    %2343 = vmatprep.mubr.bf16.mxu0 %v925
    %2344 = vmatmul.mubr.bf16.gmra.mrb[0].mxu0 %v924
    %v2345 = vpop.f32.mrb[0].mxu0
    %v2346 = vadd.f32 %v748, %v2345
    %v2347 = vpop.f32.mrb[0].mxu0
    %v2348 = vpop.f32.mrb[0].mxu0
    %v2349 = vadd.f32 %v749, %v2348
    %v2350 = vpop.f32.mrb[0].mxu0
    %2351 = vmatprep.mubr.bf16.mxu0 %v927
    %2352 = vmatmul.mubr.bf16.gmra.mrb[0].mxu0 %v926
    %v2353 = vpop.f32.mrb[0].mxu0
    %v2354 = vadd.f32 %v750, %v2353
    %v2355 = vpop.f32.mrb[0].mxu0
    %v2356 = vpop.f32.mrb[0].mxu0
    %v2357 = vadd.f32 %v751, %v2356
    %v2358 = vpop.f32.mrb[0].mxu0
    %2359 = vdwg.mxu0
    %v2360 = vpack.c.bf16 %v2237, %v2234
    %v2361 = vpack.c.bf16 %v2245, %v2242
    %v2362 = vpack.c.bf16 %v2253, %v2250
    %v2363 = vpack.c.bf16 %v2261, %v2258
    %v2364 = vpack.c.bf16 %v2269, %v2266
    %v2365 = vpack.c.bf16 %v2277, %v2274
    %v2366 = vpack.c.bf16 %v2285, %v2282
    %v2367 = vpack.c.bf16 %v2293, %v2290
    %v2368 = vpack.c.bf16 %v2301, %v2298
    %v2369 = vpack.c.bf16 %v2309, %v2306
    %v2370 = vpack.c.bf16 %v2317, %v2314
    %v2371 = vpack.c.bf16 %v2325, %v2322
    %v2372 = vpack.c.bf16 %v2333, %v2330
    %v2373 = vpack.c.bf16 %v2341, %v2338
    %v2374 = vpack.c.bf16 %v2349, %v2346
    %v2375 = vpack.c.bf16 %v2357, %v2354
    %2376 = vmatprep.subr.bf16.mxu0 0
    %2377 = vmatpush1.bf16.msra.mxu0 %v2360
    %2378 = vmatprep.subr.bf16.mxu0 0
    %2379 = vmatpush1.bf16.msra.mxu0 %v2361
    %2380 = vmatprep.subr.bf16.mxu0 0
    %2381 = vmatpush1.bf16.msra.mxu0 %v2362
    %2382 = vmatprep.subr.bf16.mxu0 0
    %2383 = vmatpush1.bf16.msra.mxu0 %v2363
    %2384 = vmatprep.subr.bf16.mxu0 0
    %2385 = vmatpush1.bf16.msra.mxu0 %v2364
    %2386 = vmatprep.subr.bf16.mxu0 0
    %2387 = vmatpush1.bf16.msra.mxu0 %v2365
    %2388 = vmatprep.subr.bf16.mxu0 0
    %2389 = vmatpush1.bf16.msra.mxu0 %v2366
    %2390 = vmatprep.subr.bf16.mxu0 0
    %2391 = vmatpush1.bf16.msra.mxu0 %v2367
    %2392 = vmatprep.subr.bf16.mxu0 0
    %2393 = vmatpush1.bf16.msra.mxu0 %v2368
    %2394 = vmatprep.subr.bf16.mxu0 0
    %2395 = vmatpush1.bf16.msra.mxu0 %v2369
    %2396 = vmatprep.subr.bf16.mxu0 0
    %2397 = vmatpush1.bf16.msra.mxu0 %v2370
    %2398 = vmatprep.subr.bf16.mxu0 0
    %2399 = vmatpush1.bf16.msra.mxu0 %v2371
    %2400 = vmatprep.subr.bf16.mxu0 0
    %2401 = vmatpush1.bf16.msra.mxu0 %v2372
    %2402 = vmatprep.subr.bf16.mxu0 0
    %2403 = vmatpush1.bf16.msra.mxu0 %v2373
    %2404 = vmatprep.subr.bf16.mxu0 0
    %2405 = vmatpush1.bf16.msra.mxu0 %v2374
    %2406 = vmatprep.subr.bf16.mxu0 0
    %2407 = vmatpush1.bf16.msra.mxu0 %v2375
    %2408 = vmatprep.mubr.bf16.mxu0 %v897
    %2409 = vmatmul.mubr.bf16.gmra.mrb[0].mxu0 %v896
    %v2410 = vpop.f32.mrb[0].mxu0
    %v2411 = vadd.f32 %v720, %v2410
    %v2412 = vpop.f32.mrb[0].mxu0
    %v2413 = vpop.f32.mrb[0].mxu0
    %v2414 = vadd.f32 %v721, %v2413
    %v2415 = vpop.f32.mrb[0].mxu0
    %2416 = vmatprep.mubr.bf16.mxu0 %v899
    %2417 = vmatmul.mubr.bf16.gmra.mrb[0].mxu0 %v898
    %v2418 = vpop.f32.mrb[0].mxu0
    %v2419 = vadd.f32 %v722, %v2418
    %v2420 = vpop.f32.mrb[0].mxu0
    %v2421 = vpop.f32.mrb[0].mxu0
    %v2422 = vadd.f32 %v723, %v2421
    %v2423 = vpop.f32.mrb[0].mxu0
    %2424 = vmatprep.mubr.bf16.mxu0 %v901
    %2425 = vmatmul.mubr.bf16.gmra.mrb[0].mxu0 %v900
    %v2426 = vpop.f32.mrb[0].mxu0
    %v2427 = vadd.f32 %v724, %v2426
    %v2428 = vpop.f32.mrb[0].mxu0
    %v2429 = vpop.f32.mrb[0].mxu0
    %v2430 = vadd.f32 %v725, %v2429
    %v2431 = vpop.f32.mrb[0].mxu0
    %2432 = vmatprep.mubr.bf16.mxu0 %v903
    %2433 = vmatmul.mubr.bf16.gmra.mrb[0].mxu0 %v902
    %v2434 = vpop.f32.mrb[0].mxu0
    %v2435 = vadd.f32 %v726, %v2434
    %v2436 = vpop.f32.mrb[0].mxu0
    %v2437 = vpop.f32.mrb[0].mxu0
    %v2438 = vadd.f32 %v727, %v2437
    %v2439 = vpop.f32.mrb[0].mxu0
    %2440 = vmatprep.mubr.bf16.mxu0 %v905
    %2441 = vmatmul.mubr.bf16.gmra.mrb[0].mxu0 %v904
    %v2442 = vpop.f32.mrb[0].mxu0
    %v2443 = vadd.f32 %v728, %v2442
    %v2444 = vpop.f32.mrb[0].mxu0
    %v2445 = vpop.f32.mrb[0].mxu0
    %v2446 = vadd.f32 %v729, %v2445
    %v2447 = vpop.f32.mrb[0].mxu0
    %2448 = vmatprep.mubr.bf16.mxu0 %v907
    %2449 = vmatmul.mubr.bf16.gmra.mrb[0].mxu0 %v906
    %v2450 = vpop.f32.mrb[0].mxu0
    %v2451 = vadd.f32 %v730, %v2450
    %v2452 = vpop.f32.mrb[0].mxu0
    %v2453 = vpop.f32.mrb[0].mxu0
    %v2454 = vadd.f32 %v731, %v2453
    %v2455 = vpop.f32.mrb[0].mxu0
    %2456 = vmatprep.mubr.bf16.mxu0 %v909
    %2457 = vmatmul.mubr.bf16.gmra.mrb[0].mxu0 %v908
    %v2458 = vpop.f32.mrb[0].mxu0
    %v2459 = vadd.f32 %v732, %v2458
    %v2460 = vpop.f32.mrb[0].mxu0
    %v2461 = vpop.f32.mrb[0].mxu0
    %v2462 = vadd.f32 %v733, %v2461
    %v2463 = vpop.f32.mrb[0].mxu0
    %2464 = vmatprep.mubr.bf16.mxu0 %v911
    %2465 = vmatmul.mubr.bf16.gmra.mrb[0].mxu0 %v910
    %v2466 = vpop.f32.mrb[0].mxu0
    %v2467 = vadd.f32 %v734, %v2466
    %v2468 = vpop.f32.mrb[0].mxu0
    %v2469 = vpop.f32.mrb[0].mxu0
    %v2470 = vadd.f32 %v735, %v2469
    %v2471 = vpop.f32.mrb[0].mxu0
    %2472 = vmatprep.mubr.bf16.mxu0 %v913
    %2473 = vmatmul.mubr.bf16.gmra.mrb[0].mxu0 %v912
    %v2474 = vpop.f32.mrb[0].mxu0
    %v2475 = vadd.f32 %v736, %v2474
    %v2476 = vpop.f32.mrb[0].mxu0
    %v2477 = vpop.f32.mrb[0].mxu0
    %v2478 = vadd.f32 %v737, %v2477
    %v2479 = vpop.f32.mrb[0].mxu0
    %2480 = vmatprep.mubr.bf16.mxu0 %v915
    %2481 = vmatmul.mubr.bf16.gmra.mrb[0].mxu0 %v914
    %v2482 = vpop.f32.mrb[0].mxu0
    %v2483 = vadd.f32 %v738, %v2482
    %v2484 = vpop.f32.mrb[0].mxu0
    %v2485 = vpop.f32.mrb[0].mxu0
    %v2486 = vadd.f32 %v739, %v2485
    %v2487 = vpop.f32.mrb[0].mxu0
    %2488 = vmatprep.mubr.bf16.mxu0 %v917
    %2489 = vmatmul.mubr.bf16.gmra.mrb[0].mxu0 %v916
    %v2490 = vpop.f32.mrb[0].mxu0
    %v2491 = vadd.f32 %v740, %v2490
    %v2492 = vpop.f32.mrb[0].mxu0
    %v2493 = vpop.f32.mrb[0].mxu0
    %v2494 = vadd.f32 %v741, %v2493
    %v2495 = vpop.f32.mrb[0].mxu0
    %2496 = vmatprep.mubr.bf16.mxu0 %v919
    %2497 = vmatmul.mubr.bf16.gmra.mrb[0].mxu0 %v918
    %v2498 = vpop.f32.mrb[0].mxu0
    %v2499 = vadd.f32 %v742, %v2498
    %v2500 = vpop.f32.mrb[0].mxu0
    %v2501 = vpop.f32.mrb[0].mxu0
    %v2502 = vadd.f32 %v743, %v2501
    %v2503 = vpop.f32.mrb[0].mxu0
    %2504 = vmatprep.mubr.bf16.mxu0 %v921
    %2505 = vmatmul.mubr.bf16.gmra.mrb[0].mxu0 %v920
    %v2506 = vpop.f32.mrb[0].mxu0
    %v2507 = vadd.f32 %v744, %v2506
    %v2508 = vpop.f32.mrb[0].mxu0
    %v2509 = vpop.f32.mrb[0].mxu0
    %v2510 = vadd.f32 %v745, %v2509
    %v2511 = vpop.f32.mrb[0].mxu0
    %2512 = vmatprep.mubr.bf16.mxu0 %v923
    %2513 = vmatmul.mubr.bf16.gmra.mrb[0].mxu0 %v922
    %v2514 = vpop.f32.mrb[0].mxu0
    %v2515 = vadd.f32 %v746, %v2514
    %v2516 = vpop.f32.mrb[0].mxu0
    %v2517 = vpop.f32.mrb[0].mxu0
    %v2518 = vadd.f32 %v747, %v2517
    %v2519 = vpop.f32.mrb[0].mxu0
    %2520 = vmatprep.mubr.bf16.mxu0 %v925
    %2521 = vmatmul.mubr.bf16.gmra.mrb[0].mxu0 %v924
    %v2522 = vpop.f32.mrb[0].mxu0
    %v2523 = vadd.f32 %v748, %v2522
    %v2524 = vpop.f32.mrb[0].mxu0
    %v2525 = vpop.f32.mrb[0].mxu0
    %v2526 = vadd.f32 %v749, %v2525
    %v2527 = vpop.f32.mrb[0].mxu0
    %2528 = vmatprep.mubr.bf16.mxu0 %v927
    %2529 = vmatmul.mubr.bf16.gmra.mrb[0].mxu0 %v926
    %v2530 = vpop.f32.mrb[0].mxu0
    %v2531 = vadd.f32 %v750, %v2530
    %v2532 = vpop.f32.mrb[0].mxu0
    %v2533 = vpop.f32.mrb[0].mxu0
    %v2534 = vadd.f32 %v751, %v2533
    %v2535 = vpop.f32.mrb[0].mxu0
    %2536 = vdwg.mxu0
    %v2537 = vpack.c.bf16 %v2414, %v2411
    %v2538 = vpack.c.bf16 %v2422, %v2419
    %v2539 = vpack.c.bf16 %v2430, %v2427
    %v2540 = vpack.c.bf16 %v2438, %v2435
    %v2541 = vpack.c.bf16 %v2446, %v2443
    %v2542 = vpack.c.bf16 %v2454, %v2451
    %v2543 = vpack.c.bf16 %v2462, %v2459
    %v2544 = vpack.c.bf16 %v2470, %v2467
    %v2545 = vpack.c.bf16 %v2478, %v2475
    %v2546 = vpack.c.bf16 %v2486, %v2483
    %v2547 = vpack.c.bf16 %v2494, %v2491
    %v2548 = vpack.c.bf16 %v2502, %v2499
    %v2549 = vpack.c.bf16 %v2510, %v2507
    %v2550 = vpack.c.bf16 %v2518, %v2515
    %v2551 = vpack.c.bf16 %v2526, %v2523
    %v2552 = vpack.c.bf16 %v2534, %v2531
    %2553 = vmatprep.subr.bf16.mxu0 0
    %2554 = vmatpush1.bf16.msra.mxu0 %v2537
    %2555 = vmatprep.subr.bf16.mxu0 0
    %2556 = vmatpush1.bf16.msra.mxu0 %v2538
    %2557 = vmatprep.subr.bf16.mxu0 0
    %2558 = vmatpush1.bf16.msra.mxu0 %v2539
    %2559 = vmatprep.subr.bf16.mxu0 0
    %2560 = vmatpush1.bf16.msra.mxu0 %v2540
    %2561 = vmatprep.subr.bf16.mxu0 0
    %2562 = vmatpush1.bf16.msra.mxu0 %v2541
    %2563 = vmatprep.subr.bf16.mxu0 0
    %2564 = vmatpush1.bf16.msra.mxu0 %v2542
    %2565 = vmatprep.subr.bf16.mxu0 0
    %2566 = vmatpush1.bf16.msra.mxu0 %v2543
    %2567 = vmatprep.subr.bf16.mxu0 0
    %2568 = vmatpush1.bf16.msra.mxu0 %v2544
    %2569 = vmatprep.subr.bf16.mxu0 0
    %2570 = vmatpush1.bf16.msra.mxu0 %v2545
    %2571 = vmatprep.subr.bf16.mxu0 0
    %2572 = vmatpush1.bf16.msra.mxu0 %v2546
    %2573 = vmatprep.subr.bf16.mxu0 0
    %2574 = vmatpush1.bf16.msra.mxu0 %v2547
    %2575 = vmatprep.subr.bf16.mxu0 0
    %2576 = vmatpush1.bf16.msra.mxu0 %v2548
    %2577 = vmatprep.subr.bf16.mxu0 0
    %2578 = vmatpush1.bf16.msra.mxu0 %v2549
    %2579 = vmatprep.subr.bf16.mxu0 0
    %2580 = vmatpush1.bf16.msra.mxu0 %v2550
    %2581 = vmatprep.subr.bf16.mxu0 0
    %2582 = vmatpush1.bf16.msra.mxu0 %v2551
    %2583 = vmatprep.subr.bf16.mxu0 0
    %2584 = vmatpush1.bf16.msra.mxu0 %v2552
    %2585 = vmatprep.mubr.bf16.mxu0 %v897
    %2586 = vmatmul.mubr.bf16.gmra.mrb[0].mxu0 %v896
    %v2587 = vpop.f32.mrb[0].mxu0
    %v2588 = vadd.f32 %v720, %v2587
    %v2589 = vpop.f32.mrb[0].mxu0
    %v2590 = vpop.f32.mrb[0].mxu0
    %v2591 = vadd.f32 %v721, %v2590
    %v2592 = vpop.f32.mrb[0].mxu0
    %2593 = vmatprep.mubr.bf16.mxu0 %v899
    %2594 = vmatmul.mubr.bf16.gmra.mrb[0].mxu0 %v898
    %v2595 = vpop.f32.mrb[0].mxu0
    %v2596 = vadd.f32 %v722, %v2595
    %v2597 = vpop.f32.mrb[0].mxu0
    %v2598 = vpop.f32.mrb[0].mxu0
    %v2599 = vadd.f32 %v723, %v2598
    %v2600 = vpop.f32.mrb[0].mxu0
    %2601 = vmatprep.mubr.bf16.mxu0 %v901
    %2602 = vmatmul.mubr.bf16.gmra.mrb[0].mxu0 %v900
    %v2603 = vpop.f32.mrb[0].mxu0
    %v2604 = vadd.f32 %v724, %v2603
    %v2605 = vpop.f32.mrb[0].mxu0
    %v2606 = vpop.f32.mrb[0].mxu0
    %v2607 = vadd.f32 %v725, %v2606
    %v2608 = vpop.f32.mrb[0].mxu0
    %2609 = vmatprep.mubr.bf16.mxu0 %v903
    %2610 = vmatmul.mubr.bf16.gmra.mrb[0].mxu0 %v902
    %v2611 = vpop.f32.mrb[0].mxu0
    %v2612 = vadd.f32 %v726, %v2611
    %v2613 = vpop.f32.mrb[0].mxu0
    %v2614 = vpop.f32.mrb[0].mxu0
    %v2615 = vadd.f32 %v727, %v2614
    %v2616 = vpop.f32.mrb[0].mxu0
    %2617 = vmatprep.mubr.bf16.mxu0 %v905
    %2618 = vmatmul.mubr.bf16.gmra.mrb[0].mxu0 %v904
    %v2619 = vpop.f32.mrb[0].mxu0
    %v2620 = vadd.f32 %v728, %v2619
    %v2621 = vpop.f32.mrb[0].mxu0
    %v2622 = vpop.f32.mrb[0].mxu0
    %v2623 = vadd.f32 %v729, %v2622
    %v2624 = vpop.f32.mrb[0].mxu0
    %2625 = vmatprep.mubr.bf16.mxu0 %v907
    %2626 = vmatmul.mubr.bf16.gmra.mrb[0].mxu0 %v906
    %v2627 = vpop.f32.mrb[0].mxu0
    %v2628 = vadd.f32 %v730, %v2627
    %v2629 = vpop.f32.mrb[0].mxu0
    %v2630 = vpop.f32.mrb[0].mxu0
    %v2631 = vadd.f32 %v731, %v2630
    %v2632 = vpop.f32.mrb[0].mxu0
    %2633 = vmatprep.mubr.bf16.mxu0 %v909
    %2634 = vmatmul.mubr.bf16.gmra.mrb[0].mxu0 %v908
    %v2635 = vpop.f32.mrb[0].mxu0
    %v2636 = vadd.f32 %v732, %v2635
    %v2637 = vpop.f32.mrb[0].mxu0
    %v2638 = vpop.f32.mrb[0].mxu0
    %v2639 = vadd.f32 %v733, %v2638
    %v2640 = vpop.f32.mrb[0].mxu0
    %2641 = vmatprep.mubr.bf16.mxu0 %v911
    %2642 = vmatmul.mubr.bf16.gmra.mrb[0].mxu0 %v910
    %v2643 = vpop.f32.mrb[0].mxu0
    %v2644 = vadd.f32 %v734, %v2643
    %v2645 = vpop.f32.mrb[0].mxu0
    %v2646 = vpop.f32.mrb[0].mxu0
    %v2647 = vadd.f32 %v735, %v2646
    %v2648 = vpop.f32.mrb[0].mxu0
    %2649 = vmatprep.mubr.bf16.mxu0 %v913
    %2650 = vmatmul.mubr.bf16.gmra.mrb[0].mxu0 %v912
    %v2651 = vpop.f32.mrb[0].mxu0
    %v2652 = vadd.f32 %v736, %v2651
    %v2653 = vpop.f32.mrb[0].mxu0
    %v2654 = vpop.f32.mrb[0].mxu0
    %v2655 = vadd.f32 %v737, %v2654
    %v2656 = vpop.f32.mrb[0].mxu0
    %2657 = vmatprep.mubr.bf16.mxu0 %v915
    %2658 = vmatmul.mubr.bf16.gmra.mrb[0].mxu0 %v914
    %v2659 = vpop.f32.mrb[0].mxu0
    %v2660 = vadd.f32 %v738, %v2659
    %v2661 = vpop.f32.mrb[0].mxu0
    %v2662 = vpop.f32.mrb[0].mxu0
    %v2663 = vadd.f32 %v739, %v2662
    %v2664 = vpop.f32.mrb[0].mxu0
    %2665 = vmatprep.mubr.bf16.mxu0 %v917
    %2666 = vmatmul.mubr.bf16.gmra.mrb[0].mxu0 %v916
    %v2667 = vpop.f32.mrb[0].mxu0
    %v2668 = vadd.f32 %v740, %v2667
    %v2669 = vpop.f32.mrb[0].mxu0
    %v2670 = vpop.f32.mrb[0].mxu0
    %v2671 = vadd.f32 %v741, %v2670
    %v2672 = vpop.f32.mrb[0].mxu0
    %2673 = vmatprep.mubr.bf16.mxu0 %v919
    %2674 = vmatmul.mubr.bf16.gmra.mrb[0].mxu0 %v918
    %v2675 = vpop.f32.mrb[0].mxu0
    %v2676 = vadd.f32 %v742, %v2675
    %v2677 = vpop.f32.mrb[0].mxu0
    %v2678 = vpop.f32.mrb[0].mxu0
    %v2679 = vadd.f32 %v743, %v2678
    %v2680 = vpop.f32.mrb[0].mxu0
    %2681 = vmatprep.mubr.bf16.mxu0 %v921
    %2682 = vmatmul.mubr.bf16.gmra.mrb[0].mxu0 %v920
    %v2683 = vpop.f32.mrb[0].mxu0
    %v2684 = vadd.f32 %v744, %v2683
    %v2685 = vpop.f32.mrb[0].mxu0
    %v2686 = vpop.f32.mrb[0].mxu0
    %v2687 = vadd.f32 %v745, %v2686
    %v2688 = vpop.f32.mrb[0].mxu0
    %2689 = vmatprep.mubr.bf16.mxu0 %v923
    %2690 = vmatmul.mubr.bf16.gmra.mrb[0].mxu0 %v922
    %v2691 = vpop.f32.mrb[0].mxu0
    %v2692 = vadd.f32 %v746, %v2691
    %v2693 = vpop.f32.mrb[0].mxu0
    %v2694 = vpop.f32.mrb[0].mxu0
    %v2695 = vadd.f32 %v747, %v2694
    %v2696 = vpop.f32.mrb[0].mxu0
    %2697 = vmatprep.mubr.bf16.mxu0 %v925
    %2698 = vmatmul.mubr.bf16.gmra.mrb[0].mxu0 %v924
    %v2699 = vpop.f32.mrb[0].mxu0
    %v2700 = vadd.f32 %v748, %v2699
    %v2701 = vpop.f32.mrb[0].mxu0
    %v2702 = vpop.f32.mrb[0].mxu0
    %v2703 = vadd.f32 %v749, %v2702
    %v2704 = vpop.f32.mrb[0].mxu0
    %2705 = vmatprep.mubr.bf16.mxu0 %v927
    %2706 = vmatmul.mubr.bf16.gmra.mrb[0].mxu0 %v926
    %v2707 = vpop.f32.mrb[0].mxu0
    %v2708 = vadd.f32 %v750, %v2707
    %v2709 = vpop.f32.mrb[0].mxu0
    %v2710 = vpop.f32.mrb[0].mxu0
    %v2711 = vadd.f32 %v751, %v2710
    %v2712 = vpop.f32.mrb[0].mxu0
    %2713 = vdwg.mxu0
    %v2714 = vlaneseq
    %v2715 = vand.u32 %v2714, 127
    %vm2716 = vcmp.lt.s32.totalorder %v2715, 8
    %v2717 = vsel %vm2716, %v2588, -inf
    %v2718 = vsel %vm2716, %v2591, -inf
    %v2719 = vsel %vm2716, %v2596, -inf
    %v2720 = vsel %vm2716, %v2599, -inf
    %v2721 = vsel %vm2716, %v2604, -inf
    %v2722 = vsel %vm2716, %v2607, -inf
    %v2723 = vsel %vm2716, %v2612, -inf
    %v2724 = vsel %vm2716, %v2615, -inf
    %v2725 = vsel %vm2716, %v2620, -inf
    %v2726 = vsel %vm2716, %v2623, -inf
    %v2727 = vsel %vm2716, %v2628, -inf
    %v2728 = vsel %vm2716, %v2631, -inf
    %v2729 = vsel %vm2716, %v2636, -inf
    %v2730 = vsel %vm2716, %v2639, -inf
    %v2731 = vsel %vm2716, %v2644, -inf
    %v2732 = vsel %vm2716, %v2647, -inf
    %v2733 = vsel %vm2716, %v2652, -inf
    %v2734 = vsel %vm2716, %v2655, -inf
    %v2735 = vsel %vm2716, %v2660, -inf
    %v2736 = vsel %vm2716, %v2663, -inf
    %v2737 = vsel %vm2716, %v2668, -inf
    %v2738 = vsel %vm2716, %v2671, -inf
    %v2739 = vsel %vm2716, %v2676, -inf
    %v2740 = vsel %vm2716, %v2679, -inf
    %v2741 = vsel %vm2716, %v2684, -inf
    %v2742 = vsel %vm2716, %v2687, -inf
    %v2743 = vsel %vm2716, %v2692, -inf
    %v2744 = vsel %vm2716, %v2695, -inf
    %v2745 = vsel %vm2716, %v2700, -inf
    %v2746 = vsel %vm2716, %v2703, -inf
    %v2747 = vsel %vm2716, %v2708, -inf
    %v2748 = vsel %vm2716, %v2711, -inf
    %2749 = vmax.xlane.f32.xlu0 %v2717
    %v2750 = vpop.xlane.xlu0 %2749
    %2751 = vmax.xlane.f32.xlu0 %v2718
    %v2752 = vpop.xlane.xlu0 %2751
    %2753 = vmax.xlane.f32.xlu0 %v2719
    %v2754 = vpop.xlane.xlu0 %2753
    %2755 = vmax.xlane.f32.xlu0 %v2720
    %v2756 = vpop.xlane.xlu0 %2755
    %2757 = vmax.xlane.f32.xlu0 %v2721
    %v2758 = vpop.xlane.xlu0 %2757
    %2759 = vmax.xlane.f32.xlu0 %v2722
    %v2760 = vpop.xlane.xlu0 %2759
    %2761 = vmax.xlane.f32.xlu0 %v2723
    %v2762 = vpop.xlane.xlu0 %2761
    %2763 = vmax.xlane.f32.xlu0 %v2724
    %v2764 = vpop.xlane.xlu0 %2763
    %2765 = vmax.xlane.f32.xlu0 %v2725
    %v2766 = vpop.xlane.xlu0 %2765
    %2767 = vmax.xlane.f32.xlu0 %v2726
    %v2768 = vpop.xlane.xlu0 %2767
    %2769 = vmax.xlane.f32.xlu0 %v2727
    %v2770 = vpop.xlane.xlu0 %2769
    %2771 = vmax.xlane.f32.xlu0 %v2728
    %v2772 = vpop.xlane.xlu0 %2771
    %2773 = vmax.xlane.f32.xlu0 %v2729
    %v2774 = vpop.xlane.xlu0 %2773
    %2775 = vmax.xlane.f32.xlu0 %v2730
    %v2776 = vpop.xlane.xlu0 %2775
    %2777 = vmax.xlane.f32.xlu0 %v2731
    %v2778 = vpop.xlane.xlu0 %2777
    %2779 = vmax.xlane.f32.xlu0 %v2732
    %v2780 = vpop.xlane.xlu0 %2779
    %2781 = vmax.xlane.f32.xlu0 %v2733
    %v2782 = vpop.xlane.xlu0 %2781
    %2783 = vmax.xlane.f32.xlu0 %v2734
    %v2784 = vpop.xlane.xlu0 %2783
    %2785 = vmax.xlane.f32.xlu0 %v2735
    %v2786 = vpop.xlane.xlu0 %2785
    %2787 = vmax.xlane.f32.xlu0 %v2736
    %v2788 = vpop.xlane.xlu0 %2787
    %2789 = vmax.xlane.f32.xlu0 %v2737
    %v2790 = vpop.xlane.xlu0 %2789
    %2791 = vmax.xlane.f32.xlu0 %v2738
    %v2792 = vpop.xlane.xlu0 %2791
    %2793 = vmax.xlane.f32.xlu0 %v2739
    %v2794 = vpop.xlane.xlu0 %2793
    %2795 = vmax.xlane.f32.xlu0 %v2740
    %v2796 = vpop.xlane.xlu0 %2795
    %2797 = vmax.xlane.f32.xlu0 %v2741
    %v2798 = vpop.xlane.xlu0 %2797
    %2799 = vmax.xlane.f32.xlu0 %v2742
    %v2800 = vpop.xlane.xlu0 %2799
    %2801 = vmax.xlane.f32.xlu0 %v2743
    %v2802 = vpop.xlane.xlu0 %2801
    %2803 = vmax.xlane.f32.xlu0 %v2744
    %v2804 = vpop.xlane.xlu0 %2803
    %2805 = vmax.xlane.f32.xlu0 %v2745
    %v2806 = vpop.xlane.xlu0 %2805
    %2807 = vmax.xlane.f32.xlu0 %v2746
    %v2808 = vpop.xlane.xlu0 %2807
    %2809 = vmax.xlane.f32.xlu0 %v2747
    %v2810 = vpop.xlane.xlu0 %2809
    %2811 = vmax.xlane.f32.xlu0 %v2748
    %v2812 = vpop.xlane.xlu0 %2811
    %v2813 = vsub.f32 %v2717, %v2750
    %v2814 = vsub.f32 %v2718, %v2752
    %v2815 = vsub.f32 %v2719, %v2754
    %v2816 = vsub.f32 %v2720, %v2756
    %v2817 = vsub.f32 %v2721, %v2758
    %v2818 = vsub.f32 %v2722, %v2760
    %v2819 = vsub.f32 %v2723, %v2762
    %v2820 = vsub.f32 %v2724, %v2764
    %v2821 = vsub.f32 %v2725, %v2766
    %v2822 = vsub.f32 %v2726, %v2768
    %v2823 = vsub.f32 %v2727, %v2770
    %v2824 = vsub.f32 %v2728, %v2772
    %v2825 = vsub.f32 %v2729, %v2774
    %v2826 = vsub.f32 %v2730, %v2776
    %v2827 = vsub.f32 %v2731, %v2778
    %v2828 = vsub.f32 %v2732, %v2780
    %v2829 = vsub.f32 %v2733, %v2782
    %v2830 = vsub.f32 %v2734, %v2784
    %v2831 = vsub.f32 %v2735, %v2786
    %v2832 = vsub.f32 %v2736, %v2788
    %v2833 = vsub.f32 %v2737, %v2790
    %v2834 = vsub.f32 %v2738, %v2792
    %v2835 = vsub.f32 %v2739, %v2794
    %v2836 = vsub.f32 %v2740, %v2796
    %v2837 = vsub.f32 %v2741, %v2798
    %v2838 = vsub.f32 %v2742, %v2800
    %v2839 = vsub.f32 %v2743, %v2802
    %v2840 = vsub.f32 %v2744, %v2804
    %v2841 = vsub.f32 %v2745, %v2806
    %v2842 = vsub.f32 %v2746, %v2808
    %v2843 = vsub.f32 %v2747, %v2810
    %v2844 = vsub.f32 %v2748, %v2812
    %v2845 = vmul.f32 %v2813, 1.442695
    %v2846 = vpow.pop %v2845
    %v2847 = vmul.f32 %v2814, 1.442695
    %v2848 = vpow.pop %v2847
    %v2849 = vmul.f32 %v2815, 1.442695
    %v2850 = vpow.pop %v2849
    %v2851 = vmul.f32 %v2816, 1.442695
    %v2852 = vpow.pop %v2851
    %v2853 = vmul.f32 %v2817, 1.442695
    %v2854 = vpow.pop %v2853
    %v2855 = vmul.f32 %v2818, 1.442695
    %v2856 = vpow.pop %v2855
    %v2857 = vmul.f32 %v2819, 1.442695
    %v2858 = vpow.pop %v2857
    %v2859 = vmul.f32 %v2820, 1.442695
    %v2860 = vpow.pop %v2859
    %v2861 = vmul.f32 %v2821, 1.442695
    %v2862 = vpow.pop %v2861
    %v2863 = vmul.f32 %v2822, 1.442695
    %v2864 = vpow.pop %v2863
    %v2865 = vmul.f32 %v2823, 1.442695
    %v2866 = vpow.pop %v2865
    %v2867 = vmul.f32 %v2824, 1.442695
    %v2868 = vpow.pop %v2867
    %v2869 = vmul.f32 %v2825, 1.442695
    %v2870 = vpow.pop %v2869
    %v2871 = vmul.f32 %v2826, 1.442695
    %v2872 = vpow.pop %v2871
    %v2873 = vmul.f32 %v2827, 1.442695
    %v2874 = vpow.pop %v2873
    %v2875 = vmul.f32 %v2828, 1.442695
    %v2876 = vpow.pop %v2875
    %v2877 = vmul.f32 %v2829, 1.442695
    %v2878 = vpow.pop %v2877
    %v2879 = vmul.f32 %v2830, 1.442695
    %v2880 = vpow.pop %v2879
    %v2881 = vmul.f32 %v2831, 1.442695
    %v2882 = vpow.pop %v2881
    %v2883 = vmul.f32 %v2832, 1.442695
    %v2884 = vpow.pop %v2883
    %v2885 = vmul.f32 %v2833, 1.442695
    %v2886 = vpow.pop %v2885
    %v2887 = vmul.f32 %v2834, 1.442695
    %v2888 = vpow.pop %v2887
    %v2889 = vmul.f32 %v2835, 1.442695
    %v2890 = vpow.pop %v2889
    %v2891 = vmul.f32 %v2836, 1.442695
    %v2892 = vpow.pop %v2891
    %v2893 = vmul.f32 %v2837, 1.442695
    %v2894 = vpow.pop %v2893
    %v2895 = vmul.f32 %v2838, 1.442695
    %v2896 = vpow.pop %v2895
    %v2897 = vmul.f32 %v2839, 1.442695
    %v2898 = vpow.pop %v2897
    %v2899 = vmul.f32 %v2840, 1.442695
    %v2900 = vpow.pop %v2899
    %v2901 = vmul.f32 %v2841, 1.442695
    %v2902 = vpow.pop %v2901
    %v2903 = vmul.f32 %v2842, 1.442695
    %v2904 = vpow.pop %v2903
    %v2905 = vmul.f32 %v2843, 1.442695
    %v2906 = vpow.pop %v2905
    %v2907 = vmul.f32 %v2844, 1.442695
    %v2908 = vpow.pop %v2907
    %2909 = vadd.xlane.f32.xlu0 %v2846
    %v2910 = vpop.xlane.xlu0 %2909
    %2911 = vadd.xlane.f32.xlu0 %v2848
    %v2912 = vpop.xlane.xlu0 %2911
    %2913 = vadd.xlane.f32.xlu0 %v2850
    %v2914 = vpop.xlane.xlu0 %2913
    %2915 = vadd.xlane.f32.xlu0 %v2852
    %v2916 = vpop.xlane.xlu0 %2915
    %2917 = vadd.xlane.f32.xlu0 %v2854
    %v2918 = vpop.xlane.xlu0 %2917
    %2919 = vadd.xlane.f32.xlu0 %v2856
    %v2920 = vpop.xlane.xlu0 %2919
    %2921 = vadd.xlane.f32.xlu0 %v2858
    %v2922 = vpop.xlane.xlu0 %2921
    %2923 = vadd.xlane.f32.xlu0 %v2860
    %v2924 = vpop.xlane.xlu0 %2923
    %2925 = vadd.xlane.f32.xlu0 %v2862
    %v2926 = vpop.xlane.xlu0 %2925
    %2927 = vadd.xlane.f32.xlu0 %v2864
    %v2928 = vpop.xlane.xlu0 %2927
    %2929 = vadd.xlane.f32.xlu0 %v2866
    %v2930 = vpop.xlane.xlu0 %2929
    %2931 = vadd.xlane.f32.xlu0 %v2868
    %v2932 = vpop.xlane.xlu0 %2931
    %2933 = vadd.xlane.f32.xlu0 %v2870
    %v2934 = vpop.xlane.xlu0 %2933
    %2935 = vadd.xlane.f32.xlu0 %v2872
    %v2936 = vpop.xlane.xlu0 %2935
    %2937 = vadd.xlane.f32.xlu0 %v2874
    %v2938 = vpop.xlane.xlu0 %2937
    %2939 = vadd.xlane.f32.xlu0 %v2876
    %v2940 = vpop.xlane.xlu0 %2939
    %2941 = vadd.xlane.f32.xlu0 %v2878
    %v2942 = vpop.xlane.xlu0 %2941
    %2943 = vadd.xlane.f32.xlu0 %v2880
    %v2944 = vpop.xlane.xlu0 %2943
    %2945 = vadd.xlane.f32.xlu0 %v2882
    %v2946 = vpop.xlane.xlu0 %2945
    %2947 = vadd.xlane.f32.xlu0 %v2884
    %v2948 = vpop.xlane.xlu0 %2947
    %2949 = vadd.xlane.f32.xlu0 %v2886
    %v2950 = vpop.xlane.xlu0 %2949
    %2951 = vadd.xlane.f32.xlu0 %v2888
    %v2952 = vpop.xlane.xlu0 %2951
    %2953 = vadd.xlane.f32.xlu0 %v2890
    %v2954 = vpop.xlane.xlu0 %2953
    %2955 = vadd.xlane.f32.xlu0 %v2892
    %v2956 = vpop.xlane.xlu0 %2955
    %2957 = vadd.xlane.f32.xlu0 %v2894
    %v2958 = vpop.xlane.xlu0 %2957
    %2959 = vadd.xlane.f32.xlu0 %v2896
    %v2960 = vpop.xlane.xlu0 %2959
    %2961 = vadd.xlane.f32.xlu0 %v2898
    %v2962 = vpop.xlane.xlu0 %2961
    %2963 = vadd.xlane.f32.xlu0 %v2900
    %v2964 = vpop.xlane.xlu0 %2963
    %2965 = vadd.xlane.f32.xlu0 %v2902
    %v2966 = vpop.xlane.xlu0 %2965
    %2967 = vadd.xlane.f32.xlu0 %v2904
    %v2968 = vpop.xlane.xlu0 %2967
    %2969 = vadd.xlane.f32.xlu0 %v2906
    %v2970 = vpop.xlane.xlu0 %2969
    %2971 = vadd.xlane.f32.xlu0 %v2908
    %v2972 = vpop.xlane.xlu0 %2971
    %v2973 = vlog2.pop %v2910
    %v2974 = vmul.f32 %v2973, 0.6931472
    %v2975 = vlog2.pop %v2912
    %v2976 = vmul.f32 %v2975, 0.6931472
    %v2977 = vlog2.pop %v2914
    %v2978 = vmul.f32 %v2977, 0.6931472
    %v2979 = vlog2.pop %v2916
    %v2980 = vmul.f32 %v2979, 0.6931472
    %v2981 = vlog2.pop %v2918
    %v2982 = vmul.f32 %v2981, 0.6931472
    %v2983 = vlog2.pop %v2920
    %v2984 = vmul.f32 %v2983, 0.6931472
    %v2985 = vlog2.pop %v2922
    %v2986 = vmul.f32 %v2985, 0.6931472
    %v2987 = vlog2.pop %v2924
    %v2988 = vmul.f32 %v2987, 0.6931472
    %v2989 = vlog2.pop %v2926
    %v2990 = vmul.f32 %v2989, 0.6931472
    %v2991 = vlog2.pop %v2928
    %v2992 = vmul.f32 %v2991, 0.6931472
    %v2993 = vlog2.pop %v2930
    %v2994 = vmul.f32 %v2993, 0.6931472
    %v2995 = vlog2.pop %v2932
    %v2996 = vmul.f32 %v2995, 0.6931472
    %v2997 = vlog2.pop %v2934
    %v2998 = vmul.f32 %v2997, 0.6931472
    %v2999 = vlog2.pop %v2936
    %v3000 = vmul.f32 %v2999, 0.6931472
    %v3001 = vlog2.pop %v2938
    %v3002 = vmul.f32 %v3001, 0.6931472
    %v3003 = vlog2.pop %v2940
    %v3004 = vmul.f32 %v3003, 0.6931472
    %v3005 = vlog2.pop %v2942
    %v3006 = vmul.f32 %v3005, 0.6931472
    %v3007 = vlog2.pop %v2944
    %v3008 = vmul.f32 %v3007, 0.6931472
    %v3009 = vlog2.pop %v2946
    %v3010 = vmul.f32 %v3009, 0.6931472
    %v3011 = vlog2.pop %v2948
    %v3012 = vmul.f32 %v3011, 0.6931472
    %v3013 = vlog2.pop %v2950
    %v3014 = vmul.f32 %v3013, 0.6931472
    %v3015 = vlog2.pop %v2952
    %v3016 = vmul.f32 %v3015, 0.6931472
    %v3017 = vlog2.pop %v2954
    %v3018 = vmul.f32 %v3017, 0.6931472
    %v3019 = vlog2.pop %v2956
    %v3020 = vmul.f32 %v3019, 0.6931472
    %v3021 = vlog2.pop %v2958
    %v3022 = vmul.f32 %v3021, 0.6931472
    %v3023 = vlog2.pop %v2960
    %v3024 = vmul.f32 %v3023, 0.6931472
    %v3025 = vlog2.pop %v2962
    %v3026 = vmul.f32 %v3025, 0.6931472
    %v3027 = vlog2.pop %v2964
    %v3028 = vmul.f32 %v3027, 0.6931472
    %v3029 = vlog2.pop %v2966
    %v3030 = vmul.f32 %v3029, 0.6931472
    %v3031 = vlog2.pop %v2968
    %v3032 = vmul.f32 %v3031, 0.6931472
    %v3033 = vlog2.pop %v2970
    %v3034 = vmul.f32 %v3033, 0.6931472
    %v3035 = vlog2.pop %v2972
    %v3036 = vmul.f32 %v3035, 0.6931472
    %v3037 = vsub.f32 %v2813, %v2974
    %v3038 = vsub.f32 %v2814, %v2976
    %v3039 = vsub.f32 %v2815, %v2978
    %v3040 = vsub.f32 %v2816, %v2980
    %v3041 = vsub.f32 %v2817, %v2982
    %v3042 = vsub.f32 %v2818, %v2984
    %v3043 = vsub.f32 %v2819, %v2986
    %v3044 = vsub.f32 %v2820, %v2988
    %v3045 = vsub.f32 %v2821, %v2990
    %v3046 = vsub.f32 %v2822, %v2992
    %v3047 = vsub.f32 %v2823, %v2994
    %v3048 = vsub.f32 %v2824, %v2996
    %v3049 = vsub.f32 %v2825, %v2998
    %v3050 = vsub.f32 %v2826, %v3000
    %v3051 = vsub.f32 %v2827, %v3002
    %v3052 = vsub.f32 %v2828, %v3004
    %v3053 = vsub.f32 %v2829, %v3006
    %v3054 = vsub.f32 %v2830, %v3008
    %v3055 = vsub.f32 %v2831, %v3010
    %v3056 = vsub.f32 %v2832, %v3012
    %v3057 = vsub.f32 %v2833, %v3014
    %v3058 = vsub.f32 %v2834, %v3016
    %v3059 = vsub.f32 %v2835, %v3018
    %v3060 = vsub.f32 %v2836, %v3020
    %v3061 = vsub.f32 %v2837, %v3022
    %v3062 = vsub.f32 %v2838, %v3024
    %v3063 = vsub.f32 %v2839, %v3026
    %v3064 = vsub.f32 %v2840, %v3028
    %v3065 = vsub.f32 %v2841, %v3030
    %v3066 = vsub.f32 %v2842, %v3032
    %v3067 = vsub.f32 %v2843, %v3034
    %v3068 = vsub.f32 %v2844, %v3036
    %3069 = vst [vmem:[#allocation10] sm:$0xff] %v3037
    %3070 = vst [vmem:[#allocation10 + $0x8] sm:$0xff] %v3038
    %3071 = vst [vmem:[#allocation10 + $0x10] sm:$0xff] %v3039
    %3072 = vst [vmem:[#allocation10 + $0x18] sm:$0xff] %v3040
    %3073 = vst [vmem:[#allocation10 + $0x20] sm:$0xff] %v3041
    %3074 = vst [vmem:[#allocation10 + $0x28] sm:$0xff] %v3042
    %3075 = vst [vmem:[#allocation10 + $0x30] sm:$0xff] %v3043
    %3076 = vst [vmem:[#allocation10 + $0x38] sm:$0xff] %v3044
    %3077 = vst [vmem:[#allocation10 + $0x40] sm:$0xff] %v3045
    %3078 = vst [vmem:[#allocation10 + $0x48] sm:$0xff] %v3046
    %3079 = vst [vmem:[#allocation10 + $0x50] sm:$0xff] %v3047
    %3080 = vst [vmem:[#allocation10 + $0x58] sm:$0xff] %v3048
    %3081 = vst [vmem:[#allocation10 + $0x60] sm:$0xff] %v3049
    %3082 = vst [vmem:[#allocation10 + $0x68] sm:$0xff] %v3050
    %3083 = vst [vmem:[#allocation10 + $0x70] sm:$0xff] %v3051
    %3084 = vst [vmem:[#allocation10 + $0x78] sm:$0xff] %v3052
    %3085 = vst [vmem:[#allocation10 + $0x80] sm:$0xff] %v3053
    %3086 = vst [vmem:[#allocation10 + $0x88] sm:$0xff] %v3054
    %3087 = vst [vmem:[#allocation10 + $0x90] sm:$0xff] %v3055
    %3088 = vst [vmem:[#allocation10 + $0x98] sm:$0xff] %v3056
    %3089 = vst [vmem:[#allocation10 + $0xa0] sm:$0xff] %v3057
    %3090 = vst [vmem:[#allocation10 + $0xa8] sm:$0xff] %v3058
    %3091 = vst [vmem:[#allocation10 + $0xb0] sm:$0xff] %v3059
    %3092 = vst [vmem:[#allocation10 + $0xb8] sm:$0xff] %v3060
    %3093 = vst [vmem:[#allocation10 + $0xc0] sm:$0xff] %v3061
    %3094 = vst [vmem:[#allocation10 + $0xc8] sm:$0xff] %v3062
    %3095 = vst [vmem:[#allocation10 + $0xd0] sm:$0xff] %v3063
    %3096 = vst [vmem:[#allocation10 + $0xd8] sm:$0xff] %v3064
    %3097 = vst [vmem:[#allocation10 + $0xe0] sm:$0xff] %v3065
    %3098 = vst [vmem:[#allocation10 + $0xe8] sm:$0xff] %v3066
    %3099 = vst [vmem:[#allocation10 + $0xf0] sm:$0xff] %v3067
    %3100 = vst [vmem:[#allocation10 + $0xf8] sm:$0xff] %v3068
    // Predicated region
    $region42: #{tpu_custom_call.1} parent=1 // pred_check
      _
    $region43: #{tpu_custom_call.1} parent=1 // pred_check_branch
      %3102 = sbr.rel (0) target = $region45
    $region44: #{tpu_custom_call.1} parent=1 // pred_region
      %s3104 = ssub.s32 4096, 4096
      %3105 = vsyncadd [#allocation4], %s3104
      %s3106 = sshll.u32 [#allocation10], 4
      %s3107 = int_to_ptr.vmem [resolvable:$true] %s3106
      %3112 = dma.vmem_to_hbm [thread:$0]  %s3107, 4096, %s6, [#allocation4], 128, 128, 8
    $region45: #{tpu_custom_call.1} parent=1 // pred_fallthru
      _
    // Predicated region
    $region46: #{tpu_custom_call.1} parent=1 // pred_check
      _
    $region47: #{tpu_custom_call.1} parent=1 // pred_check_branch
      %3114 = sbr.rel (0) target = $region49
    $region48: #{tpu_custom_call.1} parent=1 // pred_region
      %3115 = dma.done [#allocation4], 4096
    $region49: #{tpu_custom_call.1} parent=1 // pred_fallthru
      _
    %3116 = vsyncpa [#allocation3], 1
    %3117 = vsyncpa [#allocation6], 1
    %3118 = vsyncpa [#allocation9], 1
    %3119 = vsyncpa [#allocation4], 1

</llo_original>
